<compile_context>
chip_gen: v5e
topology: v5e:2x2
jax: 0.10.0
libtpu: 0.0.40
codegen_flags: <defaults>
</compile_context>

<pallas_src>
import functools

import jax
import jax.numpy as jnp
import numpy as np
from jax.experimental import pallas as pl
from jax.experimental.pallas import tpu as pltpu


_EPS = 1e-12            # torch.nn.functional.normalize default eps
_EPS2 = _EPS * _EPS     # max(sqrt(ss), eps) == sqrt(max(ss, eps^2))


def _eaa_kernel(x_ref, wqk_ref, bqk_ref, wg_ref, wp_ref, bp_ref, wf_ref,
                bf_ref, out_ref, *, scale):
    bb, n, _ = x_ref.shape
    d = wg_ref.shape[1]
    mxu_dtype = wqk_ref.dtype

    # Flatten the batch block so every MXU push sees Bb*N rows.
    xf = x_ref[...].reshape(bb * n, -1)                         # (Bb*N, Din)

    # Fused query/key projection: single matmul against [Wq|Wk]^T.
    qk = jnp.dot(xf, wqk_ref[...],
                 preferred_element_type=jnp.float32) + bqk_ref[...]   # (Bb*N, 2D) f32
    q = qk[:, :d]                                               # (Bb*N, D)
    k = qk[:, d:]                                               # (Bb*N, D)

    # L2 normalize along features (F.normalize, dim=-1): mul-by-rsqrt (EUP).
    q = q * jax.lax.rsqrt(
        jnp.maximum(jnp.sum(q * q, axis=-1, keepdims=True), _EPS2))
    k = k * jax.lax.rsqrt(
        jnp.maximum(jnp.sum(k * k, axis=-1, keepdims=True), _EPS2))

    # q @ w_g as VPU multiply + lane reduction (w_g passed as a (1, D) row).
    a = jnp.sum(q * wg_ref[...], axis=-1, keepdims=True) * scale      # (Bb*N, 1)

    # F.normalize over the token axis (dim=1), per batch element.
    a = a.reshape(bb, n, 1)
    a = a * jax.lax.rsqrt(
        jnp.maximum(jnp.sum(a * a, axis=1, keepdims=True), _EPS2))

    # Global context G = sum_n A_n * q_n, broadcast back over tokens.
    q3 = q.reshape(bb, n, d)
    g = jnp.sum(a * q3, axis=1, keepdims=True)                  # (Bb, 1, D)
    gk = (g * k.reshape(bb, n, d)).reshape(bb * n, d)           # (Bb*N, D)

    # out = final(Proj(G * key) + query)
    o = jnp.dot(gk.astype(mxu_dtype), wp_ref[...],
                preferred_element_type=jnp.float32) + bp_ref[...] + q
    o = jnp.dot(o.astype(mxu_dtype), wf_ref[...],
                preferred_element_type=jnp.float32) + bf_ref[...]
    out_ref[...] = o.reshape(bb, n, -1).astype(out_ref.dtype)


def prepare_eaa_params(wq, bq, wk, bk, w_g, wp, bp, wf, bf,
                       *, compute_dtype=jnp.float32):
    """One-time parameter prep (hoisted out of the per-call path).

    Fuses the q/k projection weights, pre-transposes all matmul weights
    (optionally casting to bf16 for the MXU on v6e/v7x) and reshapes biases /
    w_g into f32 broadcast rows. Call once at parameter-load time.
    """
    d = wq.shape[0]
    wqk_t = jnp.concatenate([wq, wk], axis=0).T.astype(compute_dtype)  # (Din, 2D)
    bqk = jnp.concatenate([bq, bk]).reshape(1, 2 * d).astype(jnp.float32)
    wg_row = w_g.reshape(1, d).astype(jnp.float32)                     # VPU operand
    wp_t = wp.T.astype(compute_dtype)                                  # (D, D)
    wf_t = wf.T.astype(compute_dtype)                                  # (D, Dt)
    bp_r = bp.reshape(1, -1).astype(jnp.float32)
    bf_r = bf.reshape(1, -1).astype(jnp.float32)
    return wqk_t, bqk, wg_row, wp_t, bp_r, wf_t, bf_r


def _choose_block_b(b, n, din, dt, itemsize=4, vmem_budget=12 << 20):
    """Largest batch block s.t. double-buffered x/out blocks fit a conservative
    VMEM budget (safe on v5e 16 MiB scoped default and v7x 64 MiB physical)
    while keeping >= 4 grid steps so megacore sharding still pipelines."""
    min_steps = min(4, b)
    best = 1
    for bb in range(1, b + 1):
        if b % bb:
            continue
        if b // bb < min_steps:
            break
        if 2 * bb * n * (din + dt) * itemsize <= vmem_budget:
            best = bb
    return best


def efficient_additive_attention(x, params, *, token_dim, block_b=None):
    """x: (B, N, in_dims); params from prepare_eaa_params()."""
    wqk_t, bqk, wg_row, wp_t, bp_r, wf_t, bf_r = params
    b, n, din = x.shape
    d = wg_row.shape[1]
    dt = wf_t.shape[1]
    scale = float(token_dim) ** -0.5
    compute_dtype = wqk_t.dtype
    out_dtype = x.dtype
    x = x.astype(compute_dtype)      # halves x DMA bytes in the bf16 mode

    if block_b is None:
        block_b = _choose_block_b(b, n, din, dt)
    grid = (b // block_b,)

    kernel = functools.partial(_eaa_kernel, scale=scale)

    def run(single_buffer_weights):
        def wspec(shape):
            idx = lambda i, _nd=len(shape): (0,) * _nd
            if single_buffer_weights:
                # Constant index_map -> DMA'd once; no need for double buffers.
                return pl.BlockSpec(shape, idx, pipeline_mode=pl.Buffered(1))
            return pl.BlockSpec(shape, idx)

        return pl.pallas_call(
            kernel,
            out_shape=jax.ShapeDtypeStruct((b, n, dt), out_dtype),
            grid_spec=pltpu.PrefetchScalarGridSpec(
                num_scalar_prefetch=0,
                grid=grid,
                in_specs=[
                    pl.BlockSpec((block_b, n, din), lambda i: (i, 0, 0)),  # x
                    wspec((din, 2 * d)),     # [Wq|Wk]^T
                    wspec((1, 2 * d)),       # [bq|bk]
                    wspec((1, d)),           # w_g row (VPU operand)
                    wspec((d, d)),           # Proj W^T
                    wspec((1, d)),           # Proj bias
                    wspec((d, dt)),          # final W^T
                    wspec((1, dt)),          # final bias
                ],
                out_specs=pl.BlockSpec((block_b, n, dt), lambda i: (i, 0, 0)),
            ),
            compiler_params=pltpu.CompilerParams(
                dimension_semantics=("parallel",)),
        )(x, wqk_t, bqk, wg_row, wp_t, bp_r, wf_t, bf_r)

    try:
        return run(True)
    except Exception:
        # Fallback for JAX versions where BlockSpec(pipeline_mode=...) is not
        # supported: weights simply get default double buffering.
        return run(False)


def eaa_reference(x, wq, bq, wk, bk, w_g, wp, bp, wf, bf, *, token_dim):
    """Pure-JAX mirror of the PyTorch forward (raw nn.Linear layouts)."""
    scale = float(token_dim) ** -0.5
    q = jnp.einsum('bnd,od->bno', x, wq) + bq
    k = jnp.einsum('bnd,od->bno', x, wk) + bk
    q = q / jnp.maximum(jnp.linalg.norm(q, axis=-1, keepdims=True), _EPS)
    k = k / jnp.maximum(jnp.linalg.norm(k, axis=-1, keepdims=True), _EPS)
    a = (q @ w_g) * scale                                       # (B, N, 1)
    a = a / jnp.maximum(jnp.linalg.norm(a, axis=1, keepdims=True), _EPS)
    g = jnp.sum(a * q, axis=1)                                  # (B, D)
    out = jnp.einsum('bnd,od->bno', g[:, None, :] * k, wp) + bp + q
    out = jnp.einsum('bnd,od->bno', out, wf) + bf
    return out


if __name__ == "__main__":
    # Small shapes consistent with the module (defaults 512/256/2, scaled down
    # but kept lane-dense: every feature dim a multiple of 128). B=8 so the
    # batch-blocked grid has 4 steps with Bb=2.
    B, N = 8, 64
    in_dims, token_dim, num_heads = 128, 128, 2
    D = token_dim * num_heads       # 256

    key = jax.random.PRNGKey(0)
    ks = jax.random.split(key, 10)
    x = jax.random.normal(ks[0], (B, N, in_dims), dtype=jnp.float32)

    s_in = 1.0 / np.sqrt(in_dims)
    s_d = 1.0 / np.sqrt(D)
    wq = jax.random.normal(ks[1], (D, in_dims), jnp.float32) * s_in
    bq = jax.random.normal(ks[2], (D,), jnp.float32) * 0.02
    wk = jax.random.normal(ks[3], (D, in_dims), jnp.float32) * s_in
    bk = jax.random.normal(ks[4], (D,), jnp.float32) * 0.02
    w_g = jax.random.normal(ks[5], (D, 1), jnp.float32)
    wp = jax.random.normal(ks[6], (D, D), jnp.float32) * s_d
    bp = jax.random.normal(ks[7], (D,), jnp.float32) * 0.02
    wf = jax.random.normal(ks[8], (token_dim, D), jnp.float32) * s_d
    bf = jax.random.normal(ks[9], (token_dim,), jnp.float32) * 0.02

    ref = eaa_reference(x, wq, bq, wk, bk, w_g, wp, bp, wf, bf,
                        token_dim=token_dim)

    # f32 path: strict tolerance.
    params_f32 = prepare_eaa_params(wq, bq, wk, bk, w_g, wp, bp, wf, bf)
    out = efficient_additive_attention(x, params_f32, token_dim=token_dim)
    out = jax.block_until_ready(out)
    np.testing.assert_allclose(np.asarray(out), np.asarray(ref),
                               rtol=1e-4, atol=1e-4)

    # bf16-MXU path (v6e/v7x): weights + x in bf16, norms/reductions in f32.
    params_bf16 = prepare_eaa_params(wq, bq, wk, bk, w_g, wp, bp, wf, bf,
                                     compute_dtype=jnp.bfloat16)
    out_bf16 = jax.block_until_ready(
        efficient_additive_attention(x, params_bf16, token_dim=token_dim))
    np.testing.assert_allclose(np.asarray(out_bf16, np.float32),
                               np.asarray(ref), rtol=5e-2, atol=5e-2)

    print("KERNEL_OK")
</pallas_src>

<mosaic_0001>
module attributes {stable_mosaic.version = 11 : i64} {
  func.func @_eaa_kernel(%arg0: i32, %arg1: memref<2x64x128xf32, #tpu.memory_space<vmem>>, %arg2: memref<128x512xf32, #tpu.memory_space<vmem>>, %arg3: memref<1x512xf32, #tpu.memory_space<vmem>>, %arg4: memref<1x256xf32, #tpu.memory_space<vmem>>, %arg5: memref<256x256xf32, #tpu.memory_space<vmem>>, %arg6: memref<1x256xf32, #tpu.memory_space<vmem>>, %arg7: memref<256x128xf32, #tpu.memory_space<vmem>>, %arg8: memref<1x128xf32, #tpu.memory_space<vmem>>, %arg9: memref<2x64x128xf32, #tpu.memory_space<vmem>>) attributes {dimension_semantics = [#tpu.dimension_semantics<parallel>], iteration_bounds = array<i64: 4>, scalar_prefetch = 0 : i64, scratch_operands = 0 : i64, tpu.core_type = #tpu.core_type<tc>, window_params = [{transform_indices = @transform_0, window_bounds = array<i64: 2, 64, 128>}, {pipeline_mode = #tpu.pipeline_mode<synchronous>, transform_indices = @transform_1, window_bounds = array<i64: 128, 512>}, {pipeline_mode = #tpu.pipeline_mode<synchronous>, transform_indices = @transform_2, window_bounds = array<i64: 1, 512>}, {pipeline_mode = #tpu.pipeline_mode<synchronous>, transform_indices = @transform_3, window_bounds = array<i64: 1, 256>}, {pipeline_mode = #tpu.pipeline_mode<synchronous>, transform_indices = @transform_4, window_bounds = array<i64: 256, 256>}, {pipeline_mode = #tpu.pipeline_mode<synchronous>, transform_indices = @transform_5, window_bounds = array<i64: 1, 256>}, {pipeline_mode = #tpu.pipeline_mode<synchronous>, transform_indices = @transform_6, window_bounds = array<i64: 256, 128>}, {pipeline_mode = #tpu.pipeline_mode<synchronous>, transform_indices = @transform_7, window_bounds = array<i64: 1, 128>}, {transform_indices = @transform_8, window_bounds = array<i64: 2, 64, 128>}]} {
    %c0 = arith.constant 0 : index
    %c0_0 = arith.constant 0 : index
    %c0_1 = arith.constant 0 : index
    %0 = vector.load %arg1[%c0, %c0_0, %c0_1] : memref<2x64x128xf32, #tpu.memory_space<vmem>>, vector<2x64x128xf32>
    %1 = vector.shape_cast %0 : vector<2x64x128xf32> to vector<128x128xf32>
    %c0_2 = arith.constant 0 : index
    %c0_3 = arith.constant 0 : index
    %2 = vector.load %arg2[%c0_2, %c0_3] : memref<128x512xf32, #tpu.memory_space<vmem>>, vector<128x512xf32>
    %cst = arith.constant dense<0.000000e+00> : vector<128x512xf32>
    %3 = tpu.matmul %1, %2, %cst {dimension_numbers = #tpu.dot_dimension_numbers<[1], [0], [0], [1], [0, 0, 1, 1], [], []>} : vector<128x128xf32>, vector<128x512xf32>, vector<128x512xf32> -> vector<128x512xf32>
    %c0_4 = arith.constant 0 : index
    %c0_5 = arith.constant 0 : index
    %4 = vector.load %arg3[%c0_4, %c0_5] : memref<1x512xf32, #tpu.memory_space<vmem>>, vector<1x512xf32>
    %5 = vector.broadcast %4 : vector<1x512xf32> to vector<128x512xf32>
    %6 = arith.addf %3, %5 : vector<128x512xf32>
    %7 = vector.extract_strided_slice %6 {offsets = [0, 0], sizes = [128, 256], strides = [1, 1]} : vector<128x512xf32> to vector<128x256xf32>
    %8 = vector.extract_strided_slice %6 {offsets = [0, 256], sizes = [128, 256], strides = [1, 1]} : vector<128x512xf32> to vector<128x256xf32>
    %9 = arith.mulf %7, %7 : vector<128x256xf32>
    %cst_6 = arith.constant dense<0.000000e+00> : vector<128xf32>
    %10 = vector.multi_reduction <add>, %9, %cst_6 [1] : vector<128x256xf32> to vector<128xf32>
    %11 = vector.shape_cast %10 : vector<128xf32> to vector<128x1xf32>
    %cst_7 = arith.constant 1.000000e-24 : f32
    %12 = vector.broadcast %cst_7 : f32 to vector<128x1xf32>
    %13 = arith.maximumf %11, %12 : vector<128x1xf32>
    %14 = math.rsqrt %13 : vector<128x1xf32>
    %15 = vector.broadcast %14 : vector<128x1xf32> to vector<128x256xf32>
    %16 = arith.mulf %7, %15 : vector<128x256xf32>
    %17 = arith.mulf %8, %8 : vector<128x256xf32>
    %cst_8 = arith.constant dense<0.000000e+00> : vector<128xf32>
    %18 = vector.multi_reduction <add>, %17, %cst_8 [1] : vector<128x256xf32> to vector<128xf32>
    %19 = vector.shape_cast %18 : vector<128xf32> to vector<128x1xf32>
    %cst_9 = arith.constant 1.000000e-24 : f32
    %20 = vector.broadcast %cst_9 : f32 to vector<128x1xf32>
    %21 = arith.maximumf %19, %20 : vector<128x1xf32>
    %22 = math.rsqrt %21 : vector<128x1xf32>
    %23 = vector.broadcast %22 : vector<128x1xf32> to vector<128x256xf32>
    %24 = arith.mulf %8, %23 : vector<128x256xf32>
    %c0_10 = arith.constant 0 : index
    %c0_11 = arith.constant 0 : index
    %25 = vector.load %arg4[%c0_10, %c0_11] : memref<1x256xf32, #tpu.memory_space<vmem>>, vector<1x256xf32>
    %26 = vector.broadcast %25 : vector<1x256xf32> to vector<128x256xf32>
    %27 = arith.mulf %16, %26 : vector<128x256xf32>
    %cst_12 = arith.constant dense<0.000000e+00> : vector<128xf32>
    %28 = vector.multi_reduction <add>, %27, %cst_12 [1] : vector<128x256xf32> to vector<128xf32>
    %29 = vector.shape_cast %28 : vector<128xf32> to vector<128x1xf32>
    %cst_13 = arith.constant 0.0883883461 : f32
    %30 = vector.broadcast %cst_13 : f32 to vector<128x1xf32>
    %31 = arith.mulf %29, %30 : vector<128x1xf32>
    %32 = vector.shape_cast %31 : vector<128x1xf32> to vector<2x64x1xf32>
    %33 = arith.mulf %32, %32 : vector<2x64x1xf32>
    %cst_14 = arith.constant dense<0.000000e+00> : vector<2x1xf32>
    %34 = vector.multi_reduction <add>, %33, %cst_14 [1] : vector<2x64x1xf32> to vector<2x1xf32>
    %35 = vector.shape_cast %34 : vector<2x1xf32> to vector<2x1x1xf32>
    %cst_15 = arith.constant 1.000000e-24 : f32
    %36 = vector.broadcast %cst_15 : f32 to vector<2x1x1xf32>
    %37 = arith.maximumf %35, %36 : vector<2x1x1xf32>
    %38 = math.rsqrt %37 : vector<2x1x1xf32>
    %39 = vector.broadcast %38 : vector<2x1x1xf32> to vector<2x64x1xf32>
    %40 = arith.mulf %32, %39 : vector<2x64x1xf32>
    %41 = vector.shape_cast %16 : vector<128x256xf32> to vector<2x64x256xf32>
    %42 = vector.broadcast %40 : vector<2x64x1xf32> to vector<2x64x256xf32>
    %43 = arith.mulf %42, %41 : vector<2x64x256xf32>
    %cst_16 = arith.constant dense<0.000000e+00> : vector<2x256xf32>
    %44 = vector.multi_reduction <add>, %43, %cst_16 [1] : vector<2x64x256xf32> to vector<2x256xf32>
    %45 = vector.shape_cast %44 : vector<2x256xf32> to vector<2x1x256xf32>
    %46 = vector.shape_cast %24 : vector<128x256xf32> to vector<2x64x256xf32>
    %47 = vector.broadcast %45 : vector<2x1x256xf32> to vector<2x64x256xf32>
    %48 = arith.mulf %47, %46 : vector<2x64x256xf32>
    %49 = vector.shape_cast %48 : vector<2x64x256xf32> to vector<128x256xf32>
    %c0_17 = arith.constant 0 : index
    %c0_18 = arith.constant 0 : index
    %50 = vector.load %arg5[%c0_17, %c0_18] : memref<256x256xf32, #tpu.memory_space<vmem>>, vector<256x256xf32>
    %cst_19 = arith.constant dense<0.000000e+00> : vector<128x256xf32>
    %51 = tpu.matmul %49, %50, %cst_19 {dimension_numbers = #tpu.dot_dimension_numbers<[1], [0], [0], [1], [0, 0, 1, 1], [], []>} : vector<128x256xf32>, vector<256x256xf32>, vector<128x256xf32> -> vector<128x256xf32>
    %c0_20 = arith.constant 0 : index
    %c0_21 = arith.constant 0 : index
    %52 = vector.load %arg6[%c0_20, %c0_21] : memref<1x256xf32, #tpu.memory_space<vmem>>, vector<1x256xf32>
    %53 = vector.broadcast %52 : vector<1x256xf32> to vector<128x256xf32>
    %54 = arith.addf %51, %53 : vector<128x256xf32>
    %55 = arith.addf %54, %16 : vector<128x256xf32>
    %c0_22 = arith.constant 0 : index
    %c0_23 = arith.constant 0 : index
    %56 = vector.load %arg7[%c0_22, %c0_23] : memref<256x128xf32, #tpu.memory_space<vmem>>, vector<256x128xf32>
    %cst_24 = arith.constant dense<0.000000e+00> : vector<128x128xf32>
    %57 = tpu.matmul %55, %56, %cst_24 {dimension_numbers = #tpu.dot_dimension_numbers<[1], [0], [0], [1], [0, 0, 1, 1], [], []>} : vector<128x256xf32>, vector<256x128xf32>, vector<128x128xf32> -> vector<128x128xf32>
    %c0_25 = arith.constant 0 : index
    %c0_26 = arith.constant 0 : index
    %58 = vector.load %arg8[%c0_25, %c0_26] : memref<1x128xf32, #tpu.memory_space<vmem>>, vector<1x128xf32>
    %59 = vector.broadcast %58 : vector<1x128xf32> to vector<128x128xf32>
    %60 = arith.addf %57, %59 : vector<128x128xf32>
    %61 = vector.shape_cast %60 : vector<128x128xf32> to vector<2x64x128xf32>
    %c0_27 = arith.constant 0 : index
    %c0_28 = arith.constant 0 : index
    %c0_29 = arith.constant 0 : index
    %62 = vector.load %arg9[%c0_27, %c0_28, %c0_29] : memref<2x64x128xf32, #tpu.memory_space<vmem>>, vector<2x64x128xf32>
    tpu.vector_store %arg9[%c0_27, %c0_28, %c0_29], %61 {strides = array<i32>} : memref<2x64x128xf32, #tpu.memory_space<vmem>>, vector<2x64x128xf32>,
    return
  }
  func.func @transform_0(%arg0: i32) -> (i32, i32, i32) {
    %c0_i32 = arith.constant 0 : i32
    %c0_i32_0 = arith.constant 0 : i32
    %c0_i32_1 = arith.constant 0 : i32
    return %arg0, %c0_i32, %c0_i32_0 : i32, i32, i32
  }
  func.func @transform_1(%arg0: i32) -> (i32, i32) {
    %c0_i32 = arith.constant 0 : i32
    %c0_i32_0 = arith.constant 0 : i32
    %c0_i32_1 = arith.constant 0 : i32
    return %c0_i32, %c0_i32_0 : i32, i32
  }
  func.func @transform_2(%arg0: i32) -> (i32, i32) {
    %c0_i32 = arith.constant 0 : i32
    %c0_i32_0 = arith.constant 0 : i32
    %c0_i32_1 = arith.constant 0 : i32
    return %c0_i32, %c0_i32_0 : i32, i32
  }
  func.func @transform_3(%arg0: i32) -> (i32, i32) {
    %c0_i32 = arith.constant 0 : i32
    %c0_i32_0 = arith.constant 0 : i32
    %c0_i32_1 = arith.constant 0 : i32
    return %c0_i32, %c0_i32_0 : i32, i32
  }
  func.func @transform_4(%arg0: i32) -> (i32, i32) {
    %c0_i32 = arith.constant 0 : i32
    %c0_i32_0 = arith.constant 0 : i32
    %c0_i32_1 = arith.constant 0 : i32
    return %c0_i32, %c0_i32_0 : i32, i32
  }
  func.func @transform_5(%arg0: i32) -> (i32, i32) {
    %c0_i32 = arith.constant 0 : i32
    %c0_i32_0 = arith.constant 0 : i32
    %c0_i32_1 = arith.constant 0 : i32
    return %c0_i32, %c0_i32_0 : i32, i32
  }
  func.func @transform_6(%arg0: i32) -> (i32, i32) {
    %c0_i32 = arith.constant 0 : i32
    %c0_i32_0 = arith.constant 0 : i32
    %c0_i32_1 = arith.constant 0 : i32
    return %c0_i32, %c0_i32_0 : i32, i32
  }
  func.func @transform_7(%arg0: i32) -> (i32, i32) {
    %c0_i32 = arith.constant 0 : i32
    %c0_i32_0 = arith.constant 0 : i32
    %c0_i32_1 = arith.constant 0 : i32
    return %c0_i32, %c0_i32_0 : i32, i32
  }
  func.func @transform_8(%arg0: i32) -> (i32, i32, i32) {
    %c0_i32 = arith.constant 0 : i32
    %c0_i32_0 = arith.constant 0 : i32
    %c0_i32_1 = arith.constant 0 : i32
    return %arg0, %c0_i32, %c0_i32_0 : i32, i32, i32
  }
}

module attributes {stable_mosaic.version = 11 : i64} {
  func.func @_eaa_kernel(%arg0: i32, %arg1: memref<2x64x128xf32, #tpu.memory_space<vmem>>, %arg2: memref<128x512xf32, #tpu.memory_space<vmem>>, %arg3: memref<1x512xf32, #tpu.memory_space<vmem>>, %arg4: memref<1x256xf32, #tpu.memory_space<vmem>>, %arg5: memref<256x256xf32, #tpu.memory_space<vmem>>, %arg6: memref<1x256xf32, #tpu.memory_space<vmem>>, %arg7: memref<256x128xf32, #tpu.memory_space<vmem>>, %arg8: memref<1x128xf32, #tpu.memory_space<vmem>>, %arg9: memref<2x64x128xf32, #tpu.memory_space<vmem>>) attributes {dimension_semantics = [#tpu.dimension_semantics<parallel>], iteration_bounds = array<i64: 4>, scalar_prefetch = 0 : i64, scratch_operands = 0 : i64, tpu.core_type = #tpu.core_type<tc>, window_params = [{transform_indices = @transform_0, window_bounds = array<i64: 2, 64, 128>}, {pipeline_mode = #tpu.pipeline_mode<synchronous>, transform_indices = @transform_1, window_bounds = array<i64: 128, 512>}, {pipeline_mode = #tpu.pipeline_mode<synchronous>, transform_indices = @transform_2, window_bounds = array<i64: 1, 512>}, {pipeline_mode = #tpu.pipeline_mode<synchronous>, transform_indices = @transform_3, window_bounds = array<i64: 1, 256>}, {pipeline_mode = #tpu.pipeline_mode<synchronous>, transform_indices = @transform_4, window_bounds = array<i64: 256, 256>}, {pipeline_mode = #tpu.pipeline_mode<synchronous>, transform_indices = @transform_5, window_bounds = array<i64: 1, 256>}, {pipeline_mode = #tpu.pipeline_mode<synchronous>, transform_indices = @transform_6, window_bounds = array<i64: 256, 128>}, {pipeline_mode = #tpu.pipeline_mode<synchronous>, transform_indices = @transform_7, window_bounds = array<i64: 1, 128>}, {transform_indices = @transform_8, window_bounds = array<i64: 2, 64, 128>}]} {
    %c0 = arith.constant 0 : index
    %c0_0 = arith.constant 0 : index
    %c0_1 = arith.constant 0 : index
    %0 = vector.load %arg1[%c0, %c0_0, %c0_1] : memref<2x64x128xf32, #tpu.memory_space<vmem>>, vector<2x64x128xf32>
    %1 = vector.shape_cast %0 : vector<2x64x128xf32> to vector<128x128xf32>
    %c0_2 = arith.constant 0 : index
    %c0_3 = arith.constant 0 : index
    %2 = vector.load %arg2[%c0_2, %c0_3] : memref<128x512xf32, #tpu.memory_space<vmem>>, vector<128x512xf32>
    %cst = arith.constant dense<0.000000e+00> : vector<128x512xf32>
    %3 = tpu.matmul %1, %2, %cst {dimension_numbers = #tpu.dot_dimension_numbers<[1], [0], [0], [1], [0, 0, 1, 1], [], []>} : vector<128x128xf32>, vector<128x512xf32>, vector<128x512xf32> -> vector<128x512xf32>
    %c0_4 = arith.constant 0 : index
    %c0_5 = arith.constant 0 : index
    %4 = vector.load %arg3[%c0_4, %c0_5] : memref<1x512xf32, #tpu.memory_space<vmem>>, vector<1x512xf32>
    %5 = vector.broadcast %4 : vector<1x512xf32> to vector<128x512xf32>
    %6 = arith.addf %3, %5 : vector<128x512xf32>
    %7 = vector.extract_strided_slice %6 {offsets = [0, 0], sizes = [128, 256], strides = [1, 1]} : vector<128x512xf32> to vector<128x256xf32>
    %8 = vector.extract_strided_slice %6 {offsets = [0, 256], sizes = [128, 256], strides = [1, 1]} : vector<128x512xf32> to vector<128x256xf32>
    %9 = arith.mulf %7, %7 : vector<128x256xf32>
    %cst_6 = arith.constant dense<0.000000e+00> : vector<128xf32>
    %10 = vector.multi_reduction <add>, %9, %cst_6 [1] : vector<128x256xf32> to vector<128xf32>
    %11 = vector.shape_cast %10 : vector<128xf32> to vector<128x1xf32>
    %cst_7 = arith.constant 1.000000e-24 : f32
    %12 = vector.broadcast %cst_7 : f32 to vector<128x1xf32>
    %13 = arith.maximumf %11, %12 : vector<128x1xf32>
    %14 = math.rsqrt %13 : vector<128x1xf32>
    %15 = vector.broadcast %14 : vector<128x1xf32> to vector<128x256xf32>
    %16 = arith.mulf %7, %15 : vector<128x256xf32>
    %17 = arith.mulf %8, %8 : vector<128x256xf32>
    %cst_8 = arith.constant dense<0.000000e+00> : vector<128xf32>
    %18 = vector.multi_reduction <add>, %17, %cst_8 [1] : vector<128x256xf32> to vector<128xf32>
    %19 = vector.shape_cast %18 : vector<128xf32> to vector<128x1xf32>
    %cst_9 = arith.constant 1.000000e-24 : f32
    %20 = vector.broadcast %cst_9 : f32 to vector<128x1xf32>
    %21 = arith.maximumf %19, %20 : vector<128x1xf32>
    %22 = math.rsqrt %21 : vector<128x1xf32>
    %23 = vector.broadcast %22 : vector<128x1xf32> to vector<128x256xf32>
    %24 = arith.mulf %8, %23 : vector<128x256xf32>
    %c0_10 = arith.constant 0 : index
    %c0_11 = arith.constant 0 : index
    %25 = vector.load %arg4[%c0_10, %c0_11] : memref<1x256xf32, #tpu.memory_space<vmem>>, vector<1x256xf32>
    %26 = vector.broadcast %25 : vector<1x256xf32> to vector<128x256xf32>
    %27 = arith.mulf %16, %26 : vector<128x256xf32>
    %cst_12 = arith.constant dense<0.000000e+00> : vector<128xf32>
    %28 = vector.multi_reduction <add>, %27, %cst_12 [1] : vector<128x256xf32> to vector<128xf32>
    %29 = vector.shape_cast %28 : vector<128xf32> to vector<128x1xf32>
    %cst_13 = arith.constant 0.0883883461 : f32
    %30 = vector.broadcast %cst_13 : f32 to vector<128x1xf32>
    %31 = arith.mulf %29, %30 : vector<128x1xf32>
    %32 = vector.shape_cast %31 : vector<128x1xf32> to vector<2x64x1xf32>
    %33 = arith.mulf %32, %32 : vector<2x64x1xf32>
    %cst_14 = arith.constant dense<0.000000e+00> : vector<2x1xf32>
    %34 = vector.multi_reduction <add>, %33, %cst_14 [1] : vector<2x64x1xf32> to vector<2x1xf32>
    %35 = vector.shape_cast %34 : vector<2x1xf32> to vector<2x1x1xf32>
    %cst_15 = arith.constant 1.000000e-24 : f32
    %36 = vector.broadcast %cst_15 : f32 to vector<2x1x1xf32>
    %37 = arith.maximumf %35, %36 : vector<2x1x1xf32>
    %38 = math.rsqrt %37 : vector<2x1x1xf32>
    %39 = vector.broadcast %38 : vector<2x1x1xf32> to vector<2x64x1xf32>
    %40 = arith.mulf %32, %39 : vector<2x64x1xf32>
    %41 = vector.shape_cast %16 : vector<128x256xf32> to vector<2x64x256xf32>
    %42 = vector.broadcast %40 : vector<2x64x1xf32> to vector<2x64x256xf32>
    %43 = arith.mulf %42, %41 : vector<2x64x256xf32>
    %cst_16 = arith.constant dense<0.000000e+00> : vector<2x256xf32>
    %44 = vector.multi_reduction <add>, %43, %cst_16 [1] : vector<2x64x256xf32> to vector<2x256xf32>
    %45 = vector.shape_cast %44 : vector<2x256xf32> to vector<2x1x256xf32>
    %46 = vector.shape_cast %24 : vector<128x256xf32> to vector<2x64x256xf32>
    %47 = vector.broadcast %45 : vector<2x1x256xf32> to vector<2x64x256xf32>
    %48 = arith.mulf %47, %46 : vector<2x64x256xf32>
    %49 = vector.shape_cast %48 : vector<2x64x256xf32> to vector<128x256xf32>
    %c0_17 = arith.constant 0 : index
    %c0_18 = arith.constant 0 : index
    %50 = vector.load %arg5[%c0_17, %c0_18] : memref<256x256xf32, #tpu.memory_space<vmem>>, vector<256x256xf32>
    %cst_19 = arith.constant dense<0.000000e+00> : vector<128x256xf32>
    %51 = tpu.matmul %49, %50, %cst_19 {dimension_numbers = #tpu.dot_dimension_numbers<[1], [0], [0], [1], [0, 0, 1, 1], [], []>} : vector<128x256xf32>, vector<256x256xf32>, vector<128x256xf32> -> vector<128x256xf32>
    %c0_20 = arith.constant 0 : index
    %c0_21 = arith.constant 0 : index
    %52 = vector.load %arg6[%c0_20, %c0_21] : memref<1x256xf32, #tpu.memory_space<vmem>>, vector<1x256xf32>
    %53 = vector.broadcast %52 : vector<1x256xf32> to vector<128x256xf32>
    %54 = arith.addf %51, %53 : vector<128x256xf32>
    %55 = arith.addf %54, %16 : vector<128x256xf32>
    %c0_22 = arith.constant 0 : index
    %c0_23 = arith.constant 0 : index
    %56 = vector.load %arg7[%c0_22, %c0_23] : memref<256x128xf32, #tpu.memory_space<vmem>>, vector<256x128xf32>
    %cst_24 = arith.constant dense<0.000000e+00> : vector<128x128xf32>
    %57 = tpu.matmul %55, %56, %cst_24 {dimension_numbers = #tpu.dot_dimension_numbers<[1], [0], [0], [1], [0, 0, 1, 1], [], []>} : vector<128x256xf32>, vector<256x128xf32>, vector<128x128xf32> -> vector<128x128xf32>
    %c0_25 = arith.constant 0 : index
    %c0_26 = arith.constant 0 : index
    %58 = vector.load %arg8[%c0_25, %c0_26] : memref<1x128xf32, #tpu.memory_space<vmem>>, vector<1x128xf32>
    %59 = vector.broadcast %58 : vector<1x128xf32> to vector<128x128xf32>
    %60 = arith.addf %57, %59 : vector<128x128xf32>
    %61 = vector.shape_cast %60 : vector<128x128xf32> to vector<2x64x128xf32>
    %c0_27 = arith.constant 0 : index
    %c0_28 = arith.constant 0 : index
    %c0_29 = arith.constant 0 : index
    %62 = vector.load %arg9[%c0_27, %c0_28, %c0_29] : memref<2x64x128xf32, #tpu.memory_space<vmem>>, vector<2x64x128xf32>
    tpu.vector_store %arg9[%c0_27, %c0_28, %c0_29], %61 {strides = array<i32>} : memref<2x64x128xf32, #tpu.memory_space<vmem>>, vector<2x64x128xf32>,
    return
  }
  func.func @transform_0(%arg0: i32) -> (i32, i32, i32) {
    %c0_i32 = arith.constant 0 : i32
    %c0_i32_0 = arith.constant 0 : i32
    %c0_i32_1 = arith.constant 0 : i32
    return %arg0, %c0_i32, %c0_i32_0 : i32, i32, i32
  }
  func.func @transform_1(%arg0: i32) -> (i32, i32) {
    %c0_i32 = arith.constant 0 : i32
    %c0_i32_0 = arith.constant 0 : i32
    %c0_i32_1 = arith.constant 0 : i32
    return %c0_i32, %c0_i32_0 : i32, i32
  }
  func.func @transform_2(%arg0: i32) -> (i32, i32) {
    %c0_i32 = arith.constant 0 : i32
    %c0_i32_0 = arith.constant 0 : i32
    %c0_i32_1 = arith.constant 0 : i32
    return %c0_i32, %c0_i32_0 : i32, i32
  }
  func.func @transform_3(%arg0: i32) -> (i32, i32) {
    %c0_i32 = arith.constant 0 : i32
    %c0_i32_0 = arith.constant 0 : i32
    %c0_i32_1 = arith.constant 0 : i32
    return %c0_i32, %c0_i32_0 : i32, i32
  }
  func.func @transform_4(%arg0: i32) -> (i32, i32) {
    %c0_i32 = arith.constant 0 : i32
    %c0_i32_0 = arith.constant 0 : i32
    %c0_i32_1 = arith.constant 0 : i32
    return %c0_i32, %c0_i32_0 : i32, i32
  }
  func.func @transform_5(%arg0: i32) -> (i32, i32) {
    %c0_i32 = arith.constant 0 : i32
    %c0_i32_0 = arith.constant 0 : i32
    %c0_i32_1 = arith.constant 0 : i32
    return %c0_i32, %c0_i32_0 : i32, i32
  }
  func.func @transform_6(%arg0: i32) -> (i32, i32) {
    %c0_i32 = arith.constant 0 : i32
    %c0_i32_0 = arith.constant 0 : i32
    %c0_i32_1 = arith.constant 0 : i32
    return %c0_i32, %c0_i32_0 : i32, i32
  }
  func.func @transform_7(%arg0: i32) -> (i32, i32) {
    %c0_i32 = arith.constant 0 : i32
    %c0_i32_0 = arith.constant 0 : i32
    %c0_i32_1 = arith.constant 0 : i32
    return %c0_i32, %c0_i32_0 : i32, i32
  }
  func.func @transform_8(%arg0: i32) -> (i32, i32, i32) {
    %c0_i32 = arith.constant 0 : i32
    %c0_i32_0 = arith.constant 0 : i32
    %c0_i32_1 = arith.constant 0 : i32
    return %arg0, %c0_i32, %c0_i32_0 : i32, i32, i32
  }
}

</mosaic_0001>

<llo_original>
// kernel: tpu_custom_call.1
$region0: #{tpu_custom_call.1}
  #allocation0 [shape = 'u32[]', space=smem, size = 0x4, offset = 0x4, fixed_abs, tag = 'smem constant byte address 0x4 - core index']
  #allocation1 [shape = 'u32[72,128]{1,0:T(1,128)}', space=vmem, size = 0x9000, scoped, tag = 'internal scratch']
  %s0 = inlined_call_operand.hbm [shape: f32[8,64,128], index: 0, kind: input, shape index: {}]
  %s1 = inlined_call_operand.hbm [shape: f32[128,512], index: 1, kind: input, shape index: {}]
  %s2 = inlined_call_operand.hbm [shape: f32[1,512], index: 2, kind: input, shape index: {}]
  %s3 = inlined_call_operand.vmem [shape: f32[1,256], index: 3, kind: input, shape index: {}]
  %s4 = inlined_call_operand.hbm [shape: f32[256,256], index: 4, kind: input, shape index: {}]
  %s5 = inlined_call_operand.vmem [shape: f32[1,256], index: 5, kind: input, shape index: {}]
  %s6 = inlined_call_operand.hbm [shape: f32[256,128], index: 6, kind: input, shape index: {}]
  %s7 = inlined_call_operand.vmem [shape: f32[1,128], index: 7, kind: input, shape index: {}]
  %s8 = inlined_call_operand.hbm [shape: f32[8,64,128], index: 8, kind: output, shape index: {}]
  %s9 = sld [smem:[#allocation0]]
  $region85: #{tpu_custom_call.1} parent=0
    _
  %s11 = ssub.s32 1, %s9
  %s12 = scalar_select 0, %s11, %s9
  $region1: #{tpu_custom_call.1} parent=0
    #allocation2 [shape = 'u8[131072]{0}', space=vmem, size = 0x20000, scoped, tag = 'input window, operand 0']
    #allocation3 [shape = 's32[2]{0}', space=sflag, size = 0x8, scoped, tag = 'scoped memory for tpu_custom_call.1']
    #allocation4 [shape = 's32[2]{0}', space=sflag, size = 0x8, scoped, tag = 'scoped memory for tpu_custom_call.1']
    #allocation5 [shape = 'u8[262144]{0}', space=vmem, size = 0x40000, scoped, tag = 'input window, operand 1, single buffered']
    #allocation6 [shape = 's32[1]{0}', space=sflag, size = 0x4, scoped, tag = 'scoped memory for tpu_custom_call.1']
    #allocation7 [shape = 'u8[2048]{0}', space=vmem, size = 0x800, scoped, tag = 'input window, operand 2, single buffered']
    #allocation8 [shape = 'u8[262144]{0}', space=vmem, size = 0x40000, scoped, tag = 'input window, operand 4, single buffered']
    #allocation9 [shape = 's32[1]{0}', space=sflag, size = 0x4, scoped, tag = 'scoped memory for tpu_custom_call.1']
    #allocation10 [shape = 'u8[131072]{0}', space=vmem, size = 0x20000, scoped, tag = 'input window, operand 6, single buffered']
    #allocation11 [shape = 'u8[131072]{0}', space=vmem, size = 0x20000, scoped, tag = 'output window, operand 0']
    %13 = vsyncpa [#allocation3], 0
    %s14 = scalar_lea.sflag [#allocation3], 1
    %15 = vsyncpa %s14, 0
    %16 = vsyncpa [#allocation6], 0
    %17 = vsyncpa [#allocation9], 0
    %18 = vsyncpa [#allocation4], 0
    %s19 = scalar_lea.sflag [#allocation4], 1
    %20 = vsyncpa %s19, 0
    loop: start=0, step=1, limit=6
    $region2: #{tpu_custom_call.1} parent=1 // loop_pre_header
      _
    $region3: #{tpu_custom_call.1} parent=1 // loop_header
      %s22 = sphi 0, %s26
      %p23 = scmp.ge.s32.totalorder %s22, 6
      %s32 = sphi 0, %s34
      %s35 = sphi 0, %s32
      %s36 = sphi 0, %s35
      %s52 = sphi 0, %s36
      %s56 = sphi 0, %s56
      %s58 = sphi 0, %s56
      %s59 = sphi 0, %s58
      %s73 = sphi 0, %s59
      %s77 = sphi 0, %s77
      %s79 = sphi 0, %s77
      %s80 = sphi 0, %s79
      %s94 = sphi 0, %s80
      %s98 = sphi 0, %s98
      %s100 = sphi 0, %s98
      %s101 = sphi 0, %s100
      %s115 = sphi 0, %s101
      %s119 = sphi 0, %s119
      %s121 = sphi 0, %s119
      %s122 = sphi 0, %s121
      %s136 = sphi 0, %s122
      %s140 = sphi 0, %s140
      %s142 = sphi 0, %s140
      %s143 = sphi 0, %s142
      %s157 = sphi 0, %s143
      %s161 = sphi 0, %s161
      %s163 = sphi 0, %s161
      %s164 = sphi 0, %s163
      %s178 = sphi 0, %s164
      %s182 = sphi 0, %s182
      %s184 = sphi 0, %s182
      %s185 = sphi 0, %s184
      %s199 = sphi 0, %s185
      %s205 = sphi 0, %s207
      %s208 = sphi 0, %s205
      %s209 = sphi 0, %s208
      %s225 = sphi 0, %s209
    $region4: #{tpu_custom_call.1} parent=1 // loop_header_branch
      %25 = sbr.rel (%p23) target = $region8
    $region5: #{tpu_custom_call.1} parent=1 // loop_body
      %s27 = ssub.s32 %s22, 1
      %s28 = ssub.s32 %s22, 2
      %s29 = sadd.s32 %s22, 1
      %s30 = ssub.s32 %s22, %s29
      %p31 = scmp.eq.s32.totalorder %s30, 0
      %s33 = sadd.s32 %s32, 1
      %s34 = scalar_select %p31, %s32, %s33
      %p37 = pneg %p31
      %p38 = scmp.eq.s32.totalorder %s22, 3
      %p39 = por %p37, %p38
      %p40 = scmp.ne.s32.totalorder %s32, %s35
      %p41 = scmp.eq.s32.totalorder %s22, 0
      %p42 = por %p40, %p41
      %p43 = scmp.ne.s32.totalorder %s32, %s35
      %p44 = scmp.eq.s32.totalorder %s27, 3
      %p45 = por %p43, %p44
      %p46 = scmp.ne.s32.totalorder %s35, %s36
      %p47 = scmp.eq.s32.totalorder %s27, 0
      %p48 = por %p46, %p47
      %p49 = scmp.ne.s32.totalorder %s35, %s36
      %p50 = scmp.eq.s32.totalorder %s28, 3
      %p51 = por %p49, %p50
      %p53 = scmp.ne.s32.totalorder %s36, %s52
      %p54 = scmp.eq.s32.totalorder %s28, 0
      %p55 = por %p53, %p54
      %s57 = sadd.s32 %s56, 1
      %p60 = scmp.eq.s32.totalorder %s22, 3
      %p61 = scmp.ne.s32.totalorder %s56, %s58
      %p62 = scmp.eq.s32.totalorder %s22, 0
      %p63 = por %p61, %p62
      %p64 = scmp.ne.s32.totalorder %s56, %s58
      %p65 = scmp.eq.s32.totalorder %s27, 3
      %p66 = por %p64, %p65
      %p67 = scmp.ne.s32.totalorder %s58, %s59
      %p68 = scmp.eq.s32.totalorder %s27, 0
      %p69 = por %p67, %p68
      %p70 = scmp.ne.s32.totalorder %s58, %s59
      %p71 = scmp.eq.s32.totalorder %s28, 3
      %p72 = por %p70, %p71
      %p74 = scmp.ne.s32.totalorder %s59, %s73
      %p75 = scmp.eq.s32.totalorder %s28, 0
      %p76 = por %p74, %p75
      %s78 = sadd.s32 %s77, 1
      %p81 = scmp.eq.s32.totalorder %s22, 3
      %p82 = scmp.ne.s32.totalorder %s77, %s79
      %p83 = scmp.eq.s32.totalorder %s22, 0
      %p84 = por %p82, %p83
      %p85 = scmp.ne.s32.totalorder %s77, %s79
      %p86 = scmp.eq.s32.totalorder %s27, 3
      %p87 = por %p85, %p86
      %p88 = scmp.ne.s32.totalorder %s79, %s80
      %p89 = scmp.eq.s32.totalorder %s27, 0
      %p90 = por %p88, %p89
      %p91 = scmp.ne.s32.totalorder %s79, %s80
      %p92 = scmp.eq.s32.totalorder %s28, 3
      %p93 = por %p91, %p92
      %p95 = scmp.ne.s32.totalorder %s80, %s94
      %p96 = scmp.eq.s32.totalorder %s28, 0
      %p97 = por %p95, %p96
      %s99 = sadd.s32 %s98, 1
      %p102 = scmp.eq.s32.totalorder %s22, 3
      %p103 = scmp.ne.s32.totalorder %s98, %s100
      %p104 = scmp.eq.s32.totalorder %s22, 0
      %p105 = por %p103, %p104
      %p106 = scmp.ne.s32.totalorder %s98, %s100
      %p107 = scmp.eq.s32.totalorder %s27, 3
      %p108 = por %p106, %p107
      %p109 = scmp.ne.s32.totalorder %s100, %s101
      %p110 = scmp.eq.s32.totalorder %s27, 0
      %p111 = por %p109, %p110
      %p112 = scmp.ne.s32.totalorder %s100, %s101
      %p113 = scmp.eq.s32.totalorder %s28, 3
      %p114 = por %p112, %p113
      %p116 = scmp.ne.s32.totalorder %s101, %s115
      %p117 = scmp.eq.s32.totalorder %s28, 0
      %p118 = por %p116, %p117
      %s120 = sadd.s32 %s119, 1
      %p123 = scmp.eq.s32.totalorder %s22, 3
      %p124 = scmp.ne.s32.totalorder %s119, %s121
      %p125 = scmp.eq.s32.totalorder %s22, 0
      %p126 = por %p124, %p125
      %p127 = scmp.ne.s32.totalorder %s119, %s121
      %p128 = scmp.eq.s32.totalorder %s27, 3
      %p129 = por %p127, %p128
      %p130 = scmp.ne.s32.totalorder %s121, %s122
      %p131 = scmp.eq.s32.totalorder %s27, 0
      %p132 = por %p130, %p131
      %p133 = scmp.ne.s32.totalorder %s121, %s122
      %p134 = scmp.eq.s32.totalorder %s28, 3
      %p135 = por %p133, %p134
      %p137 = scmp.ne.s32.totalorder %s122, %s136
      %p138 = scmp.eq.s32.totalorder %s28, 0
      %p139 = por %p137, %p138
      %s141 = sadd.s32 %s140, 1
      %p144 = scmp.eq.s32.totalorder %s22, 3
      %p145 = scmp.ne.s32.totalorder %s140, %s142
      %p146 = scmp.eq.s32.totalorder %s22, 0
      %p147 = por %p145, %p146
      %p148 = scmp.ne.s32.totalorder %s140, %s142
      %p149 = scmp.eq.s32.totalorder %s27, 3
      %p150 = por %p148, %p149
      %p151 = scmp.ne.s32.totalorder %s142, %s143
      %p152 = scmp.eq.s32.totalorder %s27, 0
      %p153 = por %p151, %p152
      %p154 = scmp.ne.s32.totalorder %s142, %s143
      %p155 = scmp.eq.s32.totalorder %s28, 3
      %p156 = por %p154, %p155
      %p158 = scmp.ne.s32.totalorder %s143, %s157
      %p159 = scmp.eq.s32.totalorder %s28, 0
      %p160 = por %p158, %p159
      %s162 = sadd.s32 %s161, 1
      %p165 = scmp.eq.s32.totalorder %s22, 3
      %p166 = scmp.ne.s32.totalorder %s161, %s163
      %p167 = scmp.eq.s32.totalorder %s22, 0
      %p168 = por %p166, %p167
      %p169 = scmp.ne.s32.totalorder %s161, %s163
      %p170 = scmp.eq.s32.totalorder %s27, 3
      %p171 = por %p169, %p170
      %p172 = scmp.ne.s32.totalorder %s163, %s164
      %p173 = scmp.eq.s32.totalorder %s27, 0
      %p174 = por %p172, %p173
      %p175 = scmp.ne.s32.totalorder %s163, %s164
      %p176 = scmp.eq.s32.totalorder %s28, 3
      %p177 = por %p175, %p176
      %p179 = scmp.ne.s32.totalorder %s164, %s178
      %p180 = scmp.eq.s32.totalorder %s28, 0
      %p181 = por %p179, %p180
      %s183 = sadd.s32 %s182, 1
      %p186 = scmp.eq.s32.totalorder %s22, 3
      %p187 = scmp.ne.s32.totalorder %s182, %s184
      %p188 = scmp.eq.s32.totalorder %s22, 0
      %p189 = por %p187, %p188
      %p190 = scmp.ne.s32.totalorder %s182, %s184
      %p191 = scmp.eq.s32.totalorder %s27, 3
      %p192 = por %p190, %p191
      %p193 = scmp.ne.s32.totalorder %s184, %s185
      %p194 = scmp.eq.s32.totalorder %s27, 0
      %p195 = por %p193, %p194
      %p196 = scmp.ne.s32.totalorder %s184, %s185
      %p197 = scmp.eq.s32.totalorder %s28, 3
      %p198 = por %p196, %p197
      %p200 = scmp.ne.s32.totalorder %s185, %s199
      %p201 = scmp.eq.s32.totalorder %s28, 0
      %p202 = por %p200, %p201
      %s203 = ssub.s32 %s22, %s29
      %p204 = scmp.eq.s32.totalorder %s203, 0
      %s206 = sadd.s32 %s205, 1
      %s207 = scalar_select %p204, %s205, %s206
      %p210 = pneg %p204
      %p211 = scmp.eq.s32.totalorder %s22, 3
      %p212 = por %p210, %p211
      %p213 = scmp.ne.s32.totalorder %s205, %s208
      %p214 = scmp.eq.s32.totalorder %s22, 0
      %p215 = por %p213, %p214
      %p216 = scmp.ne.s32.totalorder %s205, %s208
      %p217 = scmp.eq.s32.totalorder %s27, 3
      %p218 = por %p216, %p217
      %p219 = scmp.ne.s32.totalorder %s208, %s209
      %p220 = scmp.eq.s32.totalorder %s27, 0
      %p221 = por %p219, %p220
      %p222 = scmp.ne.s32.totalorder %s208, %s209
      %p223 = scmp.eq.s32.totalorder %s28, 3
      %p224 = por %p222, %p223
      %p226 = scmp.ne.s32.totalorder %s209, %s225
      %p227 = scmp.eq.s32.totalorder %s28, 0
      %p228 = por %p226, %p227
      %p229 = scmp.le.s32.totalorder 1, %s22
      %p230 = scmp.lt.s32.totalorder %s22, 5
      %p231 = pnand %p229, %p230
      %p232 = pneg %p231
      // Predicated region
      $region9: #{tpu_custom_call.1} parent=5 // pred_check
        _
      $region10: #{tpu_custom_call.1} parent=5 // pred_check_branch
        %234 = sbr.rel (%p231) target = $region12
      $region11: #{tpu_custom_call.1} parent=5 // pred_region
        %s235 = ssub.s32 %s22, 1
        // Predicated region
        $region13: #{tpu_custom_call.1} parent=11 // pred_check
          %p236 = pneg %p69
        $region14: #{tpu_custom_call.1} parent=11 // pred_check_branch
          %238 = sbr.rel (%p236) target = $region16
        $region15: #{tpu_custom_call.1} parent=11 // pred_region
          %240 = vsyncadd [#allocation6], 0
          %s241 = sshll.u32 %s1, 4
          %s242 = int_to_ptr.hbm [resolvable:$true] %s241
          %s243 = sshll.u32 [#allocation5], 4
          %s244 = int_to_ptr.vmem [resolvable:$true] %s243
          %249 = dma.hbm_to_vmem [thread:$0]  %s242, 8192, %s244, [#allocation6], 512, 512, 32
        $region16: #{tpu_custom_call.1} parent=11 // pred_fallthru
          _
        // Predicated region
        $region17: #{tpu_custom_call.1} parent=11 // pred_check
          %p250 = pneg %p90
        $region18: #{tpu_custom_call.1} parent=11 // pred_check_branch
          %252 = sbr.rel (%p250) target = $region20
        $region19: #{tpu_custom_call.1} parent=11 // pred_region
          %254 = vsyncadd [#allocation6], 0
          %s256 = sshll.u32 %s2, 4
          %s257 = int_to_ptr.hbm [resolvable:$true] %s256
          %s258 = sshll.u32 [#allocation7], 4
          %s259 = int_to_ptr.vmem [resolvable:$true] %s258
          %261 = dma.hbm_to_vmem [thread:$0]  %s257, 64, %s259, [#allocation6]
        $region20: #{tpu_custom_call.1} parent=11 // pred_fallthru
          _
        // Predicated region
        $region21: #{tpu_custom_call.1} parent=11 // pred_check
          %p262 = pneg %p111
        $region22: #{tpu_custom_call.1} parent=11 // pred_check_branch
          %264 = sbr.rel (%p262) target = $region24
        $region23: #{tpu_custom_call.1} parent=11 // pred_region
          _
        $region24: #{tpu_custom_call.1} parent=11 // pred_fallthru
          _
        // Predicated region
        $region25: #{tpu_custom_call.1} parent=11 // pred_check
          %p265 = pneg %p132
        $region26: #{tpu_custom_call.1} parent=11 // pred_check_branch
          %267 = sbr.rel (%p265) target = $region28
        $region27: #{tpu_custom_call.1} parent=11 // pred_region
          %269 = vsyncadd [#allocation9], 0
          %s270 = sshll.u32 %s4, 4
          %s271 = int_to_ptr.hbm [resolvable:$true] %s270
          %s272 = sshll.u32 [#allocation8], 4
          %s273 = int_to_ptr.vmem [resolvable:$true] %s272
          %278 = dma.hbm_to_vmem [thread:$0]  %s271, 8192, %s273, [#allocation9], 256, 256, 16
        $region28: #{tpu_custom_call.1} parent=11 // pred_fallthru
          _
        // Predicated region
        $region29: #{tpu_custom_call.1} parent=11 // pred_check
          %p279 = pneg %p153
        $region30: #{tpu_custom_call.1} parent=11 // pred_check_branch
          %281 = sbr.rel (%p279) target = $region32
        $region31: #{tpu_custom_call.1} parent=11 // pred_region
          _
        $region32: #{tpu_custom_call.1} parent=11 // pred_fallthru
          _
        // Predicated region
        $region33: #{tpu_custom_call.1} parent=11 // pred_check
          %p282 = pneg %p174
        $region34: #{tpu_custom_call.1} parent=11 // pred_check_branch
          %284 = sbr.rel (%p282) target = $region36
        $region35: #{tpu_custom_call.1} parent=11 // pred_region
          %286 = vsyncadd [#allocation9], 0
          %s287 = sshll.u32 %s6, 4
          %s288 = int_to_ptr.hbm [resolvable:$true] %s287
          %s289 = sshll.u32 [#allocation10], 4
          %s290 = int_to_ptr.vmem [resolvable:$true] %s289
          %295 = dma.hbm_to_vmem [thread:$0]  %s288, 4096, %s290, [#allocation9], 128, 128, 8
        $region36: #{tpu_custom_call.1} parent=11 // pred_fallthru
          _
        // Predicated region
        $region37: #{tpu_custom_call.1} parent=11 // pred_check
          %p296 = pneg %p195
        $region38: #{tpu_custom_call.1} parent=11 // pred_check_branch
          %298 = sbr.rel (%p296) target = $region40
        $region39: #{tpu_custom_call.1} parent=11 // pred_region
          _
        $region40: #{tpu_custom_call.1} parent=11 // pred_fallthru
          _
      $region12: #{tpu_custom_call.1} parent=5 // pred_fallthru
        _
      %p299 = scmp.lt.s32.totalorder %s22, 4
      // Predicated region
      $region41: #{tpu_custom_call.1} parent=5 // pred_check
        %p300 = pneg %p299
      $region42: #{tpu_custom_call.1} parent=5 // pred_check_branch
        %302 = sbr.rel (%p300) target = $region44
      $region43: #{tpu_custom_call.1} parent=5 // pred_region
        // Predicated region
        $region45: #{tpu_custom_call.1} parent=43 // pred_check
          %p303 = pneg %p42
        $region46: #{tpu_custom_call.1} parent=43 // pred_check_branch
          %305 = sbr.rel (%p303) target = $region48
        $region47: #{tpu_custom_call.1} parent=43 // pred_region
          %s306 = sand.u32 %s32, 1
          %s307 = scalar_lea.sflag [#allocation3], %s306
          %s308 = sand.u32 %s32, 1
          %s309 = smul.addr %s308, 128
          %s310 = scalar_lea.vmem [#allocation2], %s309
          %s311 = smul.u32 2, %s22
          %313 = vsyncadd %s307, 0
          %s314 = smul.addr %s311, 8
          %s315 = smul.addr %s314, 8
          %s316 = scalar_lea.hbm %s0, %s315
          %s317 = sshll.u32 %s316, 4
          %s318 = int_to_ptr.hbm [resolvable:$true] %s317
          %s319 = sshll.u32 %s310, 4
          %s320 = int_to_ptr.vmem [resolvable:$true] %s319
          %325 = dma.hbm_to_vmem [thread:$0]  %s318, 2048, %s320, %s307, 128, 128, 8
        $region48: #{tpu_custom_call.1} parent=43 // pred_fallthru
          _
      $region44: #{tpu_custom_call.1} parent=5 // pred_fallthru
        _
      %p326 = scmp.le.s32.totalorder 1, %s22
      %p327 = scmp.lt.s32.totalorder %s22, 5
      %p328 = pnand %p326, %p327
      %p329 = pneg %p328
      // Predicated region
      $region49: #{tpu_custom_call.1} parent=5 // pred_check
        _
      $region50: #{tpu_custom_call.1} parent=5 // pred_check_branch
        %331 = sbr.rel (%p328) target = $region52
      $region51: #{tpu_custom_call.1} parent=5 // pred_region
        %s332 = ssub.s32 %s22, 1
        %s333 = sand.u32 %s35, 1
        %s334 = scalar_lea.sflag [#allocation3], %s333
        %s335 = sand.u32 %s35, 1
        %s336 = smul.addr %s335, 128
        %s337 = scalar_lea.vmem [#allocation2], %s336
        // Predicated region
        $region53: #{tpu_custom_call.1} parent=51 // pred_check
          %p338 = pneg %p48
        $region54: #{tpu_custom_call.1} parent=51 // pred_check_branch
          %340 = sbr.rel (%p338) target = $region56
        $region55: #{tpu_custom_call.1} parent=51 // pred_region
          %342 = dma.done %s334, 2048
        $region56: #{tpu_custom_call.1} parent=51 // pred_fallthru
          _
        // Predicated region
        $region57: #{tpu_custom_call.1} parent=51 // pred_check
          %p343 = pneg %p69
        $region58: #{tpu_custom_call.1} parent=51 // pred_check_branch
          %345 = sbr.rel (%p343) target = $region60
        $region59: #{tpu_custom_call.1} parent=51 // pred_region
          %347 = dma.done [#allocation6], 8192
        $region60: #{tpu_custom_call.1} parent=51 // pred_fallthru
          _
        // Predicated region
        $region61: #{tpu_custom_call.1} parent=51 // pred_check
          %p348 = pneg %p90
        $region62: #{tpu_custom_call.1} parent=51 // pred_check_branch
          %350 = sbr.rel (%p348) target = $region64
        $region63: #{tpu_custom_call.1} parent=51 // pred_region
          %352 = dma.done [#allocation6], 64
        $region64: #{tpu_custom_call.1} parent=51 // pred_fallthru
          _
        // Predicated region
        $region65: #{tpu_custom_call.1} parent=51 // pred_check
          %p353 = pneg %p132
        $region66: #{tpu_custom_call.1} parent=51 // pred_check_branch
          %355 = sbr.rel (%p353) target = $region68
        $region67: #{tpu_custom_call.1} parent=51 // pred_region
          %357 = dma.done [#allocation9], 8192
        $region68: #{tpu_custom_call.1} parent=51 // pred_fallthru
          _
        // Predicated region
        $region69: #{tpu_custom_call.1} parent=51 // pred_check
          %p358 = pneg %p174
        $region70: #{tpu_custom_call.1} parent=51 // pred_check_branch
          %360 = sbr.rel (%p358) target = $region72
        $region71: #{tpu_custom_call.1} parent=51 // pred_region
          %362 = dma.done [#allocation9], 4096
        $region72: #{tpu_custom_call.1} parent=51 // pred_fallthru
          _
        %s363 = sand.u32 %s35, 1
        %s364 = scalar_lea.sflag [#allocation3], %s363
        %s365 = sand.u32 %s35, 1
        %s366 = smul.addr %s365, 128
        %s367 = scalar_lea.vmem [#allocation2], %s366
        %p368 = pneg %p48
        %p369 = pneg %p45
        %p370 = pneg %p69
        %p371 = pneg %p66
        %p372 = pneg %p90
        %p373 = pneg %p87
        %p374 = pneg %p111
        %p375 = pneg %p108
        %p376 = pneg %p132
        %p377 = pneg %p129
        %p378 = pneg %p153
        %p379 = pneg %p150
        %p380 = pneg %p174
        %p381 = pneg %p171
        %p382 = pneg %p195
        %p383 = pneg %p192
        %p384 = pneg %p221
        %p385 = pneg %p218
        %s386 = sand.u32 %s208, 1
        %s387 = scalar_lea.sflag [#allocation4], %s386
        %s388 = sand.u32 %s208, 1
        %s389 = smul.addr %s388, 128
        %s390 = scalar_lea.vmem [#allocation11], %s389
        %s391 = smul.u32 2, %s27
        %s392 = smul.u32 2, %s27
        %v393 = vld [vmem:[%s337] sm:$0xff]
        %v394 = vld [vmem:[%s337 + $0x8] sm:$0xff]
        %v395 = vld [vmem:[%s337 + $0x10] sm:$0xff]
        %v396 = vld [vmem:[%s337 + $0x18] sm:$0xff]
        %v397 = vld [vmem:[%s337 + $0x20] sm:$0xff]
        %v398 = vld [vmem:[%s337 + $0x28] sm:$0xff]
        %v399 = vld [vmem:[%s337 + $0x30] sm:$0xff]
        %v400 = vld [vmem:[%s337 + $0x38] sm:$0xff]
        %v401 = vld [vmem:[%s337 + $0x40] sm:$0xff]
        %v402 = vld [vmem:[%s337 + $0x48] sm:$0xff]
        %v403 = vld [vmem:[%s337 + $0x50] sm:$0xff]
        %v404 = vld [vmem:[%s337 + $0x58] sm:$0xff]
        %v405 = vld [vmem:[%s337 + $0x60] sm:$0xff]
        %v406 = vld [vmem:[%s337 + $0x68] sm:$0xff]
        %v407 = vld [vmem:[%s337 + $0x70] sm:$0xff]
        %v408 = vld [vmem:[%s337 + $0x78] sm:$0xff]
        %v409 = vld [vmem:[#allocation5] sm:$0xff]
        %v410 = vld [vmem:[#allocation5 + $0x8] sm:$0xff]
        %v411 = vld [vmem:[#allocation5 + $0x10] sm:$0xff]
        %v412 = vld [vmem:[#allocation5 + $0x18] sm:$0xff]
        %v413 = vld [vmem:[#allocation5 + $0x20] sm:$0xff]
        %v414 = vld [vmem:[#allocation5 + $0x28] sm:$0xff]
        %v415 = vld [vmem:[#allocation5 + $0x30] sm:$0xff]
        %v416 = vld [vmem:[#allocation5 + $0x38] sm:$0xff]
        %v417 = vld [vmem:[#allocation5 + $0x40] sm:$0xff]
        %v418 = vld [vmem:[#allocation5 + $0x48] sm:$0xff]
        %v419 = vld [vmem:[#allocation5 + $0x50] sm:$0xff]
        %v420 = vld [vmem:[#allocation5 + $0x58] sm:$0xff]
        %v421 = vld [vmem:[#allocation5 + $0x60] sm:$0xff]
        %v422 = vld [vmem:[#allocation5 + $0x68] sm:$0xff]
        %v423 = vld [vmem:[#allocation5 + $0x70] sm:$0xff]
        %v424 = vld [vmem:[#allocation5 + $0x78] sm:$0xff]
        %v425 = vld [vmem:[#allocation5 + $0x80] sm:$0xff]
        %v426 = vld [vmem:[#allocation5 + $0x88] sm:$0xff]
        %v427 = vld [vmem:[#allocation5 + $0x90] sm:$0xff]
        %v428 = vld [vmem:[#allocation5 + $0x98] sm:$0xff]
        %v429 = vld [vmem:[#allocation5 + $0xa0] sm:$0xff]
        %v430 = vld [vmem:[#allocation5 + $0xa8] sm:$0xff]
        %v431 = vld [vmem:[#allocation5 + $0xb0] sm:$0xff]
        %v432 = vld [vmem:[#allocation5 + $0xb8] sm:$0xff]
        %v433 = vld [vmem:[#allocation5 + $0xc0] sm:$0xff]
        %v434 = vld [vmem:[#allocation5 + $0xc8] sm:$0xff]
        %v435 = vld [vmem:[#allocation5 + $0xd0] sm:$0xff]
        %v436 = vld [vmem:[#allocation5 + $0xd8] sm:$0xff]
        %v437 = vld [vmem:[#allocation5 + $0xe0] sm:$0xff]
        %v438 = vld [vmem:[#allocation5 + $0xe8] sm:$0xff]
        %v439 = vld [vmem:[#allocation5 + $0xf0] sm:$0xff]
        %v440 = vld [vmem:[#allocation5 + $0xf8] sm:$0xff]
        %v441 = vld [vmem:[#allocation5 + $0x100] sm:$0xff]
        %v442 = vld [vmem:[#allocation5 + $0x108] sm:$0xff]
        %v443 = vld [vmem:[#allocation5 + $0x110] sm:$0xff]
        %v444 = vld [vmem:[#allocation5 + $0x118] sm:$0xff]
        %v445 = vld [vmem:[#allocation5 + $0x120] sm:$0xff]
        %v446 = vld [vmem:[#allocation5 + $0x128] sm:$0xff]
        %v447 = vld [vmem:[#allocation5 + $0x130] sm:$0xff]
        %v448 = vld [vmem:[#allocation5 + $0x138] sm:$0xff]
        %v449 = vld [vmem:[#allocation5 + $0x140] sm:$0xff]
        %v450 = vld [vmem:[#allocation5 + $0x148] sm:$0xff]
        %v451 = vld [vmem:[#allocation5 + $0x150] sm:$0xff]
        %v452 = vld [vmem:[#allocation5 + $0x158] sm:$0xff]
        %v453 = vld [vmem:[#allocation5 + $0x160] sm:$0xff]
        %v454 = vld [vmem:[#allocation5 + $0x168] sm:$0xff]
        %v455 = vld [vmem:[#allocation5 + $0x170] sm:$0xff]
        %v456 = vld [vmem:[#allocation5 + $0x178] sm:$0xff]
        %v457 = vld [vmem:[#allocation5 + $0x180] sm:$0xff]
        %v458 = vld [vmem:[#allocation5 + $0x188] sm:$0xff]
        %v459 = vld [vmem:[#allocation5 + $0x190] sm:$0xff]
        %v460 = vld [vmem:[#allocation5 + $0x198] sm:$0xff]
        %v461 = vld [vmem:[#allocation5 + $0x1a0] sm:$0xff]
        %v462 = vld [vmem:[#allocation5 + $0x1a8] sm:$0xff]
        %v463 = vld [vmem:[#allocation5 + $0x1b0] sm:$0xff]
        %v464 = vld [vmem:[#allocation5 + $0x1b8] sm:$0xff]
        %v465 = vld [vmem:[#allocation5 + $0x1c0] sm:$0xff]
        %v466 = vld [vmem:[#allocation5 + $0x1c8] sm:$0xff]
        %v467 = vld [vmem:[#allocation5 + $0x1d0] sm:$0xff]
        %v468 = vld [vmem:[#allocation5 + $0x1d8] sm:$0xff]
        %v469 = vld [vmem:[#allocation5 + $0x1e0] sm:$0xff]
        %v470 = vld [vmem:[#allocation5 + $0x1e8] sm:$0xff]
        %v471 = vld [vmem:[#allocation5 + $0x1f0] sm:$0xff]
        %v472 = vld [vmem:[#allocation5 + $0x1f8] sm:$0xff]
        %v473 = vld [vmem:[#allocation7] sm:$0xf]
        %v475 = vperm.slane %v473, 0
        %v476 = vperm.slane %v473, 1
        %v477 = vperm.slane %v473, 2
        %v478 = vperm.slane %v473, 3
        %483 = vmatpush.msra.mxu0 %v469
        %484 = vmatpush.msra.mxu0 %v465
        %485 = vmatpush.msra.mxu0 %v461
        %486 = vmatpush.msra.mxu0 %v457
        %487 = vmatpush.msra.mxu0 %v453
        %488 = vmatpush.msra.mxu0 %v449
        %489 = vmatpush.msra.mxu0 %v445
        %490 = vmatpush.msra.mxu0 %v441
        %491 = vmatpush.msra.mxu0 %v437
        %492 = vmatpush.msra.mxu0 %v433
        %493 = vmatpush.msra.mxu0 %v429
        %494 = vmatpush.msra.mxu0 %v425
        %495 = vmatpush.msra.mxu0 %v421
        %496 = vmatpush.msra.mxu0 %v417
        %497 = vmatpush.msra.mxu0 %v413
        %498 = vmatpush.msra.mxu0 %v409
        %499 = vmatmul.f32.gmra.mxu0 %v393
        %v500 = vpop.f32.mrf.mxu0
        %v501 = vadd.f32 %v475, %v500
        %502 = vmatmul.f32.gmra.mxu0 %v394
        %v503 = vpop.f32.mrf.mxu0
        %v504 = vadd.f32 %v475, %v503
        %505 = vmatmul.f32.gmra.mxu0 %v395
        %v506 = vpop.f32.mrf.mxu0
        %v507 = vadd.f32 %v475, %v506
        %508 = vmatmul.f32.gmra.mxu0 %v396
        %v509 = vpop.f32.mrf.mxu0
        %v510 = vadd.f32 %v475, %v509
        %511 = vmatmul.f32.gmra.mxu0 %v397
        %v512 = vpop.f32.mrf.mxu0
        %v513 = vadd.f32 %v475, %v512
        %514 = vmatmul.f32.gmra.mxu0 %v398
        %v515 = vpop.f32.mrf.mxu0
        %v516 = vadd.f32 %v475, %v515
        %517 = vmatmul.f32.gmra.mxu0 %v399
        %v518 = vpop.f32.mrf.mxu0
        %v519 = vadd.f32 %v475, %v518
        %520 = vmatmul.f32.gmra.mxu0 %v400
        %v521 = vpop.f32.mrf.mxu0
        %v522 = vadd.f32 %v475, %v521
        %523 = vmatmul.f32.gmra.mxu0 %v401
        %v524 = vpop.f32.mrf.mxu0
        %v525 = vadd.f32 %v475, %v524
        %526 = vmatmul.f32.gmra.mxu0 %v402
        %v527 = vpop.f32.mrf.mxu0
        %v528 = vadd.f32 %v475, %v527
        %529 = vmatmul.f32.gmra.mxu0 %v403
        %v530 = vpop.f32.mrf.mxu0
        %v531 = vadd.f32 %v475, %v530
        %532 = vmatmul.f32.gmra.mxu0 %v404
        %v533 = vpop.f32.mrf.mxu0
        %v534 = vadd.f32 %v475, %v533
        %535 = vmatmul.f32.gmra.mxu0 %v405
        %v536 = vpop.f32.mrf.mxu0
        %v537 = vadd.f32 %v475, %v536
        %538 = vmatmul.f32.gmra.mxu0 %v406
        %v539 = vpop.f32.mrf.mxu0
        %v540 = vadd.f32 %v475, %v539
        %541 = vmatmul.f32.gmra.mxu0 %v407
        %v542 = vpop.f32.mrf.mxu0
        %v543 = vadd.f32 %v475, %v542
        %544 = vmatmul.f32.gmra.mxu0 %v408
        %v545 = vpop.f32.mrf.mxu0
        %v546 = vadd.f32 %v475, %v545
        %547 = vdwg.mxu0
        %548 = vmatpush.msra.mxu0 %v470
        %549 = vmatpush.msra.mxu0 %v466
        %550 = vmatpush.msra.mxu0 %v462
        %551 = vmatpush.msra.mxu0 %v458
        %552 = vmatpush.msra.mxu0 %v454
        %553 = vmatpush.msra.mxu0 %v450
        %554 = vmatpush.msra.mxu0 %v446
        %555 = vmatpush.msra.mxu0 %v442
        %556 = vmatpush.msra.mxu0 %v438
        %557 = vmatpush.msra.mxu0 %v434
        %558 = vmatpush.msra.mxu0 %v430
        %559 = vmatpush.msra.mxu0 %v426
        %560 = vmatpush.msra.mxu0 %v422
        %561 = vmatpush.msra.mxu0 %v418
        %562 = vmatpush.msra.mxu0 %v414
        %563 = vmatpush.msra.mxu0 %v410
        %564 = vmatmul.f32.gmra.mxu0 %v393
        %v565 = vpop.f32.mrf.mxu0
        %v566 = vadd.f32 %v476, %v565
        %567 = vmatmul.f32.gmra.mxu0 %v394
        %v568 = vpop.f32.mrf.mxu0
        %v569 = vadd.f32 %v476, %v568
        %570 = vmatmul.f32.gmra.mxu0 %v395
        %v571 = vpop.f32.mrf.mxu0
        %v572 = vadd.f32 %v476, %v571
        %573 = vmatmul.f32.gmra.mxu0 %v396
        %v574 = vpop.f32.mrf.mxu0
        %v575 = vadd.f32 %v476, %v574
        %576 = vmatmul.f32.gmra.mxu0 %v397
        %v577 = vpop.f32.mrf.mxu0
        %v578 = vadd.f32 %v476, %v577
        %579 = vmatmul.f32.gmra.mxu0 %v398
        %v580 = vpop.f32.mrf.mxu0
        %v581 = vadd.f32 %v476, %v580
        %582 = vmatmul.f32.gmra.mxu0 %v399
        %v583 = vpop.f32.mrf.mxu0
        %v584 = vadd.f32 %v476, %v583
        %585 = vmatmul.f32.gmra.mxu0 %v400
        %v586 = vpop.f32.mrf.mxu0
        %v587 = vadd.f32 %v476, %v586
        %588 = vmatmul.f32.gmra.mxu0 %v401
        %v589 = vpop.f32.mrf.mxu0
        %v590 = vadd.f32 %v476, %v589
        %591 = vmatmul.f32.gmra.mxu0 %v402
        %v592 = vpop.f32.mrf.mxu0
        %v593 = vadd.f32 %v476, %v592
        %594 = vmatmul.f32.gmra.mxu0 %v403
        %v595 = vpop.f32.mrf.mxu0
        %v596 = vadd.f32 %v476, %v595
        %597 = vmatmul.f32.gmra.mxu0 %v404
        %v598 = vpop.f32.mrf.mxu0
        %v599 = vadd.f32 %v476, %v598
        %600 = vmatmul.f32.gmra.mxu0 %v405
        %v601 = vpop.f32.mrf.mxu0
        %v602 = vadd.f32 %v476, %v601
        %603 = vmatmul.f32.gmra.mxu0 %v406
        %v604 = vpop.f32.mrf.mxu0
        %v605 = vadd.f32 %v476, %v604
        %606 = vmatmul.f32.gmra.mxu0 %v407
        %v607 = vpop.f32.mrf.mxu0
        %v608 = vadd.f32 %v476, %v607
        %609 = vmatmul.f32.gmra.mxu0 %v408
        %v610 = vpop.f32.mrf.mxu0
        %v611 = vadd.f32 %v476, %v610
        %612 = vdwg.mxu0
        %613 = vmatpush.msra.mxu0 %v471
        %614 = vmatpush.msra.mxu0 %v467
        %615 = vmatpush.msra.mxu0 %v463
        %616 = vmatpush.msra.mxu0 %v459
        %617 = vmatpush.msra.mxu0 %v455
        %618 = vmatpush.msra.mxu0 %v451
        %619 = vmatpush.msra.mxu0 %v447
        %620 = vmatpush.msra.mxu0 %v443
        %621 = vmatpush.msra.mxu0 %v439
        %622 = vmatpush.msra.mxu0 %v435
        %623 = vmatpush.msra.mxu0 %v431
        %624 = vmatpush.msra.mxu0 %v427
        %625 = vmatpush.msra.mxu0 %v423
        %626 = vmatpush.msra.mxu0 %v419
        %627 = vmatpush.msra.mxu0 %v415
        %628 = vmatpush.msra.mxu0 %v411
        %629 = vmatmul.f32.gmra.mxu0 %v393
        %v630 = vpop.f32.mrf.mxu0
        %v631 = vadd.f32 %v477, %v630
        %632 = vmatmul.f32.gmra.mxu0 %v394
        %v633 = vpop.f32.mrf.mxu0
        %v634 = vadd.f32 %v477, %v633
        %635 = vmatmul.f32.gmra.mxu0 %v395
        %v636 = vpop.f32.mrf.mxu0
        %v637 = vadd.f32 %v477, %v636
        %638 = vmatmul.f32.gmra.mxu0 %v396
        %v639 = vpop.f32.mrf.mxu0
        %v640 = vadd.f32 %v477, %v639
        %641 = vmatmul.f32.gmra.mxu0 %v397
        %v642 = vpop.f32.mrf.mxu0
        %v643 = vadd.f32 %v477, %v642
        %644 = vmatmul.f32.gmra.mxu0 %v398
        %v645 = vpop.f32.mrf.mxu0
        %v646 = vadd.f32 %v477, %v645
        %647 = vmatmul.f32.gmra.mxu0 %v399
        %v648 = vpop.f32.mrf.mxu0
        %v649 = vadd.f32 %v477, %v648
        %650 = vmatmul.f32.gmra.mxu0 %v400
        %v651 = vpop.f32.mrf.mxu0
        %v652 = vadd.f32 %v477, %v651
        %653 = vmatmul.f32.gmra.mxu0 %v401
        %v654 = vpop.f32.mrf.mxu0
        %v655 = vadd.f32 %v477, %v654
        %656 = vmatmul.f32.gmra.mxu0 %v402
        %v657 = vpop.f32.mrf.mxu0
        %v658 = vadd.f32 %v477, %v657
        %659 = vmatmul.f32.gmra.mxu0 %v403
        %v660 = vpop.f32.mrf.mxu0
        %v661 = vadd.f32 %v477, %v660
        %662 = vmatmul.f32.gmra.mxu0 %v404
        %v663 = vpop.f32.mrf.mxu0
        %v664 = vadd.f32 %v477, %v663
        %665 = vmatmul.f32.gmra.mxu0 %v405
        %v666 = vpop.f32.mrf.mxu0
        %v667 = vadd.f32 %v477, %v666
        %668 = vmatmul.f32.gmra.mxu0 %v406
        %v669 = vpop.f32.mrf.mxu0
        %v670 = vadd.f32 %v477, %v669
        %671 = vmatmul.f32.gmra.mxu0 %v407
        %v672 = vpop.f32.mrf.mxu0
        %v673 = vadd.f32 %v477, %v672
        %674 = vmatmul.f32.gmra.mxu0 %v408
        %v675 = vpop.f32.mrf.mxu0
        %v676 = vadd.f32 %v477, %v675
        %677 = vdwg.mxu0
        %678 = vmatpush.msra.mxu0 %v472
        %679 = vmatpush.msra.mxu0 %v468
        %680 = vmatpush.msra.mxu0 %v464
        %681 = vmatpush.msra.mxu0 %v460
        %682 = vmatpush.msra.mxu0 %v456
        %683 = vmatpush.msra.mxu0 %v452
        %684 = vmatpush.msra.mxu0 %v448
        %685 = vmatpush.msra.mxu0 %v444
        %686 = vmatpush.msra.mxu0 %v440
        %687 = vmatpush.msra.mxu0 %v436
        %688 = vmatpush.msra.mxu0 %v432
        %689 = vmatpush.msra.mxu0 %v428
        %690 = vmatpush.msra.mxu0 %v424
        %691 = vmatpush.msra.mxu0 %v420
        %692 = vmatpush.msra.mxu0 %v416
        %693 = vmatpush.msra.mxu0 %v412
        %694 = vmatmul.f32.gmra.mxu0 %v393
        %v695 = vpop.f32.mrf.mxu0
        %v696 = vadd.f32 %v478, %v695
        %697 = vmatmul.f32.gmra.mxu0 %v394
        %v698 = vpop.f32.mrf.mxu0
        %v699 = vadd.f32 %v478, %v698
        %700 = vmatmul.f32.gmra.mxu0 %v395
        %v701 = vpop.f32.mrf.mxu0
        %v702 = vadd.f32 %v478, %v701
        %703 = vmatmul.f32.gmra.mxu0 %v396
        %v704 = vpop.f32.mrf.mxu0
        %v705 = vadd.f32 %v478, %v704
        %706 = vmatmul.f32.gmra.mxu0 %v397
        %v707 = vpop.f32.mrf.mxu0
        %v708 = vadd.f32 %v478, %v707
        %709 = vmatmul.f32.gmra.mxu0 %v398
        %v710 = vpop.f32.mrf.mxu0
        %v711 = vadd.f32 %v478, %v710
        %712 = vmatmul.f32.gmra.mxu0 %v399
        %v713 = vpop.f32.mrf.mxu0
        %v714 = vadd.f32 %v478, %v713
        %715 = vmatmul.f32.gmra.mxu0 %v400
        %v716 = vpop.f32.mrf.mxu0
        %v717 = vadd.f32 %v478, %v716
        %718 = vmatmul.f32.gmra.mxu0 %v401
        %v719 = vpop.f32.mrf.mxu0
        %v720 = vadd.f32 %v478, %v719
        %721 = vmatmul.f32.gmra.mxu0 %v402
        %v722 = vpop.f32.mrf.mxu0
        %v723 = vadd.f32 %v478, %v722
        %724 = vmatmul.f32.gmra.mxu0 %v403
        %v725 = vpop.f32.mrf.mxu0
        %v726 = vadd.f32 %v478, %v725
        %727 = vmatmul.f32.gmra.mxu0 %v404
        %v728 = vpop.f32.mrf.mxu0
        %v729 = vadd.f32 %v478, %v728
        %730 = vmatmul.f32.gmra.mxu0 %v405
        %v731 = vpop.f32.mrf.mxu0
        %v732 = vadd.f32 %v478, %v731
        %733 = vmatmul.f32.gmra.mxu0 %v406
        %v734 = vpop.f32.mrf.mxu0
        %v735 = vadd.f32 %v478, %v734
        %736 = vmatmul.f32.gmra.mxu0 %v407
        %v737 = vpop.f32.mrf.mxu0
        %v738 = vadd.f32 %v478, %v737
        %739 = vmatmul.f32.gmra.mxu0 %v408
        %v740 = vpop.f32.mrf.mxu0
        %v741 = vadd.f32 %v478, %v740
        %742 = vdwg.mxu0
        %v743 = vmul.f32 %v501, %v501
        %v744 = vmul.f32 %v566, %v566
        %v745 = vmul.f32 %v504, %v504
        %v746 = vmul.f32 %v569, %v569
        %v747 = vmul.f32 %v507, %v507
        %v748 = vmul.f32 %v572, %v572
        %v749 = vmul.f32 %v510, %v510
        %v750 = vmul.f32 %v575, %v575
        %v751 = vmul.f32 %v513, %v513
        %v752 = vmul.f32 %v578, %v578
        %v753 = vmul.f32 %v516, %v516
        %v754 = vmul.f32 %v581, %v581
        %v755 = vmul.f32 %v519, %v519
        %v756 = vmul.f32 %v584, %v584
        %v757 = vmul.f32 %v522, %v522
        %v758 = vmul.f32 %v587, %v587
        %v759 = vmul.f32 %v525, %v525
        %v760 = vmul.f32 %v590, %v590
        %v761 = vmul.f32 %v528, %v528
        %v762 = vmul.f32 %v593, %v593
        %v763 = vmul.f32 %v531, %v531
        %v764 = vmul.f32 %v596, %v596
        %v765 = vmul.f32 %v534, %v534
        %v766 = vmul.f32 %v599, %v599
        %v767 = vmul.f32 %v537, %v537
        %v768 = vmul.f32 %v602, %v602
        %v769 = vmul.f32 %v540, %v540
        %v770 = vmul.f32 %v605, %v605
        %v771 = vmul.f32 %v543, %v543
        %v772 = vmul.f32 %v608, %v608
        %v773 = vmul.f32 %v546, %v546
        %v774 = vmul.f32 %v611, %v611
        %v775 = vadd.f32 %v743, %v744
        %776 = vadd.xlane.f32.xlu0 %v775
        %v777 = vpop.xlane.xlu0 %776
        %v778 = vadd.f32 %v745, %v746
        %779 = vadd.xlane.f32.xlu0 %v778
        %v780 = vpop.xlane.xlu0 %779
        %v781 = vadd.f32 %v747, %v748
        %782 = vadd.xlane.f32.xlu0 %v781
        %v783 = vpop.xlane.xlu0 %782
        %v784 = vadd.f32 %v749, %v750
        %785 = vadd.xlane.f32.xlu0 %v784
        %v786 = vpop.xlane.xlu0 %785
        %v787 = vadd.f32 %v751, %v752
        %788 = vadd.xlane.f32.xlu0 %v787
        %v789 = vpop.xlane.xlu0 %788
        %v790 = vadd.f32 %v753, %v754
        %791 = vadd.xlane.f32.xlu0 %v790
        %v792 = vpop.xlane.xlu0 %791
        %v793 = vadd.f32 %v755, %v756
        %794 = vadd.xlane.f32.xlu0 %v793
        %v795 = vpop.xlane.xlu0 %794
        %v796 = vadd.f32 %v757, %v758
        %797 = vadd.xlane.f32.xlu0 %v796
        %v798 = vpop.xlane.xlu0 %797
        %v799 = vadd.f32 %v759, %v760
        %800 = vadd.xlane.f32.xlu0 %v799
        %v801 = vpop.xlane.xlu0 %800
        %v802 = vadd.f32 %v761, %v762
        %803 = vadd.xlane.f32.xlu0 %v802
        %v804 = vpop.xlane.xlu0 %803
        %v805 = vadd.f32 %v763, %v764
        %806 = vadd.xlane.f32.xlu0 %v805
        %v807 = vpop.xlane.xlu0 %806
        %v808 = vadd.f32 %v765, %v766
        %809 = vadd.xlane.f32.xlu0 %v808
        %v810 = vpop.xlane.xlu0 %809
        %v811 = vadd.f32 %v767, %v768
        %812 = vadd.xlane.f32.xlu0 %v811
        %v813 = vpop.xlane.xlu0 %812
        %v814 = vadd.f32 %v769, %v770
        %815 = vadd.xlane.f32.xlu0 %v814
        %v816 = vpop.xlane.xlu0 %815
        %v817 = vadd.f32 %v771, %v772
        %818 = vadd.xlane.f32.xlu0 %v817
        %v819 = vpop.xlane.xlu0 %818
        %v820 = vadd.f32 %v773, %v774
        %821 = vadd.xlane.f32.xlu0 %v820
        %v822 = vpop.xlane.xlu0 %821
        %v823 = vmax.f32 %v777, 1e-24
        %v824 = vmax.f32 %v780, 1e-24
        %v825 = vmax.f32 %v783, 1e-24
        %v826 = vmax.f32 %v786, 1e-24
        %v827 = vmax.f32 %v789, 1e-24
        %v828 = vmax.f32 %v792, 1e-24
        %v829 = vmax.f32 %v795, 1e-24
        %v830 = vmax.f32 %v798, 1e-24
        %v831 = vmax.f32 %v801, 1e-24
        %v832 = vmax.f32 %v804, 1e-24
        %v833 = vmax.f32 %v807, 1e-24
        %v834 = vmax.f32 %v810, 1e-24
        %v835 = vmax.f32 %v813, 1e-24
        %v836 = vmax.f32 %v816, 1e-24
        %v837 = vmax.f32 %v819, 1e-24
        %v838 = vmax.f32 %v822, 1e-24
        %v839 = vrsqrt.pop %v823
        %v840 = vmul.f32 %v839, %v823
        %v841 = vmul.f32 %v840, %v839
        %v842 = vmul.f32 0.5, %v841
        %v843 = vsub.f32 1.5, %v842
        %v844 = vmul.f32 %v839, %v843
        %vm845 = vweird.f32 %v823
        %vm846 = vweird.f32 %v839
        %vm847 = vmor %vm845, %vm846
        %v848 = vsel %vm847, %v839, %v844
        %v849 = vrsqrt.pop %v824
        %v850 = vmul.f32 %v849, %v824
        %v851 = vmul.f32 %v850, %v849
        %v852 = vmul.f32 0.5, %v851
        %v853 = vsub.f32 1.5, %v852
        %v854 = vmul.f32 %v849, %v853
        %vm855 = vweird.f32 %v824
        %vm856 = vweird.f32 %v849
        %vm857 = vmor %vm855, %vm856
        %v858 = vsel %vm857, %v849, %v854
        %v859 = vrsqrt.pop %v825
        %v860 = vmul.f32 %v859, %v825
        %v861 = vmul.f32 %v860, %v859
        %v862 = vmul.f32 0.5, %v861
        %v863 = vsub.f32 1.5, %v862
        %v864 = vmul.f32 %v859, %v863
        %vm865 = vweird.f32 %v825
        %vm866 = vweird.f32 %v859
        %vm867 = vmor %vm865, %vm866
        %v868 = vsel %vm867, %v859, %v864
        %v869 = vrsqrt.pop %v826
        %v870 = vmul.f32 %v869, %v826
        %v871 = vmul.f32 %v870, %v869
        %v872 = vmul.f32 0.5, %v871
        %v873 = vsub.f32 1.5, %v872
        %v874 = vmul.f32 %v869, %v873
        %vm875 = vweird.f32 %v826
        %vm876 = vweird.f32 %v869
        %vm877 = vmor %vm875, %vm876
        %v878 = vsel %vm877, %v869, %v874
        %v879 = vrsqrt.pop %v827
        %v880 = vmul.f32 %v879, %v827
        %v881 = vmul.f32 %v880, %v879
        %v882 = vmul.f32 0.5, %v881
        %v883 = vsub.f32 1.5, %v882
        %v884 = vmul.f32 %v879, %v883
        %vm885 = vweird.f32 %v827
        %vm886 = vweird.f32 %v879
        %vm887 = vmor %vm885, %vm886
        %v888 = vsel %vm887, %v879, %v884
        %v889 = vrsqrt.pop %v828
        %v890 = vmul.f32 %v889, %v828
        %v891 = vmul.f32 %v890, %v889
        %v892 = vmul.f32 0.5, %v891
        %v893 = vsub.f32 1.5, %v892
        %v894 = vmul.f32 %v889, %v893
        %vm895 = vweird.f32 %v828
        %vm896 = vweird.f32 %v889
        %vm897 = vmor %vm895, %vm896
        %v898 = vsel %vm897, %v889, %v894
        %v899 = vrsqrt.pop %v829
        %v900 = vmul.f32 %v899, %v829
        %v901 = vmul.f32 %v900, %v899
        %v902 = vmul.f32 0.5, %v901
        %v903 = vsub.f32 1.5, %v902
        %v904 = vmul.f32 %v899, %v903
        %vm905 = vweird.f32 %v829
        %vm906 = vweird.f32 %v899
        %vm907 = vmor %vm905, %vm906
        %v908 = vsel %vm907, %v899, %v904
        %v909 = vrsqrt.pop %v830
        %v910 = vmul.f32 %v909, %v830
        %v911 = vmul.f32 %v910, %v909
        %v912 = vmul.f32 0.5, %v911
        %v913 = vsub.f32 1.5, %v912
        %v914 = vmul.f32 %v909, %v913
        %vm915 = vweird.f32 %v830
        %vm916 = vweird.f32 %v909
        %vm917 = vmor %vm915, %vm916
        %v918 = vsel %vm917, %v909, %v914
        %v919 = vrsqrt.pop %v831
        %v920 = vmul.f32 %v919, %v831
        %v921 = vmul.f32 %v920, %v919
        %v922 = vmul.f32 0.5, %v921
        %v923 = vsub.f32 1.5, %v922
        %v924 = vmul.f32 %v919, %v923
        %vm925 = vweird.f32 %v831
        %vm926 = vweird.f32 %v919
        %vm927 = vmor %vm925, %vm926
        %v928 = vsel %vm927, %v919, %v924
        %v929 = vrsqrt.pop %v832
        %v930 = vmul.f32 %v929, %v832
        %v931 = vmul.f32 %v930, %v929
        %v932 = vmul.f32 0.5, %v931
        %v933 = vsub.f32 1.5, %v932
        %v934 = vmul.f32 %v929, %v933
        %vm935 = vweird.f32 %v832
        %vm936 = vweird.f32 %v929
        %vm937 = vmor %vm935, %vm936
        %v938 = vsel %vm937, %v929, %v934
        %v939 = vrsqrt.pop %v833
        %v940 = vmul.f32 %v939, %v833
        %v941 = vmul.f32 %v940, %v939
        %v942 = vmul.f32 0.5, %v941
        %v943 = vsub.f32 1.5, %v942
        %v944 = vmul.f32 %v939, %v943
        %vm945 = vweird.f32 %v833
        %vm946 = vweird.f32 %v939
        %vm947 = vmor %vm945, %vm946
        %v948 = vsel %vm947, %v939, %v944
        %v949 = vrsqrt.pop %v834
        %v950 = vmul.f32 %v949, %v834
        %v951 = vmul.f32 %v950, %v949
        %v952 = vmul.f32 0.5, %v951
        %v953 = vsub.f32 1.5, %v952
        %v954 = vmul.f32 %v949, %v953
        %vm955 = vweird.f32 %v834
        %vm956 = vweird.f32 %v949
        %vm957 = vmor %vm955, %vm956
        %v958 = vsel %vm957, %v949, %v954
        %v959 = vrsqrt.pop %v835
        %v960 = vmul.f32 %v959, %v835
        %v961 = vmul.f32 %v960, %v959
        %v962 = vmul.f32 0.5, %v961
        %v963 = vsub.f32 1.5, %v962
        %v964 = vmul.f32 %v959, %v963
        %vm965 = vweird.f32 %v835
        %vm966 = vweird.f32 %v959
        %vm967 = vmor %vm965, %vm966
        %v968 = vsel %vm967, %v959, %v964
        %v969 = vrsqrt.pop %v836
        %v970 = vmul.f32 %v969, %v836
        %v971 = vmul.f32 %v970, %v969
        %v972 = vmul.f32 0.5, %v971
        %v973 = vsub.f32 1.5, %v972
        %v974 = vmul.f32 %v969, %v973
        %vm975 = vweird.f32 %v836
        %vm976 = vweird.f32 %v969
        %vm977 = vmor %vm975, %vm976
        %v978 = vsel %vm977, %v969, %v974
        %v979 = vrsqrt.pop %v837
        %v980 = vmul.f32 %v979, %v837
        %v981 = vmul.f32 %v980, %v979
        %v982 = vmul.f32 0.5, %v981
        %v983 = vsub.f32 1.5, %v982
        %v984 = vmul.f32 %v979, %v983
        %vm985 = vweird.f32 %v837
        %vm986 = vweird.f32 %v979
        %vm987 = vmor %vm985, %vm986
        %v988 = vsel %vm987, %v979, %v984
        %v989 = vrsqrt.pop %v838
        %v990 = vmul.f32 %v989, %v838
        %v991 = vmul.f32 %v990, %v989
        %v992 = vmul.f32 0.5, %v991
        %v993 = vsub.f32 1.5, %v992
        %v994 = vmul.f32 %v989, %v993
        %vm995 = vweird.f32 %v838
        %vm996 = vweird.f32 %v989
        %vm997 = vmor %vm995, %vm996
        %v998 = vsel %vm997, %v989, %v994
        %v999 = vmul.f32 %v501, %v848
        %v1000 = vmul.f32 %v566, %v848
        %v1001 = vmul.f32 %v504, %v858
        %v1002 = vmul.f32 %v569, %v858
        %v1003 = vmul.f32 %v507, %v868
        %v1004 = vmul.f32 %v572, %v868
        %v1005 = vmul.f32 %v510, %v878
        %v1006 = vmul.f32 %v575, %v878
        %v1007 = vmul.f32 %v513, %v888
        %v1008 = vmul.f32 %v578, %v888
        %v1009 = vmul.f32 %v516, %v898
        %v1010 = vmul.f32 %v581, %v898
        %v1011 = vmul.f32 %v519, %v908
        %v1012 = vmul.f32 %v584, %v908
        %v1013 = vmul.f32 %v522, %v918
        %v1014 = vmul.f32 %v587, %v918
        %v1015 = vmul.f32 %v525, %v928
        %v1016 = vmul.f32 %v590, %v928
        %v1017 = vmul.f32 %v528, %v938
        %v1018 = vmul.f32 %v593, %v938
        %v1019 = vmul.f32 %v531, %v948
        %v1020 = vmul.f32 %v596, %v948
        %v1021 = vmul.f32 %v534, %v958
        %v1022 = vmul.f32 %v599, %v958
        %v1023 = vmul.f32 %v537, %v968
        %v1024 = vmul.f32 %v602, %v968
        %v1025 = vmul.f32 %v540, %v978
        %v1026 = vmul.f32 %v605, %v978
        %v1027 = vmul.f32 %v543, %v988
        %v1028 = vmul.f32 %v608, %v988
        %v1029 = vmul.f32 %v546, %v998
        %v1030 = vmul.f32 %v611, %v998
        %v1031 = vmul.f32 %v631, %v631
        %v1032 = vmul.f32 %v696, %v696
        %v1033 = vmul.f32 %v634, %v634
        %v1034 = vmul.f32 %v699, %v699
        %v1035 = vmul.f32 %v637, %v637
        %v1036 = vmul.f32 %v702, %v702
        %v1037 = vmul.f32 %v640, %v640
        %v1038 = vmul.f32 %v705, %v705
        %v1039 = vmul.f32 %v643, %v643
        %v1040 = vmul.f32 %v708, %v708
        %v1041 = vmul.f32 %v646, %v646
        %v1042 = vmul.f32 %v711, %v711
        %v1043 = vmul.f32 %v649, %v649
        %v1044 = vmul.f32 %v714, %v714
        %v1045 = vmul.f32 %v652, %v652
        %v1046 = vmul.f32 %v717, %v717
        %v1047 = vmul.f32 %v655, %v655
        %v1048 = vmul.f32 %v720, %v720
        %v1049 = vmul.f32 %v658, %v658
        %v1050 = vmul.f32 %v723, %v723
        %v1051 = vmul.f32 %v661, %v661
        %v1052 = vmul.f32 %v726, %v726
        %v1053 = vmul.f32 %v664, %v664
        %v1054 = vmul.f32 %v729, %v729
        %v1055 = vmul.f32 %v667, %v667
        %v1056 = vmul.f32 %v732, %v732
        %v1057 = vmul.f32 %v670, %v670
        %v1058 = vmul.f32 %v735, %v735
        %v1059 = vmul.f32 %v673, %v673
        %v1060 = vmul.f32 %v738, %v738
        %v1061 = vmul.f32 %v676, %v676
        %v1062 = vmul.f32 %v741, %v741
        %v1063 = vadd.f32 %v1031, %v1032
        %1064 = vadd.xlane.f32.xlu0 %v1063
        %v1065 = vpop.xlane.xlu0 %1064
        %v1066 = vadd.f32 %v1033, %v1034
        %1067 = vadd.xlane.f32.xlu0 %v1066
        %v1068 = vpop.xlane.xlu0 %1067
        %v1069 = vadd.f32 %v1035, %v1036
        %1070 = vadd.xlane.f32.xlu0 %v1069
        %v1071 = vpop.xlane.xlu0 %1070
        %v1072 = vadd.f32 %v1037, %v1038
        %1073 = vadd.xlane.f32.xlu0 %v1072
        %v1074 = vpop.xlane.xlu0 %1073
        %v1075 = vadd.f32 %v1039, %v1040
        %1076 = vadd.xlane.f32.xlu0 %v1075
        %v1077 = vpop.xlane.xlu0 %1076
        %v1078 = vadd.f32 %v1041, %v1042
        %1079 = vadd.xlane.f32.xlu0 %v1078
        %v1080 = vpop.xlane.xlu0 %1079
        %v1081 = vadd.f32 %v1043, %v1044
        %1082 = vadd.xlane.f32.xlu0 %v1081
        %v1083 = vpop.xlane.xlu0 %1082
        %v1084 = vadd.f32 %v1045, %v1046
        %1085 = vadd.xlane.f32.xlu0 %v1084
        %v1086 = vpop.xlane.xlu0 %1085
        %v1087 = vadd.f32 %v1047, %v1048
        %1088 = vadd.xlane.f32.xlu0 %v1087
        %v1089 = vpop.xlane.xlu0 %1088
        %v1090 = vadd.f32 %v1049, %v1050
        %1091 = vadd.xlane.f32.xlu0 %v1090
        %v1092 = vpop.xlane.xlu0 %1091
        %v1093 = vadd.f32 %v1051, %v1052
        %1094 = vadd.xlane.f32.xlu0 %v1093
        %v1095 = vpop.xlane.xlu0 %1094
        %v1096 = vadd.f32 %v1053, %v1054
        %1097 = vadd.xlane.f32.xlu0 %v1096
        %v1098 = vpop.xlane.xlu0 %1097
        %v1099 = vadd.f32 %v1055, %v1056
        %1100 = vadd.xlane.f32.xlu0 %v1099
        %v1101 = vpop.xlane.xlu0 %1100
        %v1102 = vadd.f32 %v1057, %v1058
        %1103 = vadd.xlane.f32.xlu0 %v1102
        %v1104 = vpop.xlane.xlu0 %1103
        %v1105 = vadd.f32 %v1059, %v1060
        %1106 = vadd.xlane.f32.xlu0 %v1105
        %v1107 = vpop.xlane.xlu0 %1106
        %v1108 = vadd.f32 %v1061, %v1062
        %1109 = vadd.xlane.f32.xlu0 %v1108
        %v1110 = vpop.xlane.xlu0 %1109
        %v1111 = vmax.f32 %v1065, 1e-24
        %v1112 = vmax.f32 %v1068, 1e-24
        %v1113 = vmax.f32 %v1071, 1e-24
        %v1114 = vmax.f32 %v1074, 1e-24
        %v1115 = vmax.f32 %v1077, 1e-24
        %v1116 = vmax.f32 %v1080, 1e-24
        %v1117 = vmax.f32 %v1083, 1e-24
        %v1118 = vmax.f32 %v1086, 1e-24
        %v1119 = vmax.f32 %v1089, 1e-24
        %v1120 = vmax.f32 %v1092, 1e-24
        %v1121 = vmax.f32 %v1095, 1e-24
        %v1122 = vmax.f32 %v1098, 1e-24
        %v1123 = vmax.f32 %v1101, 1e-24
        %v1124 = vmax.f32 %v1104, 1e-24
        %v1125 = vmax.f32 %v1107, 1e-24
        %v1126 = vmax.f32 %v1110, 1e-24
        %v1127 = vrsqrt.pop %v1111
        %v1128 = vmul.f32 %v1127, %v1111
        %v1129 = vmul.f32 %v1128, %v1127
        %v1130 = vmul.f32 0.5, %v1129
        %v1131 = vsub.f32 1.5, %v1130
        %v1132 = vmul.f32 %v1127, %v1131
        %vm1133 = vweird.f32 %v1111
        %vm1134 = vweird.f32 %v1127
        %vm1135 = vmor %vm1133, %vm1134
        %v1136 = vsel %vm1135, %v1127, %v1132
        %v1137 = vrsqrt.pop %v1112
        %v1138 = vmul.f32 %v1137, %v1112
        %v1139 = vmul.f32 %v1138, %v1137
        %v1140 = vmul.f32 0.5, %v1139
        %v1141 = vsub.f32 1.5, %v1140
        %v1142 = vmul.f32 %v1137, %v1141
        %vm1143 = vweird.f32 %v1112
        %vm1144 = vweird.f32 %v1137
        %vm1145 = vmor %vm1143, %vm1144
        %v1146 = vsel %vm1145, %v1137, %v1142
        %v1147 = vrsqrt.pop %v1113
        %v1148 = vmul.f32 %v1147, %v1113
        %v1149 = vmul.f32 %v1148, %v1147
        %v1150 = vmul.f32 0.5, %v1149
        %v1151 = vsub.f32 1.5, %v1150
        %v1152 = vmul.f32 %v1147, %v1151
        %vm1153 = vweird.f32 %v1113
        %vm1154 = vweird.f32 %v1147
        %vm1155 = vmor %vm1153, %vm1154
        %v1156 = vsel %vm1155, %v1147, %v1152
        %v1157 = vrsqrt.pop %v1114
        %v1158 = vmul.f32 %v1157, %v1114
        %v1159 = vmul.f32 %v1158, %v1157
        %v1160 = vmul.f32 0.5, %v1159
        %v1161 = vsub.f32 1.5, %v1160
        %v1162 = vmul.f32 %v1157, %v1161
        %vm1163 = vweird.f32 %v1114
        %vm1164 = vweird.f32 %v1157
        %vm1165 = vmor %vm1163, %vm1164
        %v1166 = vsel %vm1165, %v1157, %v1162
        %v1167 = vrsqrt.pop %v1115
        %v1168 = vmul.f32 %v1167, %v1115
        %v1169 = vmul.f32 %v1168, %v1167
        %v1170 = vmul.f32 0.5, %v1169
        %v1171 = vsub.f32 1.5, %v1170
        %v1172 = vmul.f32 %v1167, %v1171
        %vm1173 = vweird.f32 %v1115
        %vm1174 = vweird.f32 %v1167
        %vm1175 = vmor %vm1173, %vm1174
        %v1176 = vsel %vm1175, %v1167, %v1172
        %v1177 = vrsqrt.pop %v1116
        %v1178 = vmul.f32 %v1177, %v1116
        %v1179 = vmul.f32 %v1178, %v1177
        %v1180 = vmul.f32 0.5, %v1179
        %v1181 = vsub.f32 1.5, %v1180
        %v1182 = vmul.f32 %v1177, %v1181
        %vm1183 = vweird.f32 %v1116
        %vm1184 = vweird.f32 %v1177
        %vm1185 = vmor %vm1183, %vm1184
        %v1186 = vsel %vm1185, %v1177, %v1182
        %v1187 = vrsqrt.pop %v1117
        %v1188 = vmul.f32 %v1187, %v1117
        %v1189 = vmul.f32 %v1188, %v1187
        %v1190 = vmul.f32 0.5, %v1189
        %v1191 = vsub.f32 1.5, %v1190
        %v1192 = vmul.f32 %v1187, %v1191
        %vm1193 = vweird.f32 %v1117
        %vm1194 = vweird.f32 %v1187
        %vm1195 = vmor %vm1193, %vm1194
        %v1196 = vsel %vm1195, %v1187, %v1192
        %v1197 = vrsqrt.pop %v1118
        %v1198 = vmul.f32 %v1197, %v1118
        %v1199 = vmul.f32 %v1198, %v1197
        %v1200 = vmul.f32 0.5, %v1199
        %v1201 = vsub.f32 1.5, %v1200
        %v1202 = vmul.f32 %v1197, %v1201
        %vm1203 = vweird.f32 %v1118
        %vm1204 = vweird.f32 %v1197
        %vm1205 = vmor %vm1203, %vm1204
        %v1206 = vsel %vm1205, %v1197, %v1202
        %v1207 = vrsqrt.pop %v1119
        %v1208 = vmul.f32 %v1207, %v1119
        %v1209 = vmul.f32 %v1208, %v1207
        %v1210 = vmul.f32 0.5, %v1209
        %v1211 = vsub.f32 1.5, %v1210
        %v1212 = vmul.f32 %v1207, %v1211
        %vm1213 = vweird.f32 %v1119
        %vm1214 = vweird.f32 %v1207
        %vm1215 = vmor %vm1213, %vm1214
        %v1216 = vsel %vm1215, %v1207, %v1212
        %v1217 = vrsqrt.pop %v1120
        %v1218 = vmul.f32 %v1217, %v1120
        %v1219 = vmul.f32 %v1218, %v1217
        %v1220 = vmul.f32 0.5, %v1219
        %v1221 = vsub.f32 1.5, %v1220
        %v1222 = vmul.f32 %v1217, %v1221
        %vm1223 = vweird.f32 %v1120
        %vm1224 = vweird.f32 %v1217
        %vm1225 = vmor %vm1223, %vm1224
        %v1226 = vsel %vm1225, %v1217, %v1222
        %v1227 = vrsqrt.pop %v1121
        %v1228 = vmul.f32 %v1227, %v1121
        %v1229 = vmul.f32 %v1228, %v1227
        %v1230 = vmul.f32 0.5, %v1229
        %v1231 = vsub.f32 1.5, %v1230
        %v1232 = vmul.f32 %v1227, %v1231
        %vm1233 = vweird.f32 %v1121
        %vm1234 = vweird.f32 %v1227
        %vm1235 = vmor %vm1233, %vm1234
        %v1236 = vsel %vm1235, %v1227, %v1232
        %v1237 = vrsqrt.pop %v1122
        %v1238 = vmul.f32 %v1237, %v1122
        %v1239 = vmul.f32 %v1238, %v1237
        %v1240 = vmul.f32 0.5, %v1239
        %v1241 = vsub.f32 1.5, %v1240
        %v1242 = vmul.f32 %v1237, %v1241
        %vm1243 = vweird.f32 %v1122
        %vm1244 = vweird.f32 %v1237
        %vm1245 = vmor %vm1243, %vm1244
        %v1246 = vsel %vm1245, %v1237, %v1242
        %v1247 = vrsqrt.pop %v1123
        %v1248 = vmul.f32 %v1247, %v1123
        %v1249 = vmul.f32 %v1248, %v1247
        %v1250 = vmul.f32 0.5, %v1249
        %v1251 = vsub.f32 1.5, %v1250
        %v1252 = vmul.f32 %v1247, %v1251
        %vm1253 = vweird.f32 %v1123
        %vm1254 = vweird.f32 %v1247
        %vm1255 = vmor %vm1253, %vm1254
        %v1256 = vsel %vm1255, %v1247, %v1252
        %v1257 = vrsqrt.pop %v1124
        %v1258 = vmul.f32 %v1257, %v1124
        %v1259 = vmul.f32 %v1258, %v1257
        %v1260 = vmul.f32 0.5, %v1259
        %v1261 = vsub.f32 1.5, %v1260
        %v1262 = vmul.f32 %v1257, %v1261
        %vm1263 = vweird.f32 %v1124
        %vm1264 = vweird.f32 %v1257
        %vm1265 = vmor %vm1263, %vm1264
        %v1266 = vsel %vm1265, %v1257, %v1262
        %v1267 = vrsqrt.pop %v1125
        %v1268 = vmul.f32 %v1267, %v1125
        %v1269 = vmul.f32 %v1268, %v1267
        %v1270 = vmul.f32 0.5, %v1269
        %v1271 = vsub.f32 1.5, %v1270
        %v1272 = vmul.f32 %v1267, %v1271
        %vm1273 = vweird.f32 %v1125
        %vm1274 = vweird.f32 %v1267
        %vm1275 = vmor %vm1273, %vm1274
        %v1276 = vsel %vm1275, %v1267, %v1272
        %v1277 = vrsqrt.pop %v1126
        %v1278 = vmul.f32 %v1277, %v1126
        %v1279 = vmul.f32 %v1278, %v1277
        %v1280 = vmul.f32 0.5, %v1279
        %v1281 = vsub.f32 1.5, %v1280
        %v1282 = vmul.f32 %v1277, %v1281
        %vm1283 = vweird.f32 %v1126
        %vm1284 = vweird.f32 %v1277
        %vm1285 = vmor %vm1283, %vm1284
        %v1286 = vsel %vm1285, %v1277, %v1282
        %v1287 = vmul.f32 %v631, %v1136
        %v1288 = vmul.f32 %v696, %v1136
        %v1289 = vmul.f32 %v634, %v1146
        %v1290 = vmul.f32 %v699, %v1146
        %v1291 = vmul.f32 %v637, %v1156
        %v1292 = vmul.f32 %v702, %v1156
        %v1293 = vmul.f32 %v640, %v1166
        %v1294 = vmul.f32 %v705, %v1166
        %v1295 = vmul.f32 %v643, %v1176
        %v1296 = vmul.f32 %v708, %v1176
        %v1297 = vmul.f32 %v646, %v1186
        %v1298 = vmul.f32 %v711, %v1186
        %v1299 = vmul.f32 %v649, %v1196
        %v1300 = vmul.f32 %v714, %v1196
        %v1301 = vmul.f32 %v652, %v1206
        %v1302 = vmul.f32 %v717, %v1206
        %v1303 = vmul.f32 %v655, %v1216
        %v1304 = vmul.f32 %v720, %v1216
        %v1305 = vmul.f32 %v658, %v1226
        %v1306 = vmul.f32 %v723, %v1226
        %v1307 = vmul.f32 %v661, %v1236
        %v1308 = vmul.f32 %v726, %v1236
        %v1309 = vmul.f32 %v664, %v1246
        %v1310 = vmul.f32 %v729, %v1246
        %v1311 = vmul.f32 %v667, %v1256
        %v1312 = vmul.f32 %v732, %v1256
        %v1313 = vmul.f32 %v670, %v1266
        %v1314 = vmul.f32 %v735, %v1266
        %v1315 = vmul.f32 %v673, %v1276
        %v1316 = vmul.f32 %v738, %v1276
        %v1317 = vmul.f32 %v676, %v1286
        %v1318 = vmul.f32 %v741, %v1286
        %v1319 = vld [vmem:[%s3] sm:$0x3]
        %v1321 = vperm.slane %v1319, 0
        %v1322 = vperm.slane %v1319, 1
        %v1325 = vmul.f32 %v999, %v1321
        %v1326 = vmul.f32 %v1000, %v1322
        %v1327 = vmul.f32 %v1001, %v1321
        %v1328 = vmul.f32 %v1002, %v1322
        %v1329 = vmul.f32 %v1003, %v1321
        %v1330 = vmul.f32 %v1004, %v1322
        %v1331 = vmul.f32 %v1005, %v1321
        %v1332 = vmul.f32 %v1006, %v1322
        %v1333 = vmul.f32 %v1007, %v1321
        %v1334 = vmul.f32 %v1008, %v1322
        %v1335 = vmul.f32 %v1009, %v1321
        %v1336 = vmul.f32 %v1010, %v1322
        %v1337 = vmul.f32 %v1011, %v1321
        %v1338 = vmul.f32 %v1012, %v1322
        %v1339 = vmul.f32 %v1013, %v1321
        %v1340 = vmul.f32 %v1014, %v1322
        %v1341 = vmul.f32 %v1015, %v1321
        %v1342 = vmul.f32 %v1016, %v1322
        %v1343 = vmul.f32 %v1017, %v1321
        %v1344 = vmul.f32 %v1018, %v1322
        %v1345 = vmul.f32 %v1019, %v1321
        %v1346 = vmul.f32 %v1020, %v1322
        %v1347 = vmul.f32 %v1021, %v1321
        %v1348 = vmul.f32 %v1022, %v1322
        %v1349 = vmul.f32 %v1023, %v1321
        %v1350 = vmul.f32 %v1024, %v1322
        %v1351 = vmul.f32 %v1025, %v1321
        %v1352 = vmul.f32 %v1026, %v1322
        %v1353 = vmul.f32 %v1027, %v1321
        %v1354 = vmul.f32 %v1028, %v1322
        %v1355 = vmul.f32 %v1029, %v1321
        %v1356 = vmul.f32 %v1030, %v1322
        %v1357 = vadd.f32 %v1325, %v1326
        %1358 = vadd.xlane.f32.xlu0 %v1357
        %v1359 = vpop.xlane.xlu0 %1358
        %v1360 = vadd.f32 %v1327, %v1328
        %1361 = vadd.xlane.f32.xlu0 %v1360
        %v1362 = vpop.xlane.xlu0 %1361
        %v1363 = vadd.f32 %v1329, %v1330
        %1364 = vadd.xlane.f32.xlu0 %v1363
        %v1365 = vpop.xlane.xlu0 %1364
        %v1366 = vadd.f32 %v1331, %v1332
        %1367 = vadd.xlane.f32.xlu0 %v1366
        %v1368 = vpop.xlane.xlu0 %1367
        %v1369 = vadd.f32 %v1333, %v1334
        %1370 = vadd.xlane.f32.xlu0 %v1369
        %v1371 = vpop.xlane.xlu0 %1370
        %v1372 = vadd.f32 %v1335, %v1336
        %1373 = vadd.xlane.f32.xlu0 %v1372
        %v1374 = vpop.xlane.xlu0 %1373
        %v1375 = vadd.f32 %v1337, %v1338
        %1376 = vadd.xlane.f32.xlu0 %v1375
        %v1377 = vpop.xlane.xlu0 %1376
        %v1378 = vadd.f32 %v1339, %v1340
        %1379 = vadd.xlane.f32.xlu0 %v1378
        %v1380 = vpop.xlane.xlu0 %1379
        %v1381 = vadd.f32 %v1341, %v1342
        %1382 = vadd.xlane.f32.xlu0 %v1381
        %v1383 = vpop.xlane.xlu0 %1382
        %v1384 = vadd.f32 %v1343, %v1344
        %1385 = vadd.xlane.f32.xlu0 %v1384
        %v1386 = vpop.xlane.xlu0 %1385
        %v1387 = vadd.f32 %v1345, %v1346
        %1388 = vadd.xlane.f32.xlu0 %v1387
        %v1389 = vpop.xlane.xlu0 %1388
        %v1390 = vadd.f32 %v1347, %v1348
        %1391 = vadd.xlane.f32.xlu0 %v1390
        %v1392 = vpop.xlane.xlu0 %1391
        %v1393 = vadd.f32 %v1349, %v1350
        %1394 = vadd.xlane.f32.xlu0 %v1393
        %v1395 = vpop.xlane.xlu0 %1394
        %v1396 = vadd.f32 %v1351, %v1352
        %1397 = vadd.xlane.f32.xlu0 %v1396
        %v1398 = vpop.xlane.xlu0 %1397
        %v1399 = vadd.f32 %v1353, %v1354
        %1400 = vadd.xlane.f32.xlu0 %v1399
        %v1401 = vpop.xlane.xlu0 %1400
        %v1402 = vadd.f32 %v1355, %v1356
        %1403 = vadd.xlane.f32.xlu0 %v1402
        %v1404 = vpop.xlane.xlu0 %1403
        %v1405 = vmul.f32 %v1359, 0.088388346
        %v1406 = vmul.f32 %v1362, 0.088388346
        %v1407 = vmul.f32 %v1365, 0.088388346
        %v1408 = vmul.f32 %v1368, 0.088388346
        %v1409 = vmul.f32 %v1371, 0.088388346
        %v1410 = vmul.f32 %v1374, 0.088388346
        %v1411 = vmul.f32 %v1377, 0.088388346
        %v1412 = vmul.f32 %v1380, 0.088388346
        %v1413 = vmul.f32 %v1383, 0.088388346
        %v1414 = vmul.f32 %v1386, 0.088388346
        %v1415 = vmul.f32 %v1389, 0.088388346
        %v1416 = vmul.f32 %v1392, 0.088388346
        %v1417 = vmul.f32 %v1395, 0.088388346
        %v1418 = vmul.f32 %v1398, 0.088388346
        %v1419 = vmul.f32 %v1401, 0.088388346
        %v1420 = vmul.f32 %v1404, 0.088388346
        %v1421 = vmul.f32 %v1405, %v1405
        %v1422 = vmul.f32 %v1406, %v1406
        %v1423 = vmul.f32 %v1407, %v1407
        %v1424 = vmul.f32 %v1408, %v1408
        %v1425 = vmul.f32 %v1409, %v1409
        %v1426 = vmul.f32 %v1410, %v1410
        %v1427 = vmul.f32 %v1411, %v1411
        %v1428 = vmul.f32 %v1412, %v1412
        %v1429 = vmul.f32 %v1413, %v1413
        %v1430 = vmul.f32 %v1414, %v1414
        %v1431 = vmul.f32 %v1415, %v1415
        %v1432 = vmul.f32 %v1416, %v1416
        %v1433 = vmul.f32 %v1417, %v1417
        %v1434 = vmul.f32 %v1418, %v1418
        %v1435 = vmul.f32 %v1419, %v1419
        %v1436 = vmul.f32 %v1420, %v1420
        %v1437 = vadd.f32 %v1421, %v1422
        %v1438 = vadd.f32 %v1437, %v1423
        %v1439 = vadd.f32 %v1438, %v1424
        %v1440 = vadd.f32 %v1439, %v1425
        %v1441 = vadd.f32 %v1440, %v1426
        %v1442 = vadd.f32 %v1441, %v1427
        %v1443 = vadd.f32 %v1442, %v1428
        %v1444 = vrot.slane %v1443, 4
        %v1445 = vadd.f32 %v1443, %v1444
        %v1446 = vrot.slane %v1445, 2
        %v1447 = vadd.f32 %v1445, %v1446
        %v1448 = vrot.slane %v1447, 1
        %v1449 = vadd.f32 %v1447, %v1448
        %v1450 = vadd.f32 %v1429, %v1430
        %v1451 = vadd.f32 %v1450, %v1431
        %v1452 = vadd.f32 %v1451, %v1432
        %v1453 = vadd.f32 %v1452, %v1433
        %v1454 = vadd.f32 %v1453, %v1434
        %v1455 = vadd.f32 %v1454, %v1435
        %v1456 = vadd.f32 %v1455, %v1436
        %v1457 = vrot.slane %v1456, 4
        %v1458 = vadd.f32 %v1456, %v1457
        %v1459 = vrot.slane %v1458, 2
        %v1460 = vadd.f32 %v1458, %v1459
        %v1461 = vrot.slane %v1460, 1
        %v1462 = vadd.f32 %v1460, %v1461
        %v1463 = vmax.f32 %v1449, 1e-24
        %v1464 = vmax.f32 %v1462, 1e-24
        %v1465 = vrsqrt.pop %v1463
        %v1466 = vmul.f32 %v1465, %v1463
        %v1467 = vmul.f32 %v1466, %v1465
        %v1468 = vmul.f32 0.5, %v1467
        %v1469 = vsub.f32 1.5, %v1468
        %v1470 = vmul.f32 %v1465, %v1469
        %vm1471 = vweird.f32 %v1463
        %vm1472 = vweird.f32 %v1465
        %vm1473 = vmor %vm1471, %vm1472
        %v1474 = vsel %vm1473, %v1465, %v1470
        %v1475 = vrsqrt.pop %v1464
        %v1476 = vmul.f32 %v1475, %v1464
        %v1477 = vmul.f32 %v1476, %v1475
        %v1478 = vmul.f32 0.5, %v1477
        %v1479 = vsub.f32 1.5, %v1478
        %v1480 = vmul.f32 %v1475, %v1479
        %vm1481 = vweird.f32 %v1464
        %vm1482 = vweird.f32 %v1475
        %vm1483 = vmor %vm1481, %vm1482
        %v1484 = vsel %vm1483, %v1475, %v1480
        %v1485 = vmul.f32 %v1405, %v1474
        %v1486 = vmul.f32 %v1406, %v1474
        %v1487 = vmul.f32 %v1407, %v1474
        %v1488 = vmul.f32 %v1408, %v1474
        %v1489 = vmul.f32 %v1409, %v1474
        %v1490 = vmul.f32 %v1410, %v1474
        %v1491 = vmul.f32 %v1411, %v1474
        %v1492 = vmul.f32 %v1412, %v1474
        %v1493 = vmul.f32 %v1413, %v1484
        %v1494 = vmul.f32 %v1414, %v1484
        %v1495 = vmul.f32 %v1415, %v1484
        %v1496 = vmul.f32 %v1416, %v1484
        %v1497 = vmul.f32 %v1417, %v1484
        %v1498 = vmul.f32 %v1418, %v1484
        %v1499 = vmul.f32 %v1419, %v1484
        %v1500 = vmul.f32 %v1420, %v1484
        %v1501 = vmul.f32 %v1485, %v999
        %v1502 = vmul.f32 %v1485, %v1000
        %v1503 = vmul.f32 %v1486, %v1001
        %v1504 = vmul.f32 %v1486, %v1002
        %v1505 = vmul.f32 %v1487, %v1003
        %v1506 = vmul.f32 %v1487, %v1004
        %v1507 = vmul.f32 %v1488, %v1005
        %v1508 = vmul.f32 %v1488, %v1006
        %v1509 = vmul.f32 %v1489, %v1007
        %v1510 = vmul.f32 %v1489, %v1008
        %v1511 = vmul.f32 %v1490, %v1009
        %v1512 = vmul.f32 %v1490, %v1010
        %v1513 = vmul.f32 %v1491, %v1011
        %v1514 = vmul.f32 %v1491, %v1012
        %v1515 = vmul.f32 %v1492, %v1013
        %v1516 = vmul.f32 %v1492, %v1014
        %v1517 = vmul.f32 %v1493, %v1015
        %v1518 = vmul.f32 %v1493, %v1016
        %v1519 = vmul.f32 %v1494, %v1017
        %v1520 = vmul.f32 %v1494, %v1018
        %v1521 = vmul.f32 %v1495, %v1019
        %v1522 = vmul.f32 %v1495, %v1020
        %v1523 = vmul.f32 %v1496, %v1021
        %v1524 = vmul.f32 %v1496, %v1022
        %v1525 = vmul.f32 %v1497, %v1023
        %v1526 = vmul.f32 %v1497, %v1024
        %v1527 = vmul.f32 %v1498, %v1025
        %v1528 = vmul.f32 %v1498, %v1026
        %v1529 = vmul.f32 %v1499, %v1027
        %v1530 = vmul.f32 %v1499, %v1028
        %v1531 = vmul.f32 %v1500, %v1029
        %v1532 = vmul.f32 %v1500, %v1030
        %v1533 = vadd.f32 %v1501, %v1503
        %v1534 = vadd.f32 %v1533, %v1505
        %v1535 = vadd.f32 %v1534, %v1507
        %v1536 = vadd.f32 %v1535, %v1509
        %v1537 = vadd.f32 %v1536, %v1511
        %v1538 = vadd.f32 %v1537, %v1513
        %v1539 = vadd.f32 %v1538, %v1515
        %v1540 = vrot.slane %v1539, 4
        %v1541 = vadd.f32 %v1539, %v1540
        %v1542 = vrot.slane %v1541, 2
        %v1543 = vadd.f32 %v1541, %v1542
        %v1544 = vrot.slane %v1543, 1
        %v1545 = vadd.f32 %v1543, %v1544
        %v1546 = vadd.f32 %v1502, %v1504
        %v1547 = vadd.f32 %v1546, %v1506
        %v1548 = vadd.f32 %v1547, %v1508
        %v1549 = vadd.f32 %v1548, %v1510
        %v1550 = vadd.f32 %v1549, %v1512
        %v1551 = vadd.f32 %v1550, %v1514
        %v1552 = vadd.f32 %v1551, %v1516
        %v1553 = vrot.slane %v1552, 4
        %v1554 = vadd.f32 %v1552, %v1553
        %v1555 = vrot.slane %v1554, 2
        %v1556 = vadd.f32 %v1554, %v1555
        %v1557 = vrot.slane %v1556, 1
        %v1558 = vadd.f32 %v1556, %v1557
        %v1559 = vadd.f32 %v1517, %v1519
        %v1560 = vadd.f32 %v1559, %v1521
        %v1561 = vadd.f32 %v1560, %v1523
        %v1562 = vadd.f32 %v1561, %v1525
        %v1563 = vadd.f32 %v1562, %v1527
        %v1564 = vadd.f32 %v1563, %v1529
        %v1565 = vadd.f32 %v1564, %v1531
        %v1566 = vrot.slane %v1565, 4
        %v1567 = vadd.f32 %v1565, %v1566
        %v1568 = vrot.slane %v1567, 2
        %v1569 = vadd.f32 %v1567, %v1568
        %v1570 = vrot.slane %v1569, 1
        %v1571 = vadd.f32 %v1569, %v1570
        %v1572 = vadd.f32 %v1518, %v1520
        %v1573 = vadd.f32 %v1572, %v1522
        %v1574 = vadd.f32 %v1573, %v1524
        %v1575 = vadd.f32 %v1574, %v1526
        %v1576 = vadd.f32 %v1575, %v1528
        %v1577 = vadd.f32 %v1576, %v1530
        %v1578 = vadd.f32 %v1577, %v1532
        %v1579 = vrot.slane %v1578, 4
        %v1580 = vadd.f32 %v1578, %v1579
        %v1581 = vrot.slane %v1580, 2
        %v1582 = vadd.f32 %v1580, %v1581
        %v1583 = vrot.slane %v1582, 1
        %v1584 = vadd.f32 %v1582, %v1583
        %v1585 = vmul.f32 %v1545, %v1287
        %v1586 = vmul.f32 %v1558, %v1288
        %v1587 = vmul.f32 %v1545, %v1289
        %v1588 = vmul.f32 %v1558, %v1290
        %v1589 = vmul.f32 %v1545, %v1291
        %v1590 = vmul.f32 %v1558, %v1292
        %v1591 = vmul.f32 %v1545, %v1293
        %v1592 = vmul.f32 %v1558, %v1294
        %v1593 = vmul.f32 %v1545, %v1295
        %v1594 = vmul.f32 %v1558, %v1296
        %v1595 = vmul.f32 %v1545, %v1297
        %v1596 = vmul.f32 %v1558, %v1298
        %v1597 = vmul.f32 %v1545, %v1299
        %v1598 = vmul.f32 %v1558, %v1300
        %v1599 = vmul.f32 %v1545, %v1301
        %v1600 = vmul.f32 %v1558, %v1302
        %v1601 = vmul.f32 %v1571, %v1303
        %v1602 = vmul.f32 %v1584, %v1304
        %v1603 = vmul.f32 %v1571, %v1305
        %v1604 = vmul.f32 %v1584, %v1306
        %v1605 = vmul.f32 %v1571, %v1307
        %v1606 = vmul.f32 %v1584, %v1308
        %v1607 = vmul.f32 %v1571, %v1309
        %v1608 = vmul.f32 %v1584, %v1310
        %v1609 = vmul.f32 %v1571, %v1311
        %v1610 = vmul.f32 %v1584, %v1312
        %v1611 = vmul.f32 %v1571, %v1313
        %v1612 = vmul.f32 %v1584, %v1314
        %v1613 = vmul.f32 %v1571, %v1315
        %v1614 = vmul.f32 %v1584, %v1316
        %v1615 = vmul.f32 %v1571, %v1317
        %v1616 = vmul.f32 %v1584, %v1318
        %v1617 = vld [vmem:[#allocation8] sm:$0xff]
        %v1618 = vld [vmem:[#allocation8 + $0x8] sm:$0xff]
        %v1619 = vld [vmem:[#allocation8 + $0x10] sm:$0xff]
        %v1620 = vld [vmem:[#allocation8 + $0x18] sm:$0xff]
        %v1621 = vld [vmem:[#allocation8 + $0x20] sm:$0xff]
        %v1622 = vld [vmem:[#allocation8 + $0x28] sm:$0xff]
        %v1623 = vld [vmem:[#allocation8 + $0x30] sm:$0xff]
        %v1624 = vld [vmem:[#allocation8 + $0x38] sm:$0xff]
        %v1625 = vld [vmem:[#allocation8 + $0x40] sm:$0xff]
        %v1626 = vld [vmem:[#allocation8 + $0x48] sm:$0xff]
        %v1627 = vld [vmem:[#allocation8 + $0x50] sm:$0xff]
        %v1628 = vld [vmem:[#allocation8 + $0x58] sm:$0xff]
        %v1629 = vld [vmem:[#allocation8 + $0x60] sm:$0xff]
        %v1630 = vld [vmem:[#allocation8 + $0x68] sm:$0xff]
        %v1631 = vld [vmem:[#allocation8 + $0x70] sm:$0xff]
        %v1632 = vld [vmem:[#allocation8 + $0x78] sm:$0xff]
        %v1633 = vld [vmem:[#allocation8 + $0x80] sm:$0xff]
        %v1634 = vld [vmem:[#allocation8 + $0x88] sm:$0xff]
        %v1635 = vld [vmem:[#allocation8 + $0x90] sm:$0xff]
        %v1636 = vld [vmem:[#allocation8 + $0x98] sm:$0xff]
        %v1637 = vld [vmem:[#allocation8 + $0xa0] sm:$0xff]
        %v1638 = vld [vmem:[#allocation8 + $0xa8] sm:$0xff]
        %v1639 = vld [vmem:[#allocation8 + $0xb0] sm:$0xff]
        %v1640 = vld [vmem:[#allocation8 + $0xb8] sm:$0xff]
        %v1641 = vld [vmem:[#allocation8 + $0xc0] sm:$0xff]
        %v1642 = vld [vmem:[#allocation8 + $0xc8] sm:$0xff]
        %v1643 = vld [vmem:[#allocation8 + $0xd0] sm:$0xff]
        %v1644 = vld [vmem:[#allocation8 + $0xd8] sm:$0xff]
        %v1645 = vld [vmem:[#allocation8 + $0xe0] sm:$0xff]
        %v1646 = vld [vmem:[#allocation8 + $0xe8] sm:$0xff]
        %v1647 = vld [vmem:[#allocation8 + $0xf0] sm:$0xff]
        %v1648 = vld [vmem:[#allocation8 + $0xf8] sm:$0xff]
        %v1649 = vld [vmem:[#allocation8 + $0x100] sm:$0xff]
        %v1650 = vld [vmem:[#allocation8 + $0x108] sm:$0xff]
        %v1651 = vld [vmem:[#allocation8 + $0x110] sm:$0xff]
        %v1652 = vld [vmem:[#allocation8 + $0x118] sm:$0xff]
        %v1653 = vld [vmem:[#allocation8 + $0x120] sm:$0xff]
        %v1654 = vld [vmem:[#allocation8 + $0x128] sm:$0xff]
        %v1655 = vld [vmem:[#allocation8 + $0x130] sm:$0xff]
        %v1656 = vld [vmem:[#allocation8 + $0x138] sm:$0xff]
        %v1657 = vld [vmem:[#allocation8 + $0x140] sm:$0xff]
        %v1658 = vld [vmem:[#allocation8 + $0x148] sm:$0xff]
        %v1659 = vld [vmem:[#allocation8 + $0x150] sm:$0xff]
        %v1660 = vld [vmem:[#allocation8 + $0x158] sm:$0xff]
        %v1661 = vld [vmem:[#allocation8 + $0x160] sm:$0xff]
        %v1662 = vld [vmem:[#allocation8 + $0x168] sm:$0xff]
        %v1663 = vld [vmem:[#allocation8 + $0x170] sm:$0xff]
        %v1664 = vld [vmem:[#allocation8 + $0x178] sm:$0xff]
        %v1665 = vld [vmem:[#allocation8 + $0x180] sm:$0xff]
        %v1666 = vld [vmem:[#allocation8 + $0x188] sm:$0xff]
        %v1667 = vld [vmem:[#allocation8 + $0x190] sm:$0xff]
        %v1668 = vld [vmem:[#allocation8 + $0x198] sm:$0xff]
        %v1669 = vld [vmem:[#allocation8 + $0x1a0] sm:$0xff]
        %v1670 = vld [vmem:[#allocation8 + $0x1a8] sm:$0xff]
        %v1671 = vld [vmem:[#allocation8 + $0x1b0] sm:$0xff]
        %v1672 = vld [vmem:[#allocation8 + $0x1b8] sm:$0xff]
        %v1673 = vld [vmem:[#allocation8 + $0x1c0] sm:$0xff]
        %v1674 = vld [vmem:[#allocation8 + $0x1c8] sm:$0xff]
        %v1675 = vld [vmem:[#allocation8 + $0x1d0] sm:$0xff]
        %v1676 = vld [vmem:[#allocation8 + $0x1d8] sm:$0xff]
        %v1677 = vld [vmem:[#allocation8 + $0x1e0] sm:$0xff]
        %v1678 = vld [vmem:[#allocation8 + $0x1e8] sm:$0xff]
        %v1679 = vld [vmem:[#allocation8 + $0x1f0] sm:$0xff]
        %v1680 = vld [vmem:[#allocation8 + $0x1f8] sm:$0xff]
        %v1681 = vld [vmem:[%s5] sm:$0x3]
        %v1683 = vperm.slane %v1681, 0
        %v1684 = vperm.slane %v1681, 1
        %1687 = vmatpush.msra.mxu0 %v1647
        %1688 = vmatpush.msra.mxu0 %v1645
        %1689 = vmatpush.msra.mxu0 %v1643
        %1690 = vmatpush.msra.mxu0 %v1641
        %1691 = vmatpush.msra.mxu0 %v1639
        %1692 = vmatpush.msra.mxu0 %v1637
        %1693 = vmatpush.msra.mxu0 %v1635
        %1694 = vmatpush.msra.mxu0 %v1633
        %1695 = vmatpush.msra.mxu0 %v1631
        %1696 = vmatpush.msra.mxu0 %v1629
        %1697 = vmatpush.msra.mxu0 %v1627
        %1698 = vmatpush.msra.mxu0 %v1625
        %1699 = vmatpush.msra.mxu0 %v1623
        %1700 = vmatpush.msra.mxu0 %v1621
        %1701 = vmatpush.msra.mxu0 %v1619
        %1702 = vmatpush.msra.mxu0 %v1617
        %1703 = vmatmul.f32.gmra.mxu0 %v1585
        %v1704 = vpop.f32.mrf.mxu0
        %v1705 = vadd.f32 %v1683, %v1704
        %1706 = vmatmul.f32.gmra.mxu0 %v1587
        %v1707 = vpop.f32.mrf.mxu0
        %v1708 = vadd.f32 %v1683, %v1707
        %1709 = vmatmul.f32.gmra.mxu0 %v1589
        %v1710 = vpop.f32.mrf.mxu0
        %v1711 = vadd.f32 %v1683, %v1710
        %1712 = vmatmul.f32.gmra.mxu0 %v1591
        %v1713 = vpop.f32.mrf.mxu0
        %v1714 = vadd.f32 %v1683, %v1713
        %1715 = vmatmul.f32.gmra.mxu0 %v1593
        %v1716 = vpop.f32.mrf.mxu0
        %v1717 = vadd.f32 %v1683, %v1716
        %1718 = vmatmul.f32.gmra.mxu0 %v1595
        %v1719 = vpop.f32.mrf.mxu0
        %v1720 = vadd.f32 %v1683, %v1719
        %1721 = vmatmul.f32.gmra.mxu0 %v1597
        %v1722 = vpop.f32.mrf.mxu0
        %v1723 = vadd.f32 %v1683, %v1722
        %1724 = vmatmul.f32.gmra.mxu0 %v1599
        %v1725 = vpop.f32.mrf.mxu0
        %v1726 = vadd.f32 %v1683, %v1725
        %1727 = vmatmul.f32.gmra.mxu0 %v1601
        %v1728 = vpop.f32.mrf.mxu0
        %v1729 = vadd.f32 %v1683, %v1728
        %1730 = vmatmul.f32.gmra.mxu0 %v1603
        %v1731 = vpop.f32.mrf.mxu0
        %v1732 = vadd.f32 %v1683, %v1731
        %1733 = vmatmul.f32.gmra.mxu0 %v1605
        %v1734 = vpop.f32.mrf.mxu0
        %v1735 = vadd.f32 %v1683, %v1734
        %1736 = vmatmul.f32.gmra.mxu0 %v1607
        %v1737 = vpop.f32.mrf.mxu0
        %v1738 = vadd.f32 %v1683, %v1737
        %1739 = vmatmul.f32.gmra.mxu0 %v1609
        %v1740 = vpop.f32.mrf.mxu0
        %v1741 = vadd.f32 %v1683, %v1740
        %1742 = vmatmul.f32.gmra.mxu0 %v1611
        %v1743 = vpop.f32.mrf.mxu0
        %v1744 = vadd.f32 %v1683, %v1743
        %1745 = vmatmul.f32.gmra.mxu0 %v1613
        %v1746 = vpop.f32.mrf.mxu0
        %v1747 = vadd.f32 %v1683, %v1746
        %1748 = vmatmul.f32.gmra.mxu0 %v1615
        %v1749 = vpop.f32.mrf.mxu0
        %v1750 = vadd.f32 %v1683, %v1749
        %1751 = vdwg.mxu0
        %1752 = vmatpush.msra.mxu0 %v1679
        %1753 = vmatpush.msra.mxu0 %v1677
        %1754 = vmatpush.msra.mxu0 %v1675
        %1755 = vmatpush.msra.mxu0 %v1673
        %1756 = vmatpush.msra.mxu0 %v1671
        %1757 = vmatpush.msra.mxu0 %v1669
        %1758 = vmatpush.msra.mxu0 %v1667
        %1759 = vmatpush.msra.mxu0 %v1665
        %1760 = vmatpush.msra.mxu0 %v1663
        %1761 = vmatpush.msra.mxu0 %v1661
        %1762 = vmatpush.msra.mxu0 %v1659
        %1763 = vmatpush.msra.mxu0 %v1657
        %1764 = vmatpush.msra.mxu0 %v1655
        %1765 = vmatpush.msra.mxu0 %v1653
        %1766 = vmatpush.msra.mxu0 %v1651
        %1767 = vmatpush.msra.mxu0 %v1649
        %1768 = vmatmul.f32.gmra.mxu0 %v1586
        %v1769 = vpop.f32.mrf.mxu0
        %v1770 = vadd.f32 %v1705, %v1769
        %1771 = vmatmul.f32.gmra.mxu0 %v1588
        %v1772 = vpop.f32.mrf.mxu0
        %v1773 = vadd.f32 %v1708, %v1772
        %1774 = vmatmul.f32.gmra.mxu0 %v1590
        %v1775 = vpop.f32.mrf.mxu0
        %v1776 = vadd.f32 %v1711, %v1775
        %1777 = vmatmul.f32.gmra.mxu0 %v1592
        %v1778 = vpop.f32.mrf.mxu0
        %v1779 = vadd.f32 %v1714, %v1778
        %1780 = vmatmul.f32.gmra.mxu0 %v1594
        %v1781 = vpop.f32.mrf.mxu0
        %v1782 = vadd.f32 %v1717, %v1781
        %1783 = vmatmul.f32.gmra.mxu0 %v1596
        %v1784 = vpop.f32.mrf.mxu0
        %v1785 = vadd.f32 %v1720, %v1784
        %1786 = vmatmul.f32.gmra.mxu0 %v1598
        %v1787 = vpop.f32.mrf.mxu0
        %v1788 = vadd.f32 %v1723, %v1787
        %1789 = vmatmul.f32.gmra.mxu0 %v1600
        %v1790 = vpop.f32.mrf.mxu0
        %v1791 = vadd.f32 %v1726, %v1790
        %1792 = vmatmul.f32.gmra.mxu0 %v1602
        %v1793 = vpop.f32.mrf.mxu0
        %v1794 = vadd.f32 %v1729, %v1793
        %1795 = vmatmul.f32.gmra.mxu0 %v1604
        %v1796 = vpop.f32.mrf.mxu0
        %v1797 = vadd.f32 %v1732, %v1796
        %1798 = vmatmul.f32.gmra.mxu0 %v1606
        %v1799 = vpop.f32.mrf.mxu0
        %v1800 = vadd.f32 %v1735, %v1799
        %1801 = vmatmul.f32.gmra.mxu0 %v1608
        %v1802 = vpop.f32.mrf.mxu0
        %v1803 = vadd.f32 %v1738, %v1802
        %1804 = vmatmul.f32.gmra.mxu0 %v1610
        %v1805 = vpop.f32.mrf.mxu0
        %v1806 = vadd.f32 %v1741, %v1805
        %1807 = vmatmul.f32.gmra.mxu0 %v1612
        %v1808 = vpop.f32.mrf.mxu0
        %v1809 = vadd.f32 %v1744, %v1808
        %1810 = vmatmul.f32.gmra.mxu0 %v1614
        %v1811 = vpop.f32.mrf.mxu0
        %v1812 = vadd.f32 %v1747, %v1811
        %1813 = vmatmul.f32.gmra.mxu0 %v1616
        %v1814 = vpop.f32.mrf.mxu0
        %v1815 = vadd.f32 %v1750, %v1814
        %1816 = vdwg.mxu0
        %1817 = vmatpush.msra.mxu0 %v1648
        %1818 = vmatpush.msra.mxu0 %v1646
        %1819 = vmatpush.msra.mxu0 %v1644
        %1820 = vmatpush.msra.mxu0 %v1642
        %1821 = vmatpush.msra.mxu0 %v1640
        %1822 = vmatpush.msra.mxu0 %v1638
        %1823 = vmatpush.msra.mxu0 %v1636
        %1824 = vmatpush.msra.mxu0 %v1634
        %1825 = vmatpush.msra.mxu0 %v1632
        %1826 = vmatpush.msra.mxu0 %v1630
        %1827 = vmatpush.msra.mxu0 %v1628
        %1828 = vmatpush.msra.mxu0 %v1626
        %1829 = vmatpush.msra.mxu0 %v1624
        %1830 = vmatpush.msra.mxu0 %v1622
        %1831 = vmatpush.msra.mxu0 %v1620
        %1832 = vmatpush.msra.mxu0 %v1618
        %1833 = vmatmul.f32.gmra.mxu0 %v1585
        %v1834 = vpop.f32.mrf.mxu0
        %v1835 = vadd.f32 %v1684, %v1834
        %1836 = vmatmul.f32.gmra.mxu0 %v1587
        %v1837 = vpop.f32.mrf.mxu0
        %v1838 = vadd.f32 %v1684, %v1837
        %1839 = vmatmul.f32.gmra.mxu0 %v1589
        %v1840 = vpop.f32.mrf.mxu0
        %v1841 = vadd.f32 %v1684, %v1840
        %1842 = vmatmul.f32.gmra.mxu0 %v1591
        %v1843 = vpop.f32.mrf.mxu0
        %v1844 = vadd.f32 %v1684, %v1843
        %1845 = vmatmul.f32.gmra.mxu0 %v1593
        %v1846 = vpop.f32.mrf.mxu0
        %v1847 = vadd.f32 %v1684, %v1846
        %1848 = vmatmul.f32.gmra.mxu0 %v1595
        %v1849 = vpop.f32.mrf.mxu0
        %v1850 = vadd.f32 %v1684, %v1849
        %1851 = vmatmul.f32.gmra.mxu0 %v1597
        %v1852 = vpop.f32.mrf.mxu0
        %v1853 = vadd.f32 %v1684, %v1852
        %1854 = vmatmul.f32.gmra.mxu0 %v1599
        %v1855 = vpop.f32.mrf.mxu0
        %v1856 = vadd.f32 %v1684, %v1855
        %1857 = vmatmul.f32.gmra.mxu0 %v1601
        %v1858 = vpop.f32.mrf.mxu0
        %v1859 = vadd.f32 %v1684, %v1858
        %1860 = vmatmul.f32.gmra.mxu0 %v1603
        %v1861 = vpop.f32.mrf.mxu0
        %v1862 = vadd.f32 %v1684, %v1861
        %1863 = vmatmul.f32.gmra.mxu0 %v1605
        %v1864 = vpop.f32.mrf.mxu0
        %v1865 = vadd.f32 %v1684, %v1864
        %1866 = vmatmul.f32.gmra.mxu0 %v1607
        %v1867 = vpop.f32.mrf.mxu0
        %v1868 = vadd.f32 %v1684, %v1867
        %1869 = vmatmul.f32.gmra.mxu0 %v1609
        %v1870 = vpop.f32.mrf.mxu0
        %v1871 = vadd.f32 %v1684, %v1870
        %1872 = vmatmul.f32.gmra.mxu0 %v1611
        %v1873 = vpop.f32.mrf.mxu0
        %v1874 = vadd.f32 %v1684, %v1873
        %1875 = vmatmul.f32.gmra.mxu0 %v1613
        %v1876 = vpop.f32.mrf.mxu0
        %v1877 = vadd.f32 %v1684, %v1876
        %1878 = vmatmul.f32.gmra.mxu0 %v1615
        %v1879 = vpop.f32.mrf.mxu0
        %v1880 = vadd.f32 %v1684, %v1879
        %1881 = vdwg.mxu0
        %1882 = vmatpush.msra.mxu0 %v1680
        %1883 = vmatpush.msra.mxu0 %v1678
        %1884 = vmatpush.msra.mxu0 %v1676
        %1885 = vmatpush.msra.mxu0 %v1674
        %1886 = vmatpush.msra.mxu0 %v1672
        %1887 = vmatpush.msra.mxu0 %v1670
        %1888 = vmatpush.msra.mxu0 %v1668
        %1889 = vmatpush.msra.mxu0 %v1666
        %1890 = vmatpush.msra.mxu0 %v1664
        %1891 = vmatpush.msra.mxu0 %v1662
        %1892 = vmatpush.msra.mxu0 %v1660
        %1893 = vmatpush.msra.mxu0 %v1658
        %1894 = vmatpush.msra.mxu0 %v1656
        %1895 = vmatpush.msra.mxu0 %v1654
        %1896 = vmatpush.msra.mxu0 %v1652
        %1897 = vmatpush.msra.mxu0 %v1650
        %1898 = vmatmul.f32.gmra.mxu0 %v1586
        %v1899 = vpop.f32.mrf.mxu0
        %v1900 = vadd.f32 %v1835, %v1899
        %1901 = vmatmul.f32.gmra.mxu0 %v1588
        %v1902 = vpop.f32.mrf.mxu0
        %v1903 = vadd.f32 %v1838, %v1902
        %1904 = vmatmul.f32.gmra.mxu0 %v1590
        %v1905 = vpop.f32.mrf.mxu0
        %v1906 = vadd.f32 %v1841, %v1905
        %1907 = vmatmul.f32.gmra.mxu0 %v1592
        %v1908 = vpop.f32.mrf.mxu0
        %v1909 = vadd.f32 %v1844, %v1908
        %1910 = vmatmul.f32.gmra.mxu0 %v1594
        %v1911 = vpop.f32.mrf.mxu0
        %v1912 = vadd.f32 %v1847, %v1911
        %1913 = vmatmul.f32.gmra.mxu0 %v1596
        %v1914 = vpop.f32.mrf.mxu0
        %v1915 = vadd.f32 %v1850, %v1914
        %1916 = vmatmul.f32.gmra.mxu0 %v1598
        %v1917 = vpop.f32.mrf.mxu0
        %v1918 = vadd.f32 %v1853, %v1917
        %1919 = vmatmul.f32.gmra.mxu0 %v1600
        %v1920 = vpop.f32.mrf.mxu0
        %v1921 = vadd.f32 %v1856, %v1920
        %1922 = vmatmul.f32.gmra.mxu0 %v1602
        %v1923 = vpop.f32.mrf.mxu0
        %v1924 = vadd.f32 %v1859, %v1923
        %1925 = vmatmul.f32.gmra.mxu0 %v1604
        %v1926 = vpop.f32.mrf.mxu0
        %v1927 = vadd.f32 %v1862, %v1926
        %1928 = vmatmul.f32.gmra.mxu0 %v1606
        %v1929 = vpop.f32.mrf.mxu0
        %v1930 = vadd.f32 %v1865, %v1929
        %1931 = vmatmul.f32.gmra.mxu0 %v1608
        %v1932 = vpop.f32.mrf.mxu0
        %v1933 = vadd.f32 %v1868, %v1932
        %1934 = vmatmul.f32.gmra.mxu0 %v1610
        %v1935 = vpop.f32.mrf.mxu0
        %v1936 = vadd.f32 %v1871, %v1935
        %1937 = vmatmul.f32.gmra.mxu0 %v1612
        %v1938 = vpop.f32.mrf.mxu0
        %v1939 = vadd.f32 %v1874, %v1938
        %1940 = vmatmul.f32.gmra.mxu0 %v1614
        %v1941 = vpop.f32.mrf.mxu0
        %v1942 = vadd.f32 %v1877, %v1941
        %1943 = vmatmul.f32.gmra.mxu0 %v1616
        %v1944 = vpop.f32.mrf.mxu0
        %v1945 = vadd.f32 %v1880, %v1944
        %1946 = vdwg.mxu0
        %v1947 = vadd.f32 %v1770, %v999
        %v1948 = vadd.f32 %v1900, %v1000
        %v1949 = vadd.f32 %v1773, %v1001
        %v1950 = vadd.f32 %v1903, %v1002
        %v1951 = vadd.f32 %v1776, %v1003
        %v1952 = vadd.f32 %v1906, %v1004
        %v1953 = vadd.f32 %v1779, %v1005
        %v1954 = vadd.f32 %v1909, %v1006
        %v1955 = vadd.f32 %v1782, %v1007
        %v1956 = vadd.f32 %v1912, %v1008
        %v1957 = vadd.f32 %v1785, %v1009
        %v1958 = vadd.f32 %v1915, %v1010
        %v1959 = vadd.f32 %v1788, %v1011
        %v1960 = vadd.f32 %v1918, %v1012
        %v1961 = vadd.f32 %v1791, %v1013
        %v1962 = vadd.f32 %v1921, %v1014
        %v1963 = vadd.f32 %v1794, %v1015
        %v1964 = vadd.f32 %v1924, %v1016
        %v1965 = vadd.f32 %v1797, %v1017
        %v1966 = vadd.f32 %v1927, %v1018
        %v1967 = vadd.f32 %v1800, %v1019
        %v1968 = vadd.f32 %v1930, %v1020
        %v1969 = vadd.f32 %v1803, %v1021
        %v1970 = vadd.f32 %v1933, %v1022
        %v1971 = vadd.f32 %v1806, %v1023
        %v1972 = vadd.f32 %v1936, %v1024
        %v1973 = vadd.f32 %v1809, %v1025
        %v1974 = vadd.f32 %v1939, %v1026
        %v1975 = vadd.f32 %v1812, %v1027
        %v1976 = vadd.f32 %v1942, %v1028
        %v1977 = vadd.f32 %v1815, %v1029
        %v1978 = vadd.f32 %v1945, %v1030
        %v1979 = vld [vmem:[#allocation10] sm:$0xff]
        %v1980 = vld [vmem:[#allocation10 + $0x8] sm:$0xff]
        %v1981 = vld [vmem:[#allocation10 + $0x10] sm:$0xff]
        %v1982 = vld [vmem:[#allocation10 + $0x18] sm:$0xff]
        %v1983 = vld [vmem:[#allocation10 + $0x20] sm:$0xff]
        %v1984 = vld [vmem:[#allocation10 + $0x28] sm:$0xff]
        %v1985 = vld [vmem:[#allocation10 + $0x30] sm:$0xff]
        %v1986 = vld [vmem:[#allocation10 + $0x38] sm:$0xff]
        %v1987 = vld [vmem:[#allocation10 + $0x40] sm:$0xff]
        %v1988 = vld [vmem:[#allocation10 + $0x48] sm:$0xff]
        %v1989 = vld [vmem:[#allocation10 + $0x50] sm:$0xff]
        %v1990 = vld [vmem:[#allocation10 + $0x58] sm:$0xff]
        %v1991 = vld [vmem:[#allocation10 + $0x60] sm:$0xff]
        %v1992 = vld [vmem:[#allocation10 + $0x68] sm:$0xff]
        %v1993 = vld [vmem:[#allocation10 + $0x70] sm:$0xff]
        %v1994 = vld [vmem:[#allocation10 + $0x78] sm:$0xff]
        %v1995 = vld [vmem:[#allocation10 + $0x80] sm:$0xff]
        %v1996 = vld [vmem:[#allocation10 + $0x88] sm:$0xff]
        %v1997 = vld [vmem:[#allocation10 + $0x90] sm:$0xff]
        %v1998 = vld [vmem:[#allocation10 + $0x98] sm:$0xff]
        %v1999 = vld [vmem:[#allocation10 + $0xa0] sm:$0xff]
        %v2000 = vld [vmem:[#allocation10 + $0xa8] sm:$0xff]
        %v2001 = vld [vmem:[#allocation10 + $0xb0] sm:$0xff]
        %v2002 = vld [vmem:[#allocation10 + $0xb8] sm:$0xff]
        %v2003 = vld [vmem:[#allocation10 + $0xc0] sm:$0xff]
        %v2004 = vld [vmem:[#allocation10 + $0xc8] sm:$0xff]
        %v2005 = vld [vmem:[#allocation10 + $0xd0] sm:$0xff]
        %v2006 = vld [vmem:[#allocation10 + $0xd8] sm:$0xff]
        %v2007 = vld [vmem:[#allocation10 + $0xe0] sm:$0xff]
        %v2008 = vld [vmem:[#allocation10 + $0xe8] sm:$0xff]
        %v2009 = vld [vmem:[#allocation10 + $0xf0] sm:$0xff]
        %v2010 = vld [vmem:[#allocation10 + $0xf8] sm:$0xff]
        %v2011 = vld [vmem:[%s7] sm:$0x1]
        %v2013 = vperm.slane %v2011, 0
        %2015 = vmatpush.msra.mxu0 %v1994
        %2016 = vmatpush.msra.mxu0 %v1993
        %2017 = vmatpush.msra.mxu0 %v1992
        %2018 = vmatpush.msra.mxu0 %v1991
        %2019 = vmatpush.msra.mxu0 %v1990
        %2020 = vmatpush.msra.mxu0 %v1989
        %2021 = vmatpush.msra.mxu0 %v1988
        %2022 = vmatpush.msra.mxu0 %v1987
        %2023 = vmatpush.msra.mxu0 %v1986
        %2024 = vmatpush.msra.mxu0 %v1985
        %2025 = vmatpush.msra.mxu0 %v1984
        %2026 = vmatpush.msra.mxu0 %v1983
        %2027 = vmatpush.msra.mxu0 %v1982
        %2028 = vmatpush.msra.mxu0 %v1981
        %2029 = vmatpush.msra.mxu0 %v1980
        %2030 = vmatpush.msra.mxu0 %v1979
        %2031 = vmatmul.f32.gmra.mxu0 %v1947
        %v2032 = vpop.f32.mrf.mxu0
        %v2033 = vadd.f32 %v2013, %v2032
        %2034 = vmatmul.f32.gmra.mxu0 %v1949
        %v2035 = vpop.f32.mrf.mxu0
        %v2036 = vadd.f32 %v2013, %v2035
        %2037 = vmatmul.f32.gmra.mxu0 %v1951
        %v2038 = vpop.f32.mrf.mxu0
        %v2039 = vadd.f32 %v2013, %v2038
        %2040 = vmatmul.f32.gmra.mxu0 %v1953
        %v2041 = vpop.f32.mrf.mxu0
        %v2042 = vadd.f32 %v2013, %v2041
        %2043 = vmatmul.f32.gmra.mxu0 %v1955
        %v2044 = vpop.f32.mrf.mxu0
        %v2045 = vadd.f32 %v2013, %v2044
        %2046 = vmatmul.f32.gmra.mxu0 %v1957
        %v2047 = vpop.f32.mrf.mxu0
        %v2048 = vadd.f32 %v2013, %v2047
        %2049 = vmatmul.f32.gmra.mxu0 %v1959
        %v2050 = vpop.f32.mrf.mxu0
        %v2051 = vadd.f32 %v2013, %v2050
        %2052 = vmatmul.f32.gmra.mxu0 %v1961
        %v2053 = vpop.f32.mrf.mxu0
        %v2054 = vadd.f32 %v2013, %v2053
        %2055 = vmatmul.f32.gmra.mxu0 %v1963
        %v2056 = vpop.f32.mrf.mxu0
        %v2057 = vadd.f32 %v2013, %v2056
        %2058 = vmatmul.f32.gmra.mxu0 %v1965
        %v2059 = vpop.f32.mrf.mxu0
        %v2060 = vadd.f32 %v2013, %v2059
        %2061 = vmatmul.f32.gmra.mxu0 %v1967
        %v2062 = vpop.f32.mrf.mxu0
        %v2063 = vadd.f32 %v2013, %v2062
        %2064 = vmatmul.f32.gmra.mxu0 %v1969
        %v2065 = vpop.f32.mrf.mxu0
        %v2066 = vadd.f32 %v2013, %v2065
        %2067 = vmatmul.f32.gmra.mxu0 %v1971
        %v2068 = vpop.f32.mrf.mxu0
        %v2069 = vadd.f32 %v2013, %v2068
        %2070 = vmatmul.f32.gmra.mxu0 %v1973
        %v2071 = vpop.f32.mrf.mxu0
        %v2072 = vadd.f32 %v2013, %v2071
        %2073 = vmatmul.f32.gmra.mxu0 %v1975
        %v2074 = vpop.f32.mrf.mxu0
        %v2075 = vadd.f32 %v2013, %v2074
        %2076 = vmatmul.f32.gmra.mxu0 %v1977
        %v2077 = vpop.f32.mrf.mxu0
        %v2078 = vadd.f32 %v2013, %v2077
        %2079 = vdwg.mxu0
        %2080 = vmatpush.msra.mxu0 %v2010
        %2081 = vmatpush.msra.mxu0 %v2009
        %2082 = vmatpush.msra.mxu0 %v2008
        %2083 = vmatpush.msra.mxu0 %v2007
        %2084 = vmatpush.msra.mxu0 %v2006
        %2085 = vmatpush.msra.mxu0 %v2005
        %2086 = vmatpush.msra.mxu0 %v2004
        %2087 = vmatpush.msra.mxu0 %v2003
        %2088 = vmatpush.msra.mxu0 %v2002
        %2089 = vmatpush.msra.mxu0 %v2001
        %2090 = vmatpush.msra.mxu0 %v2000
        %2091 = vmatpush.msra.mxu0 %v1999
        %2092 = vmatpush.msra.mxu0 %v1998
        %2093 = vmatpush.msra.mxu0 %v1997
        %2094 = vmatpush.msra.mxu0 %v1996
        %2095 = vmatpush.msra.mxu0 %v1995
        %2096 = vmatmul.f32.gmra.mxu0 %v1948
        %v2097 = vpop.f32.mrf.mxu0
        %v2098 = vadd.f32 %v2033, %v2097
        %2099 = vmatmul.f32.gmra.mxu0 %v1950
        %v2100 = vpop.f32.mrf.mxu0
        %v2101 = vadd.f32 %v2036, %v2100
        %2102 = vmatmul.f32.gmra.mxu0 %v1952
        %v2103 = vpop.f32.mrf.mxu0
        %v2104 = vadd.f32 %v2039, %v2103
        %2105 = vmatmul.f32.gmra.mxu0 %v1954
        %v2106 = vpop.f32.mrf.mxu0
        %v2107 = vadd.f32 %v2042, %v2106
        %2108 = vmatmul.f32.gmra.mxu0 %v1956
        %v2109 = vpop.f32.mrf.mxu0
        %v2110 = vadd.f32 %v2045, %v2109
        %2111 = vmatmul.f32.gmra.mxu0 %v1958
        %v2112 = vpop.f32.mrf.mxu0
        %v2113 = vadd.f32 %v2048, %v2112
        %2114 = vmatmul.f32.gmra.mxu0 %v1960
        %v2115 = vpop.f32.mrf.mxu0
        %v2116 = vadd.f32 %v2051, %v2115
        %2117 = vmatmul.f32.gmra.mxu0 %v1962
        %v2118 = vpop.f32.mrf.mxu0
        %v2119 = vadd.f32 %v2054, %v2118
        %2120 = vmatmul.f32.gmra.mxu0 %v1964
        %v2121 = vpop.f32.mrf.mxu0
        %v2122 = vadd.f32 %v2057, %v2121
        %2123 = vmatmul.f32.gmra.mxu0 %v1966
        %v2124 = vpop.f32.mrf.mxu0
        %v2125 = vadd.f32 %v2060, %v2124
        %2126 = vmatmul.f32.gmra.mxu0 %v1968
        %v2127 = vpop.f32.mrf.mxu0
        %v2128 = vadd.f32 %v2063, %v2127
        %2129 = vmatmul.f32.gmra.mxu0 %v1970
        %v2130 = vpop.f32.mrf.mxu0
        %v2131 = vadd.f32 %v2066, %v2130
        %2132 = vmatmul.f32.gmra.mxu0 %v1972
        %v2133 = vpop.f32.mrf.mxu0
        %v2134 = vadd.f32 %v2069, %v2133
        %2135 = vmatmul.f32.gmra.mxu0 %v1974
        %v2136 = vpop.f32.mrf.mxu0
        %v2137 = vadd.f32 %v2072, %v2136
        %2138 = vmatmul.f32.gmra.mxu0 %v1976
        %v2139 = vpop.f32.mrf.mxu0
        %v2140 = vadd.f32 %v2075, %v2139
        %2141 = vmatmul.f32.gmra.mxu0 %v1978
        %v2142 = vpop.f32.mrf.mxu0
        %v2143 = vadd.f32 %v2078, %v2142
        %2144 = vdwg.mxu0
        %2145 = vst [vmem:[%s390] sm:$0xff] %v2098
        %2146 = vst [vmem:[%s390 + $0x8] sm:$0xff] %v2101
        %2147 = vst [vmem:[%s390 + $0x10] sm:$0xff] %v2104
        %2148 = vst [vmem:[%s390 + $0x18] sm:$0xff] %v2107
        %2149 = vst [vmem:[%s390 + $0x20] sm:$0xff] %v2110
        %2150 = vst [vmem:[%s390 + $0x28] sm:$0xff] %v2113
        %2151 = vst [vmem:[%s390 + $0x30] sm:$0xff] %v2116
        %2152 = vst [vmem:[%s390 + $0x38] sm:$0xff] %v2119
        %2153 = vst [vmem:[%s390 + $0x40] sm:$0xff] %v2122
        %2154 = vst [vmem:[%s390 + $0x48] sm:$0xff] %v2125
        %2155 = vst [vmem:[%s390 + $0x50] sm:$0xff] %v2128
        %2156 = vst [vmem:[%s390 + $0x58] sm:$0xff] %v2131
        %2157 = vst [vmem:[%s390 + $0x60] sm:$0xff] %v2134
        %2158 = vst [vmem:[%s390 + $0x68] sm:$0xff] %v2137
        %2159 = vst [vmem:[%s390 + $0x70] sm:$0xff] %v2140
        %2160 = vst [vmem:[%s390 + $0x78] sm:$0xff] %v2143
        %s2161 = sand.u32 %s208, 1
        %s2162 = scalar_lea.sflag [#allocation4], %s2161
        %s2163 = sand.u32 %s208, 1
        %s2164 = smul.addr %s2163, 128
        %s2165 = scalar_lea.vmem [#allocation11], %s2164
        // Predicated region
        $region73: #{tpu_custom_call.1} parent=51 // pred_check
          %p2166 = pneg %p218
        $region74: #{tpu_custom_call.1} parent=51 // pred_check_branch
          %2168 = sbr.rel (%p2166) target = $region76
        $region75: #{tpu_custom_call.1} parent=51 // pred_region
          %s2169 = smul.u32 2, %s27
          %2171 = vsyncadd %s2162, 0
          %s2172 = smul.addr %s2169, 8
          %s2173 = smul.addr %s2172, 8
          %s2174 = scalar_lea.hbm %s8, %s2173
          %s2175 = sshll.u32 %s2165, 4
          %s2176 = int_to_ptr.vmem [resolvable:$true] %s2175
          %s2177 = sshll.u32 %s2174, 4
          %s2178 = int_to_ptr.hbm [resolvable:$true] %s2177
          %2183 = dma.vmem_to_hbm [thread:$0]  %s2176, 2048, %s2178, %s2162, 128, 128, 8
        $region76: #{tpu_custom_call.1} parent=51 // pred_fallthru
          _
      $region52: #{tpu_custom_call.1} parent=5 // pred_fallthru
        _
      %p2184 = scmp.le.s32.totalorder 2, %s22
      // Predicated region
      $region77: #{tpu_custom_call.1} parent=5 // pred_check
        %p2185 = pneg %p2184
      $region78: #{tpu_custom_call.1} parent=5 // pred_check_branch
        %2187 = sbr.rel (%p2185) target = $region80
      $region79: #{tpu_custom_call.1} parent=5 // pred_region
        %s2188 = ssub.s32 %s22, 2
        // Predicated region
        $region81: #{tpu_custom_call.1} parent=79 // pred_check
          %p2189 = pneg %p224
        $region82: #{tpu_custom_call.1} parent=79 // pred_check_branch
          %2191 = sbr.rel (%p2189) target = $region84
        $region83: #{tpu_custom_call.1} parent=79 // pred_region
          %s2192 = sand.u32 %s209, 1
          %s2193 = scalar_lea.sflag [#allocation4], %s2192
          %s2194 = sand.u32 %s209, 1
          %s2195 = smul.addr %s2194, 128
          %s2196 = scalar_lea.vmem [#allocation11], %s2195
          %2198 = dma.done %s2193, 2048
        $region84: #{tpu_custom_call.1} parent=79 // pred_fallthru
          _
      $region80: #{tpu_custom_call.1} parent=5 // pred_fallthru
        _
    $region6: #{tpu_custom_call.1} parent=1 // loop_footer
      %s26 = sadd.s32 1, %s22
    $region7: #{tpu_custom_call.1} parent=1 // loop_footer_branch
      %21 = sbr.rel target = $region3
    $region8: #{tpu_custom_call.1} parent=1 // loop_exit
      _
    %2199 = vsyncpa [#allocation3], 1
    %s2200 = scalar_lea.sflag [#allocation3], 1
    %2201 = vsyncpa %s2200, 1
    %2202 = vsyncpa [#allocation6], 1
    %2203 = vsyncpa [#allocation9], 1
    %2204 = vsyncpa [#allocation4], 1
    %s2205 = scalar_lea.sflag [#allocation4], 1
    %2206 = vsyncpa %s2205, 1

// kernel: tpu_custom_call.1
$region0: #{tpu_custom_call.1}
  #allocation0 [shape = 'u32[]', space=smem, size = 0x4, offset = 0x4, fixed_abs, tag = 'smem constant byte address 0x4 - core index']
  #allocation1 [shape = 'u32[72,128]{1,0:T(1,128)}', space=vmem, size = 0x9000, scoped, tag = 'internal scratch']
  %s0 = inlined_call_operand.hbm [shape: f32[8,64,128], index: 0, kind: input, shape index: {}]
  %s1 = inlined_call_operand.hbm [shape: f32[128,512], index: 1, kind: input, shape index: {}]
  %s2 = inlined_call_operand.hbm [shape: f32[1,512], index: 2, kind: input, shape index: {}]
  %s3 = inlined_call_operand.vmem [shape: f32[1,256], index: 3, kind: input, shape index: {}]
  %s4 = inlined_call_operand.hbm [shape: f32[256,256], index: 4, kind: input, shape index: {}]
  %s5 = inlined_call_operand.vmem [shape: f32[1,256], index: 5, kind: input, shape index: {}]
  %s6 = inlined_call_operand.hbm [shape: f32[256,128], index: 6, kind: input, shape index: {}]
  %s7 = inlined_call_operand.vmem [shape: f32[1,128], index: 7, kind: input, shape index: {}]
  %s8 = inlined_call_operand.hbm [shape: f32[8,64,128], index: 8, kind: output, shape index: {}]
  %s9 = sld [smem:[#allocation0]]
  $region85: #{tpu_custom_call.1} parent=0
    _
  %s11 = ssub.s32 1, %s9
  %s12 = scalar_select 0, %s11, %s9
  $region1: #{tpu_custom_call.1} parent=0
    #allocation2 [shape = 'u8[131072]{0}', space=vmem, size = 0x20000, scoped, tag = 'input window, operand 0']
    #allocation3 [shape = 's32[2]{0}', space=sflag, size = 0x8, scoped, tag = 'scoped memory for tpu_custom_call.1']
    #allocation4 [shape = 's32[2]{0}', space=sflag, size = 0x8, scoped, tag = 'scoped memory for tpu_custom_call.1']
    #allocation5 [shape = 'u8[262144]{0}', space=vmem, size = 0x40000, scoped, tag = 'input window, operand 1, single buffered']
    #allocation6 [shape = 's32[1]{0}', space=sflag, size = 0x4, scoped, tag = 'scoped memory for tpu_custom_call.1']
    #allocation7 [shape = 'u8[2048]{0}', space=vmem, size = 0x800, scoped, tag = 'input window, operand 2, single buffered']
    #allocation8 [shape = 'u8[262144]{0}', space=vmem, size = 0x40000, scoped, tag = 'input window, operand 4, single buffered']
    #allocation9 [shape = 's32[1]{0}', space=sflag, size = 0x4, scoped, tag = 'scoped memory for tpu_custom_call.1']
    #allocation10 [shape = 'u8[131072]{0}', space=vmem, size = 0x20000, scoped, tag = 'input window, operand 6, single buffered']
    #allocation11 [shape = 'u8[131072]{0}', space=vmem, size = 0x20000, scoped, tag = 'output window, operand 0']
    %13 = vsyncpa [#allocation3], 0
    %s14 = scalar_lea.sflag [#allocation3], 1
    %15 = vsyncpa %s14, 0
    %16 = vsyncpa [#allocation6], 0
    %17 = vsyncpa [#allocation9], 0
    %18 = vsyncpa [#allocation4], 0
    %s19 = scalar_lea.sflag [#allocation4], 1
    %20 = vsyncpa %s19, 0
    loop: start=0, step=1, limit=6
    $region2: #{tpu_custom_call.1} parent=1 // loop_pre_header
      _
    $region3: #{tpu_custom_call.1} parent=1 // loop_header
      %s22 = sphi 0, %s26
      %p23 = scmp.ge.s32.totalorder %s22, 6
      %s32 = sphi 0, %s34
      %s35 = sphi 0, %s32
      %s36 = sphi 0, %s35
      %s52 = sphi 0, %s36
      %s56 = sphi 0, %s56
      %s58 = sphi 0, %s56
      %s59 = sphi 0, %s58
      %s73 = sphi 0, %s59
      %s77 = sphi 0, %s77
      %s79 = sphi 0, %s77
      %s80 = sphi 0, %s79
      %s94 = sphi 0, %s80
      %s98 = sphi 0, %s98
      %s100 = sphi 0, %s98
      %s101 = sphi 0, %s100
      %s115 = sphi 0, %s101
      %s119 = sphi 0, %s119
      %s121 = sphi 0, %s119
      %s122 = sphi 0, %s121
      %s136 = sphi 0, %s122
      %s140 = sphi 0, %s140
      %s142 = sphi 0, %s140
      %s143 = sphi 0, %s142
      %s157 = sphi 0, %s143
      %s161 = sphi 0, %s161
      %s163 = sphi 0, %s161
      %s164 = sphi 0, %s163
      %s178 = sphi 0, %s164
      %s182 = sphi 0, %s182
      %s184 = sphi 0, %s182
      %s185 = sphi 0, %s184
      %s199 = sphi 0, %s185
      %s205 = sphi 0, %s207
      %s208 = sphi 0, %s205
      %s209 = sphi 0, %s208
      %s225 = sphi 0, %s209
    $region4: #{tpu_custom_call.1} parent=1 // loop_header_branch
      %25 = sbr.rel (%p23) target = $region8
    $region5: #{tpu_custom_call.1} parent=1 // loop_body
      %s27 = ssub.s32 %s22, 1
      %s28 = ssub.s32 %s22, 2
      %s29 = sadd.s32 %s22, 1
      %s30 = ssub.s32 %s22, %s29
      %p31 = scmp.eq.s32.totalorder %s30, 0
      %s33 = sadd.s32 %s32, 1
      %s34 = scalar_select %p31, %s32, %s33
      %p37 = pneg %p31
      %p38 = scmp.eq.s32.totalorder %s22, 3
      %p39 = por %p37, %p38
      %p40 = scmp.ne.s32.totalorder %s32, %s35
      %p41 = scmp.eq.s32.totalorder %s22, 0
      %p42 = por %p40, %p41
      %p43 = scmp.ne.s32.totalorder %s32, %s35
      %p44 = scmp.eq.s32.totalorder %s27, 3
      %p45 = por %p43, %p44
      %p46 = scmp.ne.s32.totalorder %s35, %s36
      %p47 = scmp.eq.s32.totalorder %s27, 0
      %p48 = por %p46, %p47
      %p49 = scmp.ne.s32.totalorder %s35, %s36
      %p50 = scmp.eq.s32.totalorder %s28, 3
      %p51 = por %p49, %p50
      %p53 = scmp.ne.s32.totalorder %s36, %s52
      %p54 = scmp.eq.s32.totalorder %s28, 0
      %p55 = por %p53, %p54
      %s57 = sadd.s32 %s56, 1
      %p60 = scmp.eq.s32.totalorder %s22, 3
      %p61 = scmp.ne.s32.totalorder %s56, %s58
      %p62 = scmp.eq.s32.totalorder %s22, 0
      %p63 = por %p61, %p62
      %p64 = scmp.ne.s32.totalorder %s56, %s58
      %p65 = scmp.eq.s32.totalorder %s27, 3
      %p66 = por %p64, %p65
      %p67 = scmp.ne.s32.totalorder %s58, %s59
      %p68 = scmp.eq.s32.totalorder %s27, 0
      %p69 = por %p67, %p68
      %p70 = scmp.ne.s32.totalorder %s58, %s59
      %p71 = scmp.eq.s32.totalorder %s28, 3
      %p72 = por %p70, %p71
      %p74 = scmp.ne.s32.totalorder %s59, %s73
      %p75 = scmp.eq.s32.totalorder %s28, 0
      %p76 = por %p74, %p75
      %s78 = sadd.s32 %s77, 1
      %p81 = scmp.eq.s32.totalorder %s22, 3
      %p82 = scmp.ne.s32.totalorder %s77, %s79
      %p83 = scmp.eq.s32.totalorder %s22, 0
      %p84 = por %p82, %p83
      %p85 = scmp.ne.s32.totalorder %s77, %s79
      %p86 = scmp.eq.s32.totalorder %s27, 3
      %p87 = por %p85, %p86
      %p88 = scmp.ne.s32.totalorder %s79, %s80
      %p89 = scmp.eq.s32.totalorder %s27, 0
      %p90 = por %p88, %p89
      %p91 = scmp.ne.s32.totalorder %s79, %s80
      %p92 = scmp.eq.s32.totalorder %s28, 3
      %p93 = por %p91, %p92
      %p95 = scmp.ne.s32.totalorder %s80, %s94
      %p96 = scmp.eq.s32.totalorder %s28, 0
      %p97 = por %p95, %p96
      %s99 = sadd.s32 %s98, 1
      %p102 = scmp.eq.s32.totalorder %s22, 3
      %p103 = scmp.ne.s32.totalorder %s98, %s100
      %p104 = scmp.eq.s32.totalorder %s22, 0
      %p105 = por %p103, %p104
      %p106 = scmp.ne.s32.totalorder %s98, %s100
      %p107 = scmp.eq.s32.totalorder %s27, 3
      %p108 = por %p106, %p107
      %p109 = scmp.ne.s32.totalorder %s100, %s101
      %p110 = scmp.eq.s32.totalorder %s27, 0
      %p111 = por %p109, %p110
      %p112 = scmp.ne.s32.totalorder %s100, %s101
      %p113 = scmp.eq.s32.totalorder %s28, 3
      %p114 = por %p112, %p113
      %p116 = scmp.ne.s32.totalorder %s101, %s115
      %p117 = scmp.eq.s32.totalorder %s28, 0
      %p118 = por %p116, %p117
      %s120 = sadd.s32 %s119, 1
      %p123 = scmp.eq.s32.totalorder %s22, 3
      %p124 = scmp.ne.s32.totalorder %s119, %s121
      %p125 = scmp.eq.s32.totalorder %s22, 0
      %p126 = por %p124, %p125
      %p127 = scmp.ne.s32.totalorder %s119, %s121
      %p128 = scmp.eq.s32.totalorder %s27, 3
      %p129 = por %p127, %p128
      %p130 = scmp.ne.s32.totalorder %s121, %s122
      %p131 = scmp.eq.s32.totalorder %s27, 0
      %p132 = por %p130, %p131
      %p133 = scmp.ne.s32.totalorder %s121, %s122
      %p134 = scmp.eq.s32.totalorder %s28, 3
      %p135 = por %p133, %p134
      %p137 = scmp.ne.s32.totalorder %s122, %s136
      %p138 = scmp.eq.s32.totalorder %s28, 0
      %p139 = por %p137, %p138
      %s141 = sadd.s32 %s140, 1
      %p144 = scmp.eq.s32.totalorder %s22, 3
      %p145 = scmp.ne.s32.totalorder %s140, %s142
      %p146 = scmp.eq.s32.totalorder %s22, 0
      %p147 = por %p145, %p146
      %p148 = scmp.ne.s32.totalorder %s140, %s142
      %p149 = scmp.eq.s32.totalorder %s27, 3
      %p150 = por %p148, %p149
      %p151 = scmp.ne.s32.totalorder %s142, %s143
      %p152 = scmp.eq.s32.totalorder %s27, 0
      %p153 = por %p151, %p152
      %p154 = scmp.ne.s32.totalorder %s142, %s143
      %p155 = scmp.eq.s32.totalorder %s28, 3
      %p156 = por %p154, %p155
      %p158 = scmp.ne.s32.totalorder %s143, %s157
      %p159 = scmp.eq.s32.totalorder %s28, 0
      %p160 = por %p158, %p159
      %s162 = sadd.s32 %s161, 1
      %p165 = scmp.eq.s32.totalorder %s22, 3
      %p166 = scmp.ne.s32.totalorder %s161, %s163
      %p167 = scmp.eq.s32.totalorder %s22, 0
      %p168 = por %p166, %p167
      %p169 = scmp.ne.s32.totalorder %s161, %s163
      %p170 = scmp.eq.s32.totalorder %s27, 3
      %p171 = por %p169, %p170
      %p172 = scmp.ne.s32.totalorder %s163, %s164
      %p173 = scmp.eq.s32.totalorder %s27, 0
      %p174 = por %p172, %p173
      %p175 = scmp.ne.s32.totalorder %s163, %s164
      %p176 = scmp.eq.s32.totalorder %s28, 3
      %p177 = por %p175, %p176
      %p179 = scmp.ne.s32.totalorder %s164, %s178
      %p180 = scmp.eq.s32.totalorder %s28, 0
      %p181 = por %p179, %p180
      %s183 = sadd.s32 %s182, 1
      %p186 = scmp.eq.s32.totalorder %s22, 3
      %p187 = scmp.ne.s32.totalorder %s182, %s184
      %p188 = scmp.eq.s32.totalorder %s22, 0
      %p189 = por %p187, %p188
      %p190 = scmp.ne.s32.totalorder %s182, %s184
      %p191 = scmp.eq.s32.totalorder %s27, 3
      %p192 = por %p190, %p191
      %p193 = scmp.ne.s32.totalorder %s184, %s185
      %p194 = scmp.eq.s32.totalorder %s27, 0
      %p195 = por %p193, %p194
      %p196 = scmp.ne.s32.totalorder %s184, %s185
      %p197 = scmp.eq.s32.totalorder %s28, 3
      %p198 = por %p196, %p197
      %p200 = scmp.ne.s32.totalorder %s185, %s199
      %p201 = scmp.eq.s32.totalorder %s28, 0
      %p202 = por %p200, %p201
      %s203 = ssub.s32 %s22, %s29
      %p204 = scmp.eq.s32.totalorder %s203, 0
      %s206 = sadd.s32 %s205, 1
      %s207 = scalar_select %p204, %s205, %s206
      %p210 = pneg %p204
      %p211 = scmp.eq.s32.totalorder %s22, 3
      %p212 = por %p210, %p211
      %p213 = scmp.ne.s32.totalorder %s205, %s208
      %p214 = scmp.eq.s32.totalorder %s22, 0
      %p215 = por %p213, %p214
      %p216 = scmp.ne.s32.totalorder %s205, %s208
      %p217 = scmp.eq.s32.totalorder %s27, 3
      %p218 = por %p216, %p217
      %p219 = scmp.ne.s32.totalorder %s208, %s209
      %p220 = scmp.eq.s32.totalorder %s27, 0
      %p221 = por %p219, %p220
      %p222 = scmp.ne.s32.totalorder %s208, %s209
      %p223 = scmp.eq.s32.totalorder %s28, 3
      %p224 = por %p222, %p223
      %p226 = scmp.ne.s32.totalorder %s209, %s225
      %p227 = scmp.eq.s32.totalorder %s28, 0
      %p228 = por %p226, %p227
      %p229 = scmp.le.s32.totalorder 1, %s22
      %p230 = scmp.lt.s32.totalorder %s22, 5
      %p231 = pnand %p229, %p230
      %p232 = pneg %p231
      // Predicated region
      $region9: #{tpu_custom_call.1} parent=5 // pred_check
        _
      $region10: #{tpu_custom_call.1} parent=5 // pred_check_branch
        %234 = sbr.rel (%p231) target = $region12
      $region11: #{tpu_custom_call.1} parent=5 // pred_region
        %s235 = ssub.s32 %s22, 1
        // Predicated region
        $region13: #{tpu_custom_call.1} parent=11 // pred_check
          %p236 = pneg %p69
        $region14: #{tpu_custom_call.1} parent=11 // pred_check_branch
          %238 = sbr.rel (%p236) target = $region16
        $region15: #{tpu_custom_call.1} parent=11 // pred_region
          %240 = vsyncadd [#allocation6], 0
          %s241 = sshll.u32 %s1, 4
          %s242 = int_to_ptr.hbm [resolvable:$true] %s241
          %s243 = sshll.u32 [#allocation5], 4
          %s244 = int_to_ptr.vmem [resolvable:$true] %s243
          %249 = dma.hbm_to_vmem [thread:$0]  %s242, 8192, %s244, [#allocation6], 512, 512, 32
        $region16: #{tpu_custom_call.1} parent=11 // pred_fallthru
          _
        // Predicated region
        $region17: #{tpu_custom_call.1} parent=11 // pred_check
          %p250 = pneg %p90
        $region18: #{tpu_custom_call.1} parent=11 // pred_check_branch
          %252 = sbr.rel (%p250) target = $region20
        $region19: #{tpu_custom_call.1} parent=11 // pred_region
          %254 = vsyncadd [#allocation6], 0
          %s256 = sshll.u32 %s2, 4
          %s257 = int_to_ptr.hbm [resolvable:$true] %s256
          %s258 = sshll.u32 [#allocation7], 4
          %s259 = int_to_ptr.vmem [resolvable:$true] %s258
          %261 = dma.hbm_to_vmem [thread:$0]  %s257, 64, %s259, [#allocation6]
        $region20: #{tpu_custom_call.1} parent=11 // pred_fallthru
          _
        // Predicated region
        $region21: #{tpu_custom_call.1} parent=11 // pred_check
          %p262 = pneg %p111
        $region22: #{tpu_custom_call.1} parent=11 // pred_check_branch
          %264 = sbr.rel (%p262) target = $region24
        $region23: #{tpu_custom_call.1} parent=11 // pred_region
          _
        $region24: #{tpu_custom_call.1} parent=11 // pred_fallthru
          _
        // Predicated region
        $region25: #{tpu_custom_call.1} parent=11 // pred_check
          %p265 = pneg %p132
        $region26: #{tpu_custom_call.1} parent=11 // pred_check_branch
          %267 = sbr.rel (%p265) target = $region28
        $region27: #{tpu_custom_call.1} parent=11 // pred_region
          %269 = vsyncadd [#allocation9], 0
          %s270 = sshll.u32 %s4, 4
          %s271 = int_to_ptr.hbm [resolvable:$true] %s270
          %s272 = sshll.u32 [#allocation8], 4
          %s273 = int_to_ptr.vmem [resolvable:$true] %s272
          %278 = dma.hbm_to_vmem [thread:$0]  %s271, 8192, %s273, [#allocation9], 256, 256, 16
        $region28: #{tpu_custom_call.1} parent=11 // pred_fallthru
          _
        // Predicated region
        $region29: #{tpu_custom_call.1} parent=11 // pred_check
          %p279 = pneg %p153
        $region30: #{tpu_custom_call.1} parent=11 // pred_check_branch
          %281 = sbr.rel (%p279) target = $region32
        $region31: #{tpu_custom_call.1} parent=11 // pred_region
          _
        $region32: #{tpu_custom_call.1} parent=11 // pred_fallthru
          _
        // Predicated region
        $region33: #{tpu_custom_call.1} parent=11 // pred_check
          %p282 = pneg %p174
        $region34: #{tpu_custom_call.1} parent=11 // pred_check_branch
          %284 = sbr.rel (%p282) target = $region36
        $region35: #{tpu_custom_call.1} parent=11 // pred_region
          %286 = vsyncadd [#allocation9], 0
          %s287 = sshll.u32 %s6, 4
          %s288 = int_to_ptr.hbm [resolvable:$true] %s287
          %s289 = sshll.u32 [#allocation10], 4
          %s290 = int_to_ptr.vmem [resolvable:$true] %s289
          %295 = dma.hbm_to_vmem [thread:$0]  %s288, 4096, %s290, [#allocation9], 128, 128, 8
        $region36: #{tpu_custom_call.1} parent=11 // pred_fallthru
          _
        // Predicated region
        $region37: #{tpu_custom_call.1} parent=11 // pred_check
          %p296 = pneg %p195
        $region38: #{tpu_custom_call.1} parent=11 // pred_check_branch
          %298 = sbr.rel (%p296) target = $region40
        $region39: #{tpu_custom_call.1} parent=11 // pred_region
          _
        $region40: #{tpu_custom_call.1} parent=11 // pred_fallthru
          _
      $region12: #{tpu_custom_call.1} parent=5 // pred_fallthru
        _
      %p299 = scmp.lt.s32.totalorder %s22, 4
      // Predicated region
      $region41: #{tpu_custom_call.1} parent=5 // pred_check
        %p300 = pneg %p299
      $region42: #{tpu_custom_call.1} parent=5 // pred_check_branch
        %302 = sbr.rel (%p300) target = $region44
      $region43: #{tpu_custom_call.1} parent=5 // pred_region
        // Predicated region
        $region45: #{tpu_custom_call.1} parent=43 // pred_check
          %p303 = pneg %p42
        $region46: #{tpu_custom_call.1} parent=43 // pred_check_branch
          %305 = sbr.rel (%p303) target = $region48
        $region47: #{tpu_custom_call.1} parent=43 // pred_region
          %s306 = sand.u32 %s32, 1
          %s307 = scalar_lea.sflag [#allocation3], %s306
          %s308 = sand.u32 %s32, 1
          %s309 = smul.addr %s308, 128
          %s310 = scalar_lea.vmem [#allocation2], %s309
          %s311 = smul.u32 2, %s22
          %313 = vsyncadd %s307, 0
          %s314 = smul.addr %s311, 8
          %s315 = smul.addr %s314, 8
          %s316 = scalar_lea.hbm %s0, %s315
          %s317 = sshll.u32 %s316, 4
          %s318 = int_to_ptr.hbm [resolvable:$true] %s317
          %s319 = sshll.u32 %s310, 4
          %s320 = int_to_ptr.vmem [resolvable:$true] %s319
          %325 = dma.hbm_to_vmem [thread:$0]  %s318, 2048, %s320, %s307, 128, 128, 8
        $region48: #{tpu_custom_call.1} parent=43 // pred_fallthru
          _
      $region44: #{tpu_custom_call.1} parent=5 // pred_fallthru
        _
      %p326 = scmp.le.s32.totalorder 1, %s22
      %p327 = scmp.lt.s32.totalorder %s22, 5
      %p328 = pnand %p326, %p327
      %p329 = pneg %p328
      // Predicated region
      $region49: #{tpu_custom_call.1} parent=5 // pred_check
        _
      $region50: #{tpu_custom_call.1} parent=5 // pred_check_branch
        %331 = sbr.rel (%p328) target = $region52
      $region51: #{tpu_custom_call.1} parent=5 // pred_region
        %s332 = ssub.s32 %s22, 1
        %s333 = sand.u32 %s35, 1
        %s334 = scalar_lea.sflag [#allocation3], %s333
        %s335 = sand.u32 %s35, 1
        %s336 = smul.addr %s335, 128
        %s337 = scalar_lea.vmem [#allocation2], %s336
        // Predicated region
        $region53: #{tpu_custom_call.1} parent=51 // pred_check
          %p338 = pneg %p48
        $region54: #{tpu_custom_call.1} parent=51 // pred_check_branch
          %340 = sbr.rel (%p338) target = $region56
        $region55: #{tpu_custom_call.1} parent=51 // pred_region
          %342 = dma.done %s334, 2048
        $region56: #{tpu_custom_call.1} parent=51 // pred_fallthru
          _
        // Predicated region
        $region57: #{tpu_custom_call.1} parent=51 // pred_check
          %p343 = pneg %p69
        $region58: #{tpu_custom_call.1} parent=51 // pred_check_branch
          %345 = sbr.rel (%p343) target = $region60
        $region59: #{tpu_custom_call.1} parent=51 // pred_region
          %347 = dma.done [#allocation6], 8192
        $region60: #{tpu_custom_call.1} parent=51 // pred_fallthru
          _
        // Predicated region
        $region61: #{tpu_custom_call.1} parent=51 // pred_check
          %p348 = pneg %p90
        $region62: #{tpu_custom_call.1} parent=51 // pred_check_branch
          %350 = sbr.rel (%p348) target = $region64
        $region63: #{tpu_custom_call.1} parent=51 // pred_region
          %352 = dma.done [#allocation6], 64
        $region64: #{tpu_custom_call.1} parent=51 // pred_fallthru
          _
        // Predicated region
        $region65: #{tpu_custom_call.1} parent=51 // pred_check
          %p353 = pneg %p132
        $region66: #{tpu_custom_call.1} parent=51 // pred_check_branch
          %355 = sbr.rel (%p353) target = $region68
        $region67: #{tpu_custom_call.1} parent=51 // pred_region
          %357 = dma.done [#allocation9], 8192
        $region68: #{tpu_custom_call.1} parent=51 // pred_fallthru
          _
        // Predicated region
        $region69: #{tpu_custom_call.1} parent=51 // pred_check
          %p358 = pneg %p174
        $region70: #{tpu_custom_call.1} parent=51 // pred_check_branch
          %360 = sbr.rel (%p358) target = $region72
        $region71: #{tpu_custom_call.1} parent=51 // pred_region
          %362 = dma.done [#allocation9], 4096
        $region72: #{tpu_custom_call.1} parent=51 // pred_fallthru
          _
        %s363 = sand.u32 %s35, 1
        %s364 = scalar_lea.sflag [#allocation3], %s363
        %s365 = sand.u32 %s35, 1
        %s366 = smul.addr %s365, 128
        %s367 = scalar_lea.vmem [#allocation2], %s366
        %p368 = pneg %p48
        %p369 = pneg %p45
        %p370 = pneg %p69
        %p371 = pneg %p66
        %p372 = pneg %p90
        %p373 = pneg %p87
        %p374 = pneg %p111
        %p375 = pneg %p108
        %p376 = pneg %p132
        %p377 = pneg %p129
        %p378 = pneg %p153
        %p379 = pneg %p150
        %p380 = pneg %p174
        %p381 = pneg %p171
        %p382 = pneg %p195
        %p383 = pneg %p192
        %p384 = pneg %p221
        %p385 = pneg %p218
        %s386 = sand.u32 %s208, 1
        %s387 = scalar_lea.sflag [#allocation4], %s386
        %s388 = sand.u32 %s208, 1
        %s389 = smul.addr %s388, 128
        %s390 = scalar_lea.vmem [#allocation11], %s389
        %s391 = smul.u32 2, %s27
        %s392 = smul.u32 2, %s27
        %v393 = vld [vmem:[%s337] sm:$0xff]
        %v394 = vld [vmem:[%s337 + $0x8] sm:$0xff]
        %v395 = vld [vmem:[%s337 + $0x10] sm:$0xff]
        %v396 = vld [vmem:[%s337 + $0x18] sm:$0xff]
        %v397 = vld [vmem:[%s337 + $0x20] sm:$0xff]
        %v398 = vld [vmem:[%s337 + $0x28] sm:$0xff]
        %v399 = vld [vmem:[%s337 + $0x30] sm:$0xff]
        %v400 = vld [vmem:[%s337 + $0x38] sm:$0xff]
        %v401 = vld [vmem:[%s337 + $0x40] sm:$0xff]
        %v402 = vld [vmem:[%s337 + $0x48] sm:$0xff]
        %v403 = vld [vmem:[%s337 + $0x50] sm:$0xff]
        %v404 = vld [vmem:[%s337 + $0x58] sm:$0xff]
        %v405 = vld [vmem:[%s337 + $0x60] sm:$0xff]
        %v406 = vld [vmem:[%s337 + $0x68] sm:$0xff]
        %v407 = vld [vmem:[%s337 + $0x70] sm:$0xff]
        %v408 = vld [vmem:[%s337 + $0x78] sm:$0xff]
        %v409 = vld [vmem:[#allocation5] sm:$0xff]
        %v410 = vld [vmem:[#allocation5 + $0x8] sm:$0xff]
        %v411 = vld [vmem:[#allocation5 + $0x10] sm:$0xff]
        %v412 = vld [vmem:[#allocation5 + $0x18] sm:$0xff]
        %v413 = vld [vmem:[#allocation5 + $0x20] sm:$0xff]
        %v414 = vld [vmem:[#allocation5 + $0x28] sm:$0xff]
        %v415 = vld [vmem:[#allocation5 + $0x30] sm:$0xff]
        %v416 = vld [vmem:[#allocation5 + $0x38] sm:$0xff]
        %v417 = vld [vmem:[#allocation5 + $0x40] sm:$0xff]
        %v418 = vld [vmem:[#allocation5 + $0x48] sm:$0xff]
        %v419 = vld [vmem:[#allocation5 + $0x50] sm:$0xff]
        %v420 = vld [vmem:[#allocation5 + $0x58] sm:$0xff]
        %v421 = vld [vmem:[#allocation5 + $0x60] sm:$0xff]
        %v422 = vld [vmem:[#allocation5 + $0x68] sm:$0xff]
        %v423 = vld [vmem:[#allocation5 + $0x70] sm:$0xff]
        %v424 = vld [vmem:[#allocation5 + $0x78] sm:$0xff]
        %v425 = vld [vmem:[#allocation5 + $0x80] sm:$0xff]
        %v426 = vld [vmem:[#allocation5 + $0x88] sm:$0xff]
        %v427 = vld [vmem:[#allocation5 + $0x90] sm:$0xff]
        %v428 = vld [vmem:[#allocation5 + $0x98] sm:$0xff]
        %v429 = vld [vmem:[#allocation5 + $0xa0] sm:$0xff]
        %v430 = vld [vmem:[#allocation5 + $0xa8] sm:$0xff]
        %v431 = vld [vmem:[#allocation5 + $0xb0] sm:$0xff]
        %v432 = vld [vmem:[#allocation5 + $0xb8] sm:$0xff]
        %v433 = vld [vmem:[#allocation5 + $0xc0] sm:$0xff]
        %v434 = vld [vmem:[#allocation5 + $0xc8] sm:$0xff]
        %v435 = vld [vmem:[#allocation5 + $0xd0] sm:$0xff]
        %v436 = vld [vmem:[#allocation5 + $0xd8] sm:$0xff]
        %v437 = vld [vmem:[#allocation5 + $0xe0] sm:$0xff]
        %v438 = vld [vmem:[#allocation5 + $0xe8] sm:$0xff]
        %v439 = vld [vmem:[#allocation5 + $0xf0] sm:$0xff]
        %v440 = vld [vmem:[#allocation5 + $0xf8] sm:$0xff]
        %v441 = vld [vmem:[#allocation5 + $0x100] sm:$0xff]
        %v442 = vld [vmem:[#allocation5 + $0x108] sm:$0xff]
        %v443 = vld [vmem:[#allocation5 + $0x110] sm:$0xff]
        %v444 = vld [vmem:[#allocation5 + $0x118] sm:$0xff]
        %v445 = vld [vmem:[#allocation5 + $0x120] sm:$0xff]
        %v446 = vld [vmem:[#allocation5 + $0x128] sm:$0xff]
        %v447 = vld [vmem:[#allocation5 + $0x130] sm:$0xff]
        %v448 = vld [vmem:[#allocation5 + $0x138] sm:$0xff]
        %v449 = vld [vmem:[#allocation5 + $0x140] sm:$0xff]
        %v450 = vld [vmem:[#allocation5 + $0x148] sm:$0xff]
        %v451 = vld [vmem:[#allocation5 + $0x150] sm:$0xff]
        %v452 = vld [vmem:[#allocation5 + $0x158] sm:$0xff]
        %v453 = vld [vmem:[#allocation5 + $0x160] sm:$0xff]
        %v454 = vld [vmem:[#allocation5 + $0x168] sm:$0xff]
        %v455 = vld [vmem:[#allocation5 + $0x170] sm:$0xff]
        %v456 = vld [vmem:[#allocation5 + $0x178] sm:$0xff]
        %v457 = vld [vmem:[#allocation5 + $0x180] sm:$0xff]
        %v458 = vld [vmem:[#allocation5 + $0x188] sm:$0xff]
        %v459 = vld [vmem:[#allocation5 + $0x190] sm:$0xff]
        %v460 = vld [vmem:[#allocation5 + $0x198] sm:$0xff]
        %v461 = vld [vmem:[#allocation5 + $0x1a0] sm:$0xff]
        %v462 = vld [vmem:[#allocation5 + $0x1a8] sm:$0xff]
        %v463 = vld [vmem:[#allocation5 + $0x1b0] sm:$0xff]
        %v464 = vld [vmem:[#allocation5 + $0x1b8] sm:$0xff]
        %v465 = vld [vmem:[#allocation5 + $0x1c0] sm:$0xff]
        %v466 = vld [vmem:[#allocation5 + $0x1c8] sm:$0xff]
        %v467 = vld [vmem:[#allocation5 + $0x1d0] sm:$0xff]
        %v468 = vld [vmem:[#allocation5 + $0x1d8] sm:$0xff]
        %v469 = vld [vmem:[#allocation5 + $0x1e0] sm:$0xff]
        %v470 = vld [vmem:[#allocation5 + $0x1e8] sm:$0xff]
        %v471 = vld [vmem:[#allocation5 + $0x1f0] sm:$0xff]
        %v472 = vld [vmem:[#allocation5 + $0x1f8] sm:$0xff]
        %v473 = vld [vmem:[#allocation7] sm:$0xf]
        %v475 = vperm.slane %v473, 0
        %v476 = vperm.slane %v473, 1
        %v477 = vperm.slane %v473, 2
        %v478 = vperm.slane %v473, 3
        %483 = vmatpush.msra.mxu0 %v469
        %484 = vmatpush.msra.mxu0 %v465
        %485 = vmatpush.msra.mxu0 %v461
        %486 = vmatpush.msra.mxu0 %v457
        %487 = vmatpush.msra.mxu0 %v453
        %488 = vmatpush.msra.mxu0 %v449
        %489 = vmatpush.msra.mxu0 %v445
        %490 = vmatpush.msra.mxu0 %v441
        %491 = vmatpush.msra.mxu0 %v437
        %492 = vmatpush.msra.mxu0 %v433
        %493 = vmatpush.msra.mxu0 %v429
        %494 = vmatpush.msra.mxu0 %v425
        %495 = vmatpush.msra.mxu0 %v421
        %496 = vmatpush.msra.mxu0 %v417
        %497 = vmatpush.msra.mxu0 %v413
        %498 = vmatpush.msra.mxu0 %v409
        %499 = vmatmul.f32.gmra.mxu0 %v393
        %v500 = vpop.f32.mrf.mxu0
        %v501 = vadd.f32 %v475, %v500
        %502 = vmatmul.f32.gmra.mxu0 %v394
        %v503 = vpop.f32.mrf.mxu0
        %v504 = vadd.f32 %v475, %v503
        %505 = vmatmul.f32.gmra.mxu0 %v395
        %v506 = vpop.f32.mrf.mxu0
        %v507 = vadd.f32 %v475, %v506
        %508 = vmatmul.f32.gmra.mxu0 %v396
        %v509 = vpop.f32.mrf.mxu0
        %v510 = vadd.f32 %v475, %v509
        %511 = vmatmul.f32.gmra.mxu0 %v397
        %v512 = vpop.f32.mrf.mxu0
        %v513 = vadd.f32 %v475, %v512
        %514 = vmatmul.f32.gmra.mxu0 %v398
        %v515 = vpop.f32.mrf.mxu0
        %v516 = vadd.f32 %v475, %v515
        %517 = vmatmul.f32.gmra.mxu0 %v399
        %v518 = vpop.f32.mrf.mxu0
        %v519 = vadd.f32 %v475, %v518
        %520 = vmatmul.f32.gmra.mxu0 %v400
        %v521 = vpop.f32.mrf.mxu0
        %v522 = vadd.f32 %v475, %v521
        %523 = vmatmul.f32.gmra.mxu0 %v401
        %v524 = vpop.f32.mrf.mxu0
        %v525 = vadd.f32 %v475, %v524
        %526 = vmatmul.f32.gmra.mxu0 %v402
        %v527 = vpop.f32.mrf.mxu0
        %v528 = vadd.f32 %v475, %v527
        %529 = vmatmul.f32.gmra.mxu0 %v403
        %v530 = vpop.f32.mrf.mxu0
        %v531 = vadd.f32 %v475, %v530
        %532 = vmatmul.f32.gmra.mxu0 %v404
        %v533 = vpop.f32.mrf.mxu0
        %v534 = vadd.f32 %v475, %v533
        %535 = vmatmul.f32.gmra.mxu0 %v405
        %v536 = vpop.f32.mrf.mxu0
        %v537 = vadd.f32 %v475, %v536
        %538 = vmatmul.f32.gmra.mxu0 %v406
        %v539 = vpop.f32.mrf.mxu0
        %v540 = vadd.f32 %v475, %v539
        %541 = vmatmul.f32.gmra.mxu0 %v407
        %v542 = vpop.f32.mrf.mxu0
        %v543 = vadd.f32 %v475, %v542
        %544 = vmatmul.f32.gmra.mxu0 %v408
        %v545 = vpop.f32.mrf.mxu0
        %v546 = vadd.f32 %v475, %v545
        %547 = vdwg.mxu0
        %548 = vmatpush.msra.mxu0 %v470
        %549 = vmatpush.msra.mxu0 %v466
        %550 = vmatpush.msra.mxu0 %v462
        %551 = vmatpush.msra.mxu0 %v458
        %552 = vmatpush.msra.mxu0 %v454
        %553 = vmatpush.msra.mxu0 %v450
        %554 = vmatpush.msra.mxu0 %v446
        %555 = vmatpush.msra.mxu0 %v442
        %556 = vmatpush.msra.mxu0 %v438
        %557 = vmatpush.msra.mxu0 %v434
        %558 = vmatpush.msra.mxu0 %v430
        %559 = vmatpush.msra.mxu0 %v426
        %560 = vmatpush.msra.mxu0 %v422
        %561 = vmatpush.msra.mxu0 %v418
        %562 = vmatpush.msra.mxu0 %v414
        %563 = vmatpush.msra.mxu0 %v410
        %564 = vmatmul.f32.gmra.mxu0 %v393
        %v565 = vpop.f32.mrf.mxu0
        %v566 = vadd.f32 %v476, %v565
        %567 = vmatmul.f32.gmra.mxu0 %v394
        %v568 = vpop.f32.mrf.mxu0
        %v569 = vadd.f32 %v476, %v568
        %570 = vmatmul.f32.gmra.mxu0 %v395
        %v571 = vpop.f32.mrf.mxu0
        %v572 = vadd.f32 %v476, %v571
        %573 = vmatmul.f32.gmra.mxu0 %v396
        %v574 = vpop.f32.mrf.mxu0
        %v575 = vadd.f32 %v476, %v574
        %576 = vmatmul.f32.gmra.mxu0 %v397
        %v577 = vpop.f32.mrf.mxu0
        %v578 = vadd.f32 %v476, %v577
        %579 = vmatmul.f32.gmra.mxu0 %v398
        %v580 = vpop.f32.mrf.mxu0
        %v581 = vadd.f32 %v476, %v580
        %582 = vmatmul.f32.gmra.mxu0 %v399
        %v583 = vpop.f32.mrf.mxu0
        %v584 = vadd.f32 %v476, %v583
        %585 = vmatmul.f32.gmra.mxu0 %v400
        %v586 = vpop.f32.mrf.mxu0
        %v587 = vadd.f32 %v476, %v586
        %588 = vmatmul.f32.gmra.mxu0 %v401
        %v589 = vpop.f32.mrf.mxu0
        %v590 = vadd.f32 %v476, %v589
        %591 = vmatmul.f32.gmra.mxu0 %v402
        %v592 = vpop.f32.mrf.mxu0
        %v593 = vadd.f32 %v476, %v592
        %594 = vmatmul.f32.gmra.mxu0 %v403
        %v595 = vpop.f32.mrf.mxu0
        %v596 = vadd.f32 %v476, %v595
        %597 = vmatmul.f32.gmra.mxu0 %v404
        %v598 = vpop.f32.mrf.mxu0
        %v599 = vadd.f32 %v476, %v598
        %600 = vmatmul.f32.gmra.mxu0 %v405
        %v601 = vpop.f32.mrf.mxu0
        %v602 = vadd.f32 %v476, %v601
        %603 = vmatmul.f32.gmra.mxu0 %v406
        %v604 = vpop.f32.mrf.mxu0
        %v605 = vadd.f32 %v476, %v604
        %606 = vmatmul.f32.gmra.mxu0 %v407
        %v607 = vpop.f32.mrf.mxu0
        %v608 = vadd.f32 %v476, %v607
        %609 = vmatmul.f32.gmra.mxu0 %v408
        %v610 = vpop.f32.mrf.mxu0
        %v611 = vadd.f32 %v476, %v610
        %612 = vdwg.mxu0
        %613 = vmatpush.msra.mxu0 %v471
        %614 = vmatpush.msra.mxu0 %v467
        %615 = vmatpush.msra.mxu0 %v463
        %616 = vmatpush.msra.mxu0 %v459
        %617 = vmatpush.msra.mxu0 %v455
        %618 = vmatpush.msra.mxu0 %v451
        %619 = vmatpush.msra.mxu0 %v447
        %620 = vmatpush.msra.mxu0 %v443
        %621 = vmatpush.msra.mxu0 %v439
        %622 = vmatpush.msra.mxu0 %v435
        %623 = vmatpush.msra.mxu0 %v431
        %624 = vmatpush.msra.mxu0 %v427
        %625 = vmatpush.msra.mxu0 %v423
        %626 = vmatpush.msra.mxu0 %v419
        %627 = vmatpush.msra.mxu0 %v415
        %628 = vmatpush.msra.mxu0 %v411
        %629 = vmatmul.f32.gmra.mxu0 %v393
        %v630 = vpop.f32.mrf.mxu0
        %v631 = vadd.f32 %v477, %v630
        %632 = vmatmul.f32.gmra.mxu0 %v394
        %v633 = vpop.f32.mrf.mxu0
        %v634 = vadd.f32 %v477, %v633
        %635 = vmatmul.f32.gmra.mxu0 %v395
        %v636 = vpop.f32.mrf.mxu0
        %v637 = vadd.f32 %v477, %v636
        %638 = vmatmul.f32.gmra.mxu0 %v396
        %v639 = vpop.f32.mrf.mxu0
        %v640 = vadd.f32 %v477, %v639
        %641 = vmatmul.f32.gmra.mxu0 %v397
        %v642 = vpop.f32.mrf.mxu0
        %v643 = vadd.f32 %v477, %v642
        %644 = vmatmul.f32.gmra.mxu0 %v398
        %v645 = vpop.f32.mrf.mxu0
        %v646 = vadd.f32 %v477, %v645
        %647 = vmatmul.f32.gmra.mxu0 %v399
        %v648 = vpop.f32.mrf.mxu0
        %v649 = vadd.f32 %v477, %v648
        %650 = vmatmul.f32.gmra.mxu0 %v400
        %v651 = vpop.f32.mrf.mxu0
        %v652 = vadd.f32 %v477, %v651
        %653 = vmatmul.f32.gmra.mxu0 %v401
        %v654 = vpop.f32.mrf.mxu0
        %v655 = vadd.f32 %v477, %v654
        %656 = vmatmul.f32.gmra.mxu0 %v402
        %v657 = vpop.f32.mrf.mxu0
        %v658 = vadd.f32 %v477, %v657
        %659 = vmatmul.f32.gmra.mxu0 %v403
        %v660 = vpop.f32.mrf.mxu0
        %v661 = vadd.f32 %v477, %v660
        %662 = vmatmul.f32.gmra.mxu0 %v404
        %v663 = vpop.f32.mrf.mxu0
        %v664 = vadd.f32 %v477, %v663
        %665 = vmatmul.f32.gmra.mxu0 %v405
        %v666 = vpop.f32.mrf.mxu0
        %v667 = vadd.f32 %v477, %v666
        %668 = vmatmul.f32.gmra.mxu0 %v406
        %v669 = vpop.f32.mrf.mxu0
        %v670 = vadd.f32 %v477, %v669
        %671 = vmatmul.f32.gmra.mxu0 %v407
        %v672 = vpop.f32.mrf.mxu0
        %v673 = vadd.f32 %v477, %v672
        %674 = vmatmul.f32.gmra.mxu0 %v408
        %v675 = vpop.f32.mrf.mxu0
        %v676 = vadd.f32 %v477, %v675
        %677 = vdwg.mxu0
        %678 = vmatpush.msra.mxu0 %v472
        %679 = vmatpush.msra.mxu0 %v468
        %680 = vmatpush.msra.mxu0 %v464
        %681 = vmatpush.msra.mxu0 %v460
        %682 = vmatpush.msra.mxu0 %v456
        %683 = vmatpush.msra.mxu0 %v452
        %684 = vmatpush.msra.mxu0 %v448
        %685 = vmatpush.msra.mxu0 %v444
        %686 = vmatpush.msra.mxu0 %v440
        %687 = vmatpush.msra.mxu0 %v436
        %688 = vmatpush.msra.mxu0 %v432
        %689 = vmatpush.msra.mxu0 %v428
        %690 = vmatpush.msra.mxu0 %v424
        %691 = vmatpush.msra.mxu0 %v420
        %692 = vmatpush.msra.mxu0 %v416
        %693 = vmatpush.msra.mxu0 %v412
        %694 = vmatmul.f32.gmra.mxu0 %v393
        %v695 = vpop.f32.mrf.mxu0
        %v696 = vadd.f32 %v478, %v695
        %697 = vmatmul.f32.gmra.mxu0 %v394
        %v698 = vpop.f32.mrf.mxu0
        %v699 = vadd.f32 %v478, %v698
        %700 = vmatmul.f32.gmra.mxu0 %v395
        %v701 = vpop.f32.mrf.mxu0
        %v702 = vadd.f32 %v478, %v701
        %703 = vmatmul.f32.gmra.mxu0 %v396
        %v704 = vpop.f32.mrf.mxu0
        %v705 = vadd.f32 %v478, %v704
        %706 = vmatmul.f32.gmra.mxu0 %v397
        %v707 = vpop.f32.mrf.mxu0
        %v708 = vadd.f32 %v478, %v707
        %709 = vmatmul.f32.gmra.mxu0 %v398
        %v710 = vpop.f32.mrf.mxu0
        %v711 = vadd.f32 %v478, %v710
        %712 = vmatmul.f32.gmra.mxu0 %v399
        %v713 = vpop.f32.mrf.mxu0
        %v714 = vadd.f32 %v478, %v713
        %715 = vmatmul.f32.gmra.mxu0 %v400
        %v716 = vpop.f32.mrf.mxu0
        %v717 = vadd.f32 %v478, %v716
        %718 = vmatmul.f32.gmra.mxu0 %v401
        %v719 = vpop.f32.mrf.mxu0
        %v720 = vadd.f32 %v478, %v719
        %721 = vmatmul.f32.gmra.mxu0 %v402
        %v722 = vpop.f32.mrf.mxu0
        %v723 = vadd.f32 %v478, %v722
        %724 = vmatmul.f32.gmra.mxu0 %v403
        %v725 = vpop.f32.mrf.mxu0
        %v726 = vadd.f32 %v478, %v725
        %727 = vmatmul.f32.gmra.mxu0 %v404
        %v728 = vpop.f32.mrf.mxu0
        %v729 = vadd.f32 %v478, %v728
        %730 = vmatmul.f32.gmra.mxu0 %v405
        %v731 = vpop.f32.mrf.mxu0
        %v732 = vadd.f32 %v478, %v731
        %733 = vmatmul.f32.gmra.mxu0 %v406
        %v734 = vpop.f32.mrf.mxu0
        %v735 = vadd.f32 %v478, %v734
        %736 = vmatmul.f32.gmra.mxu0 %v407
        %v737 = vpop.f32.mrf.mxu0
        %v738 = vadd.f32 %v478, %v737
        %739 = vmatmul.f32.gmra.mxu0 %v408
        %v740 = vpop.f32.mrf.mxu0
        %v741 = vadd.f32 %v478, %v740
        %742 = vdwg.mxu0
        %v743 = vmul.f32 %v501, %v501
        %v744 = vmul.f32 %v566, %v566
        %v745 = vmul.f32 %v504, %v504
        %v746 = vmul.f32 %v569, %v569
        %v747 = vmul.f32 %v507, %v507
        %v748 = vmul.f32 %v572, %v572
        %v749 = vmul.f32 %v510, %v510
        %v750 = vmul.f32 %v575, %v575
        %v751 = vmul.f32 %v513, %v513
        %v752 = vmul.f32 %v578, %v578
        %v753 = vmul.f32 %v516, %v516
        %v754 = vmul.f32 %v581, %v581
        %v755 = vmul.f32 %v519, %v519
        %v756 = vmul.f32 %v584, %v584
        %v757 = vmul.f32 %v522, %v522
        %v758 = vmul.f32 %v587, %v587
        %v759 = vmul.f32 %v525, %v525
        %v760 = vmul.f32 %v590, %v590
        %v761 = vmul.f32 %v528, %v528
        %v762 = vmul.f32 %v593, %v593
        %v763 = vmul.f32 %v531, %v531
        %v764 = vmul.f32 %v596, %v596
        %v765 = vmul.f32 %v534, %v534
        %v766 = vmul.f32 %v599, %v599
        %v767 = vmul.f32 %v537, %v537
        %v768 = vmul.f32 %v602, %v602
        %v769 = vmul.f32 %v540, %v540
        %v770 = vmul.f32 %v605, %v605
        %v771 = vmul.f32 %v543, %v543
        %v772 = vmul.f32 %v608, %v608
        %v773 = vmul.f32 %v546, %v546
        %v774 = vmul.f32 %v611, %v611
        %v775 = vadd.f32 %v743, %v744
        %776 = vadd.xlane.f32.xlu0 %v775
        %v777 = vpop.xlane.xlu0 %776
        %v778 = vadd.f32 %v745, %v746
        %779 = vadd.xlane.f32.xlu0 %v778
        %v780 = vpop.xlane.xlu0 %779
        %v781 = vadd.f32 %v747, %v748
        %782 = vadd.xlane.f32.xlu0 %v781
        %v783 = vpop.xlane.xlu0 %782
        %v784 = vadd.f32 %v749, %v750
        %785 = vadd.xlane.f32.xlu0 %v784
        %v786 = vpop.xlane.xlu0 %785
        %v787 = vadd.f32 %v751, %v752
        %788 = vadd.xlane.f32.xlu0 %v787
        %v789 = vpop.xlane.xlu0 %788
        %v790 = vadd.f32 %v753, %v754
        %791 = vadd.xlane.f32.xlu0 %v790
        %v792 = vpop.xlane.xlu0 %791
        %v793 = vadd.f32 %v755, %v756
        %794 = vadd.xlane.f32.xlu0 %v793
        %v795 = vpop.xlane.xlu0 %794
        %v796 = vadd.f32 %v757, %v758
        %797 = vadd.xlane.f32.xlu0 %v796
        %v798 = vpop.xlane.xlu0 %797
        %v799 = vadd.f32 %v759, %v760
        %800 = vadd.xlane.f32.xlu0 %v799
        %v801 = vpop.xlane.xlu0 %800
        %v802 = vadd.f32 %v761, %v762
        %803 = vadd.xlane.f32.xlu0 %v802
        %v804 = vpop.xlane.xlu0 %803
        %v805 = vadd.f32 %v763, %v764
        %806 = vadd.xlane.f32.xlu0 %v805
        %v807 = vpop.xlane.xlu0 %806
        %v808 = vadd.f32 %v765, %v766
        %809 = vadd.xlane.f32.xlu0 %v808
        %v810 = vpop.xlane.xlu0 %809
        %v811 = vadd.f32 %v767, %v768
        %812 = vadd.xlane.f32.xlu0 %v811
        %v813 = vpop.xlane.xlu0 %812
        %v814 = vadd.f32 %v769, %v770
        %815 = vadd.xlane.f32.xlu0 %v814
        %v816 = vpop.xlane.xlu0 %815
        %v817 = vadd.f32 %v771, %v772
        %818 = vadd.xlane.f32.xlu0 %v817
        %v819 = vpop.xlane.xlu0 %818
        %v820 = vadd.f32 %v773, %v774
        %821 = vadd.xlane.f32.xlu0 %v820
        %v822 = vpop.xlane.xlu0 %821
        %v823 = vmax.f32 %v777, 1e-24
        %v824 = vmax.f32 %v780, 1e-24
        %v825 = vmax.f32 %v783, 1e-24
        %v826 = vmax.f32 %v786, 1e-24
        %v827 = vmax.f32 %v789, 1e-24
        %v828 = vmax.f32 %v792, 1e-24
        %v829 = vmax.f32 %v795, 1e-24
        %v830 = vmax.f32 %v798, 1e-24
        %v831 = vmax.f32 %v801, 1e-24
        %v832 = vmax.f32 %v804, 1e-24
        %v833 = vmax.f32 %v807, 1e-24
        %v834 = vmax.f32 %v810, 1e-24
        %v835 = vmax.f32 %v813, 1e-24
        %v836 = vmax.f32 %v816, 1e-24
        %v837 = vmax.f32 %v819, 1e-24
        %v838 = vmax.f32 %v822, 1e-24
        %v839 = vrsqrt.pop %v823
        %v840 = vmul.f32 %v839, %v823
        %v841 = vmul.f32 %v840, %v839
        %v842 = vmul.f32 0.5, %v841
        %v843 = vsub.f32 1.5, %v842
        %v844 = vmul.f32 %v839, %v843
        %vm845 = vweird.f32 %v823
        %vm846 = vweird.f32 %v839
        %vm847 = vmor %vm845, %vm846
        %v848 = vsel %vm847, %v839, %v844
        %v849 = vrsqrt.pop %v824
        %v850 = vmul.f32 %v849, %v824
        %v851 = vmul.f32 %v850, %v849
        %v852 = vmul.f32 0.5, %v851
        %v853 = vsub.f32 1.5, %v852
        %v854 = vmul.f32 %v849, %v853
        %vm855 = vweird.f32 %v824
        %vm856 = vweird.f32 %v849
        %vm857 = vmor %vm855, %vm856
        %v858 = vsel %vm857, %v849, %v854
        %v859 = vrsqrt.pop %v825
        %v860 = vmul.f32 %v859, %v825
        %v861 = vmul.f32 %v860, %v859
        %v862 = vmul.f32 0.5, %v861
        %v863 = vsub.f32 1.5, %v862
        %v864 = vmul.f32 %v859, %v863
        %vm865 = vweird.f32 %v825
        %vm866 = vweird.f32 %v859
        %vm867 = vmor %vm865, %vm866
        %v868 = vsel %vm867, %v859, %v864
        %v869 = vrsqrt.pop %v826
        %v870 = vmul.f32 %v869, %v826
        %v871 = vmul.f32 %v870, %v869
        %v872 = vmul.f32 0.5, %v871
        %v873 = vsub.f32 1.5, %v872
        %v874 = vmul.f32 %v869, %v873
        %vm875 = vweird.f32 %v826
        %vm876 = vweird.f32 %v869
        %vm877 = vmor %vm875, %vm876
        %v878 = vsel %vm877, %v869, %v874
        %v879 = vrsqrt.pop %v827
        %v880 = vmul.f32 %v879, %v827
        %v881 = vmul.f32 %v880, %v879
        %v882 = vmul.f32 0.5, %v881
        %v883 = vsub.f32 1.5, %v882
        %v884 = vmul.f32 %v879, %v883
        %vm885 = vweird.f32 %v827
        %vm886 = vweird.f32 %v879
        %vm887 = vmor %vm885, %vm886
        %v888 = vsel %vm887, %v879, %v884
        %v889 = vrsqrt.pop %v828
        %v890 = vmul.f32 %v889, %v828
        %v891 = vmul.f32 %v890, %v889
        %v892 = vmul.f32 0.5, %v891
        %v893 = vsub.f32 1.5, %v892
        %v894 = vmul.f32 %v889, %v893
        %vm895 = vweird.f32 %v828
        %vm896 = vweird.f32 %v889
        %vm897 = vmor %vm895, %vm896
        %v898 = vsel %vm897, %v889, %v894
        %v899 = vrsqrt.pop %v829
        %v900 = vmul.f32 %v899, %v829
        %v901 = vmul.f32 %v900, %v899
        %v902 = vmul.f32 0.5, %v901
        %v903 = vsub.f32 1.5, %v902
        %v904 = vmul.f32 %v899, %v903
        %vm905 = vweird.f32 %v829
        %vm906 = vweird.f32 %v899
        %vm907 = vmor %vm905, %vm906
        %v908 = vsel %vm907, %v899, %v904
        %v909 = vrsqrt.pop %v830
        %v910 = vmul.f32 %v909, %v830
        %v911 = vmul.f32 %v910, %v909
        %v912 = vmul.f32 0.5, %v911
        %v913 = vsub.f32 1.5, %v912
        %v914 = vmul.f32 %v909, %v913
        %vm915 = vweird.f32 %v830
        %vm916 = vweird.f32 %v909
        %vm917 = vmor %vm915, %vm916
        %v918 = vsel %vm917, %v909, %v914
        %v919 = vrsqrt.pop %v831
        %v920 = vmul.f32 %v919, %v831
        %v921 = vmul.f32 %v920, %v919
        %v922 = vmul.f32 0.5, %v921
        %v923 = vsub.f32 1.5, %v922
        %v924 = vmul.f32 %v919, %v923
        %vm925 = vweird.f32 %v831
        %vm926 = vweird.f32 %v919
        %vm927 = vmor %vm925, %vm926
        %v928 = vsel %vm927, %v919, %v924
        %v929 = vrsqrt.pop %v832
        %v930 = vmul.f32 %v929, %v832
        %v931 = vmul.f32 %v930, %v929
        %v932 = vmul.f32 0.5, %v931
        %v933 = vsub.f32 1.5, %v932
        %v934 = vmul.f32 %v929, %v933
        %vm935 = vweird.f32 %v832
        %vm936 = vweird.f32 %v929
        %vm937 = vmor %vm935, %vm936
        %v938 = vsel %vm937, %v929, %v934
        %v939 = vrsqrt.pop %v833
        %v940 = vmul.f32 %v939, %v833
        %v941 = vmul.f32 %v940, %v939
        %v942 = vmul.f32 0.5, %v941
        %v943 = vsub.f32 1.5, %v942
        %v944 = vmul.f32 %v939, %v943
        %vm945 = vweird.f32 %v833
        %vm946 = vweird.f32 %v939
        %vm947 = vmor %vm945, %vm946
        %v948 = vsel %vm947, %v939, %v944
        %v949 = vrsqrt.pop %v834
        %v950 = vmul.f32 %v949, %v834
        %v951 = vmul.f32 %v950, %v949
        %v952 = vmul.f32 0.5, %v951
        %v953 = vsub.f32 1.5, %v952
        %v954 = vmul.f32 %v949, %v953
        %vm955 = vweird.f32 %v834
        %vm956 = vweird.f32 %v949
        %vm957 = vmor %vm955, %vm956
        %v958 = vsel %vm957, %v949, %v954
        %v959 = vrsqrt.pop %v835
        %v960 = vmul.f32 %v959, %v835
        %v961 = vmul.f32 %v960, %v959
        %v962 = vmul.f32 0.5, %v961
        %v963 = vsub.f32 1.5, %v962
        %v964 = vmul.f32 %v959, %v963
        %vm965 = vweird.f32 %v835
        %vm966 = vweird.f32 %v959
        %vm967 = vmor %vm965, %vm966
        %v968 = vsel %vm967, %v959, %v964
        %v969 = vrsqrt.pop %v836
        %v970 = vmul.f32 %v969, %v836
        %v971 = vmul.f32 %v970, %v969
        %v972 = vmul.f32 0.5, %v971
        %v973 = vsub.f32 1.5, %v972
        %v974 = vmul.f32 %v969, %v973
        %vm975 = vweird.f32 %v836
        %vm976 = vweird.f32 %v969
        %vm977 = vmor %vm975, %vm976
        %v978 = vsel %vm977, %v969, %v974
        %v979 = vrsqrt.pop %v837
        %v980 = vmul.f32 %v979, %v837
        %v981 = vmul.f32 %v980, %v979
        %v982 = vmul.f32 0.5, %v981
        %v983 = vsub.f32 1.5, %v982
        %v984 = vmul.f32 %v979, %v983
        %vm985 = vweird.f32 %v837
        %vm986 = vweird.f32 %v979
        %vm987 = vmor %vm985, %vm986
        %v988 = vsel %vm987, %v979, %v984
        %v989 = vrsqrt.pop %v838
        %v990 = vmul.f32 %v989, %v838
        %v991 = vmul.f32 %v990, %v989
        %v992 = vmul.f32 0.5, %v991
        %v993 = vsub.f32 1.5, %v992
        %v994 = vmul.f32 %v989, %v993
        %vm995 = vweird.f32 %v838
        %vm996 = vweird.f32 %v989
        %vm997 = vmor %vm995, %vm996
        %v998 = vsel %vm997, %v989, %v994
        %v999 = vmul.f32 %v501, %v848
        %v1000 = vmul.f32 %v566, %v848
        %v1001 = vmul.f32 %v504, %v858
        %v1002 = vmul.f32 %v569, %v858
        %v1003 = vmul.f32 %v507, %v868
        %v1004 = vmul.f32 %v572, %v868
        %v1005 = vmul.f32 %v510, %v878
        %v1006 = vmul.f32 %v575, %v878
        %v1007 = vmul.f32 %v513, %v888
        %v1008 = vmul.f32 %v578, %v888
        %v1009 = vmul.f32 %v516, %v898
        %v1010 = vmul.f32 %v581, %v898
        %v1011 = vmul.f32 %v519, %v908
        %v1012 = vmul.f32 %v584, %v908
        %v1013 = vmul.f32 %v522, %v918
        %v1014 = vmul.f32 %v587, %v918
        %v1015 = vmul.f32 %v525, %v928
        %v1016 = vmul.f32 %v590, %v928
        %v1017 = vmul.f32 %v528, %v938
        %v1018 = vmul.f32 %v593, %v938
        %v1019 = vmul.f32 %v531, %v948
        %v1020 = vmul.f32 %v596, %v948
        %v1021 = vmul.f32 %v534, %v958
        %v1022 = vmul.f32 %v599, %v958
        %v1023 = vmul.f32 %v537, %v968
        %v1024 = vmul.f32 %v602, %v968
        %v1025 = vmul.f32 %v540, %v978
        %v1026 = vmul.f32 %v605, %v978
        %v1027 = vmul.f32 %v543, %v988
        %v1028 = vmul.f32 %v608, %v988
        %v1029 = vmul.f32 %v546, %v998
        %v1030 = vmul.f32 %v611, %v998
        %v1031 = vmul.f32 %v631, %v631
        %v1032 = vmul.f32 %v696, %v696
        %v1033 = vmul.f32 %v634, %v634
        %v1034 = vmul.f32 %v699, %v699
        %v1035 = vmul.f32 %v637, %v637
        %v1036 = vmul.f32 %v702, %v702
        %v1037 = vmul.f32 %v640, %v640
        %v1038 = vmul.f32 %v705, %v705
        %v1039 = vmul.f32 %v643, %v643
        %v1040 = vmul.f32 %v708, %v708
        %v1041 = vmul.f32 %v646, %v646
        %v1042 = vmul.f32 %v711, %v711
        %v1043 = vmul.f32 %v649, %v649
        %v1044 = vmul.f32 %v714, %v714
        %v1045 = vmul.f32 %v652, %v652
        %v1046 = vmul.f32 %v717, %v717
        %v1047 = vmul.f32 %v655, %v655
        %v1048 = vmul.f32 %v720, %v720
        %v1049 = vmul.f32 %v658, %v658
        %v1050 = vmul.f32 %v723, %v723
        %v1051 = vmul.f32 %v661, %v661
        %v1052 = vmul.f32 %v726, %v726
        %v1053 = vmul.f32 %v664, %v664
        %v1054 = vmul.f32 %v729, %v729
        %v1055 = vmul.f32 %v667, %v667
        %v1056 = vmul.f32 %v732, %v732
        %v1057 = vmul.f32 %v670, %v670
        %v1058 = vmul.f32 %v735, %v735
        %v1059 = vmul.f32 %v673, %v673
        %v1060 = vmul.f32 %v738, %v738
        %v1061 = vmul.f32 %v676, %v676
        %v1062 = vmul.f32 %v741, %v741
        %v1063 = vadd.f32 %v1031, %v1032
        %1064 = vadd.xlane.f32.xlu0 %v1063
        %v1065 = vpop.xlane.xlu0 %1064
        %v1066 = vadd.f32 %v1033, %v1034
        %1067 = vadd.xlane.f32.xlu0 %v1066
        %v1068 = vpop.xlane.xlu0 %1067
        %v1069 = vadd.f32 %v1035, %v1036
        %1070 = vadd.xlane.f32.xlu0 %v1069
        %v1071 = vpop.xlane.xlu0 %1070
        %v1072 = vadd.f32 %v1037, %v1038
        %1073 = vadd.xlane.f32.xlu0 %v1072
        %v1074 = vpop.xlane.xlu0 %1073
        %v1075 = vadd.f32 %v1039, %v1040
        %1076 = vadd.xlane.f32.xlu0 %v1075
        %v1077 = vpop.xlane.xlu0 %1076
        %v1078 = vadd.f32 %v1041, %v1042
        %1079 = vadd.xlane.f32.xlu0 %v1078
        %v1080 = vpop.xlane.xlu0 %1079
        %v1081 = vadd.f32 %v1043, %v1044
        %1082 = vadd.xlane.f32.xlu0 %v1081
        %v1083 = vpop.xlane.xlu0 %1082
        %v1084 = vadd.f32 %v1045, %v1046
        %1085 = vadd.xlane.f32.xlu0 %v1084
        %v1086 = vpop.xlane.xlu0 %1085
        %v1087 = vadd.f32 %v1047, %v1048
        %1088 = vadd.xlane.f32.xlu0 %v1087
        %v1089 = vpop.xlane.xlu0 %1088
        %v1090 = vadd.f32 %v1049, %v1050
        %1091 = vadd.xlane.f32.xlu0 %v1090
        %v1092 = vpop.xlane.xlu0 %1091
        %v1093 = vadd.f32 %v1051, %v1052
        %1094 = vadd.xlane.f32.xlu0 %v1093
        %v1095 = vpop.xlane.xlu0 %1094
        %v1096 = vadd.f32 %v1053, %v1054
        %1097 = vadd.xlane.f32.xlu0 %v1096
        %v1098 = vpop.xlane.xlu0 %1097
        %v1099 = vadd.f32 %v1055, %v1056
        %1100 = vadd.xlane.f32.xlu0 %v1099
        %v1101 = vpop.xlane.xlu0 %1100
        %v1102 = vadd.f32 %v1057, %v1058
        %1103 = vadd.xlane.f32.xlu0 %v1102
        %v1104 = vpop.xlane.xlu0 %1103
        %v1105 = vadd.f32 %v1059, %v1060
        %1106 = vadd.xlane.f32.xlu0 %v1105
        %v1107 = vpop.xlane.xlu0 %1106
        %v1108 = vadd.f32 %v1061, %v1062
        %1109 = vadd.xlane.f32.xlu0 %v1108
        %v1110 = vpop.xlane.xlu0 %1109
        %v1111 = vmax.f32 %v1065, 1e-24
        %v1112 = vmax.f32 %v1068, 1e-24
        %v1113 = vmax.f32 %v1071, 1e-24
        %v1114 = vmax.f32 %v1074, 1e-24
        %v1115 = vmax.f32 %v1077, 1e-24
        %v1116 = vmax.f32 %v1080, 1e-24
        %v1117 = vmax.f32 %v1083, 1e-24
        %v1118 = vmax.f32 %v1086, 1e-24
        %v1119 = vmax.f32 %v1089, 1e-24
        %v1120 = vmax.f32 %v1092, 1e-24
        %v1121 = vmax.f32 %v1095, 1e-24
        %v1122 = vmax.f32 %v1098, 1e-24
        %v1123 = vmax.f32 %v1101, 1e-24
        %v1124 = vmax.f32 %v1104, 1e-24
        %v1125 = vmax.f32 %v1107, 1e-24
        %v1126 = vmax.f32 %v1110, 1e-24
        %v1127 = vrsqrt.pop %v1111
        %v1128 = vmul.f32 %v1127, %v1111
        %v1129 = vmul.f32 %v1128, %v1127
        %v1130 = vmul.f32 0.5, %v1129
        %v1131 = vsub.f32 1.5, %v1130
        %v1132 = vmul.f32 %v1127, %v1131
        %vm1133 = vweird.f32 %v1111
        %vm1134 = vweird.f32 %v1127
        %vm1135 = vmor %vm1133, %vm1134
        %v1136 = vsel %vm1135, %v1127, %v1132
        %v1137 = vrsqrt.pop %v1112
        %v1138 = vmul.f32 %v1137, %v1112
        %v1139 = vmul.f32 %v1138, %v1137
        %v1140 = vmul.f32 0.5, %v1139
        %v1141 = vsub.f32 1.5, %v1140
        %v1142 = vmul.f32 %v1137, %v1141
        %vm1143 = vweird.f32 %v1112
        %vm1144 = vweird.f32 %v1137
        %vm1145 = vmor %vm1143, %vm1144
        %v1146 = vsel %vm1145, %v1137, %v1142
        %v1147 = vrsqrt.pop %v1113
        %v1148 = vmul.f32 %v1147, %v1113
        %v1149 = vmul.f32 %v1148, %v1147
        %v1150 = vmul.f32 0.5, %v1149
        %v1151 = vsub.f32 1.5, %v1150
        %v1152 = vmul.f32 %v1147, %v1151
        %vm1153 = vweird.f32 %v1113
        %vm1154 = vweird.f32 %v1147
        %vm1155 = vmor %vm1153, %vm1154
        %v1156 = vsel %vm1155, %v1147, %v1152
        %v1157 = vrsqrt.pop %v1114
        %v1158 = vmul.f32 %v1157, %v1114
        %v1159 = vmul.f32 %v1158, %v1157
        %v1160 = vmul.f32 0.5, %v1159
        %v1161 = vsub.f32 1.5, %v1160
        %v1162 = vmul.f32 %v1157, %v1161
        %vm1163 = vweird.f32 %v1114
        %vm1164 = vweird.f32 %v1157
        %vm1165 = vmor %vm1163, %vm1164
        %v1166 = vsel %vm1165, %v1157, %v1162
        %v1167 = vrsqrt.pop %v1115
        %v1168 = vmul.f32 %v1167, %v1115
        %v1169 = vmul.f32 %v1168, %v1167
        %v1170 = vmul.f32 0.5, %v1169
        %v1171 = vsub.f32 1.5, %v1170
        %v1172 = vmul.f32 %v1167, %v1171
        %vm1173 = vweird.f32 %v1115
        %vm1174 = vweird.f32 %v1167
        %vm1175 = vmor %vm1173, %vm1174
        %v1176 = vsel %vm1175, %v1167, %v1172
        %v1177 = vrsqrt.pop %v1116
        %v1178 = vmul.f32 %v1177, %v1116
        %v1179 = vmul.f32 %v1178, %v1177
        %v1180 = vmul.f32 0.5, %v1179
        %v1181 = vsub.f32 1.5, %v1180
        %v1182 = vmul.f32 %v1177, %v1181
        %vm1183 = vweird.f32 %v1116
        %vm1184 = vweird.f32 %v1177
        %vm1185 = vmor %vm1183, %vm1184
        %v1186 = vsel %vm1185, %v1177, %v1182
        %v1187 = vrsqrt.pop %v1117
        %v1188 = vmul.f32 %v1187, %v1117
        %v1189 = vmul.f32 %v1188, %v1187
        %v1190 = vmul.f32 0.5, %v1189
        %v1191 = vsub.f32 1.5, %v1190
        %v1192 = vmul.f32 %v1187, %v1191
        %vm1193 = vweird.f32 %v1117
        %vm1194 = vweird.f32 %v1187
        %vm1195 = vmor %vm1193, %vm1194
        %v1196 = vsel %vm1195, %v1187, %v1192
        %v1197 = vrsqrt.pop %v1118
        %v1198 = vmul.f32 %v1197, %v1118
        %v1199 = vmul.f32 %v1198, %v1197
        %v1200 = vmul.f32 0.5, %v1199
        %v1201 = vsub.f32 1.5, %v1200
        %v1202 = vmul.f32 %v1197, %v1201
        %vm1203 = vweird.f32 %v1118
        %vm1204 = vweird.f32 %v1197
        %vm1205 = vmor %vm1203, %vm1204
        %v1206 = vsel %vm1205, %v1197, %v1202
        %v1207 = vrsqrt.pop %v1119
        %v1208 = vmul.f32 %v1207, %v1119
        %v1209 = vmul.f32 %v1208, %v1207
        %v1210 = vmul.f32 0.5, %v1209
        %v1211 = vsub.f32 1.5, %v1210
        %v1212 = vmul.f32 %v1207, %v1211
        %vm1213 = vweird.f32 %v1119
        %vm1214 = vweird.f32 %v1207
        %vm1215 = vmor %vm1213, %vm1214
        %v1216 = vsel %vm1215, %v1207, %v1212
        %v1217 = vrsqrt.pop %v1120
        %v1218 = vmul.f32 %v1217, %v1120
        %v1219 = vmul.f32 %v1218, %v1217
        %v1220 = vmul.f32 0.5, %v1219
        %v1221 = vsub.f32 1.5, %v1220
        %v1222 = vmul.f32 %v1217, %v1221
        %vm1223 = vweird.f32 %v1120
        %vm1224 = vweird.f32 %v1217
        %vm1225 = vmor %vm1223, %vm1224
        %v1226 = vsel %vm1225, %v1217, %v1222
        %v1227 = vrsqrt.pop %v1121
        %v1228 = vmul.f32 %v1227, %v1121
        %v1229 = vmul.f32 %v1228, %v1227
        %v1230 = vmul.f32 0.5, %v1229
        %v1231 = vsub.f32 1.5, %v1230
        %v1232 = vmul.f32 %v1227, %v1231
        %vm1233 = vweird.f32 %v1121
        %vm1234 = vweird.f32 %v1227
        %vm1235 = vmor %vm1233, %vm1234
        %v1236 = vsel %vm1235, %v1227, %v1232
        %v1237 = vrsqrt.pop %v1122
        %v1238 = vmul.f32 %v1237, %v1122
        %v1239 = vmul.f32 %v1238, %v1237
        %v1240 = vmul.f32 0.5, %v1239
        %v1241 = vsub.f32 1.5, %v1240
        %v1242 = vmul.f32 %v1237, %v1241
        %vm1243 = vweird.f32 %v1122
        %vm1244 = vweird.f32 %v1237
        %vm1245 = vmor %vm1243, %vm1244
        %v1246 = vsel %vm1245, %v1237, %v1242
        %v1247 = vrsqrt.pop %v1123
        %v1248 = vmul.f32 %v1247, %v1123
        %v1249 = vmul.f32 %v1248, %v1247
        %v1250 = vmul.f32 0.5, %v1249
        %v1251 = vsub.f32 1.5, %v1250
        %v1252 = vmul.f32 %v1247, %v1251
        %vm1253 = vweird.f32 %v1123
        %vm1254 = vweird.f32 %v1247
        %vm1255 = vmor %vm1253, %vm1254
        %v1256 = vsel %vm1255, %v1247, %v1252
        %v1257 = vrsqrt.pop %v1124
        %v1258 = vmul.f32 %v1257, %v1124
        %v1259 = vmul.f32 %v1258, %v1257
        %v1260 = vmul.f32 0.5, %v1259
        %v1261 = vsub.f32 1.5, %v1260
        %v1262 = vmul.f32 %v1257, %v1261
        %vm1263 = vweird.f32 %v1124
        %vm1264 = vweird.f32 %v1257
        %vm1265 = vmor %vm1263, %vm1264
        %v1266 = vsel %vm1265, %v1257, %v1262
        %v1267 = vrsqrt.pop %v1125
        %v1268 = vmul.f32 %v1267, %v1125
        %v1269 = vmul.f32 %v1268, %v1267
        %v1270 = vmul.f32 0.5, %v1269
        %v1271 = vsub.f32 1.5, %v1270
        %v1272 = vmul.f32 %v1267, %v1271
        %vm1273 = vweird.f32 %v1125
        %vm1274 = vweird.f32 %v1267
        %vm1275 = vmor %vm1273, %vm1274
        %v1276 = vsel %vm1275, %v1267, %v1272
        %v1277 = vrsqrt.pop %v1126
        %v1278 = vmul.f32 %v1277, %v1126
        %v1279 = vmul.f32 %v1278, %v1277
        %v1280 = vmul.f32 0.5, %v1279
        %v1281 = vsub.f32 1.5, %v1280
        %v1282 = vmul.f32 %v1277, %v1281
        %vm1283 = vweird.f32 %v1126
        %vm1284 = vweird.f32 %v1277
        %vm1285 = vmor %vm1283, %vm1284
        %v1286 = vsel %vm1285, %v1277, %v1282
        %v1287 = vmul.f32 %v631, %v1136
        %v1288 = vmul.f32 %v696, %v1136
        %v1289 = vmul.f32 %v634, %v1146
        %v1290 = vmul.f32 %v699, %v1146
        %v1291 = vmul.f32 %v637, %v1156
        %v1292 = vmul.f32 %v702, %v1156
        %v1293 = vmul.f32 %v640, %v1166
        %v1294 = vmul.f32 %v705, %v1166
        %v1295 = vmul.f32 %v643, %v1176
        %v1296 = vmul.f32 %v708, %v1176
        %v1297 = vmul.f32 %v646, %v1186
        %v1298 = vmul.f32 %v711, %v1186
        %v1299 = vmul.f32 %v649, %v1196
        %v1300 = vmul.f32 %v714, %v1196
        %v1301 = vmul.f32 %v652, %v1206
        %v1302 = vmul.f32 %v717, %v1206
        %v1303 = vmul.f32 %v655, %v1216
        %v1304 = vmul.f32 %v720, %v1216
        %v1305 = vmul.f32 %v658, %v1226
        %v1306 = vmul.f32 %v723, %v1226
        %v1307 = vmul.f32 %v661, %v1236
        %v1308 = vmul.f32 %v726, %v1236
        %v1309 = vmul.f32 %v664, %v1246
        %v1310 = vmul.f32 %v729, %v1246
        %v1311 = vmul.f32 %v667, %v1256
        %v1312 = vmul.f32 %v732, %v1256
        %v1313 = vmul.f32 %v670, %v1266
        %v1314 = vmul.f32 %v735, %v1266
        %v1315 = vmul.f32 %v673, %v1276
        %v1316 = vmul.f32 %v738, %v1276
        %v1317 = vmul.f32 %v676, %v1286
        %v1318 = vmul.f32 %v741, %v1286
        %v1319 = vld [vmem:[%s3] sm:$0x3]
        %v1321 = vperm.slane %v1319, 0
        %v1322 = vperm.slane %v1319, 1
        %v1325 = vmul.f32 %v999, %v1321
        %v1326 = vmul.f32 %v1000, %v1322
        %v1327 = vmul.f32 %v1001, %v1321
        %v1328 = vmul.f32 %v1002, %v1322
        %v1329 = vmul.f32 %v1003, %v1321
        %v1330 = vmul.f32 %v1004, %v1322
        %v1331 = vmul.f32 %v1005, %v1321
        %v1332 = vmul.f32 %v1006, %v1322
        %v1333 = vmul.f32 %v1007, %v1321
        %v1334 = vmul.f32 %v1008, %v1322
        %v1335 = vmul.f32 %v1009, %v1321
        %v1336 = vmul.f32 %v1010, %v1322
        %v1337 = vmul.f32 %v1011, %v1321
        %v1338 = vmul.f32 %v1012, %v1322
        %v1339 = vmul.f32 %v1013, %v1321
        %v1340 = vmul.f32 %v1014, %v1322
        %v1341 = vmul.f32 %v1015, %v1321
        %v1342 = vmul.f32 %v1016, %v1322
        %v1343 = vmul.f32 %v1017, %v1321
        %v1344 = vmul.f32 %v1018, %v1322
        %v1345 = vmul.f32 %v1019, %v1321
        %v1346 = vmul.f32 %v1020, %v1322
        %v1347 = vmul.f32 %v1021, %v1321
        %v1348 = vmul.f32 %v1022, %v1322
        %v1349 = vmul.f32 %v1023, %v1321
        %v1350 = vmul.f32 %v1024, %v1322
        %v1351 = vmul.f32 %v1025, %v1321
        %v1352 = vmul.f32 %v1026, %v1322
        %v1353 = vmul.f32 %v1027, %v1321
        %v1354 = vmul.f32 %v1028, %v1322
        %v1355 = vmul.f32 %v1029, %v1321
        %v1356 = vmul.f32 %v1030, %v1322
        %v1357 = vadd.f32 %v1325, %v1326
        %1358 = vadd.xlane.f32.xlu0 %v1357
        %v1359 = vpop.xlane.xlu0 %1358
        %v1360 = vadd.f32 %v1327, %v1328
        %1361 = vadd.xlane.f32.xlu0 %v1360
        %v1362 = vpop.xlane.xlu0 %1361
        %v1363 = vadd.f32 %v1329, %v1330
        %1364 = vadd.xlane.f32.xlu0 %v1363
        %v1365 = vpop.xlane.xlu0 %1364
        %v1366 = vadd.f32 %v1331, %v1332
        %1367 = vadd.xlane.f32.xlu0 %v1366
        %v1368 = vpop.xlane.xlu0 %1367
        %v1369 = vadd.f32 %v1333, %v1334
        %1370 = vadd.xlane.f32.xlu0 %v1369
        %v1371 = vpop.xlane.xlu0 %1370
        %v1372 = vadd.f32 %v1335, %v1336
        %1373 = vadd.xlane.f32.xlu0 %v1372
        %v1374 = vpop.xlane.xlu0 %1373
        %v1375 = vadd.f32 %v1337, %v1338
        %1376 = vadd.xlane.f32.xlu0 %v1375
        %v1377 = vpop.xlane.xlu0 %1376
        %v1378 = vadd.f32 %v1339, %v1340
        %1379 = vadd.xlane.f32.xlu0 %v1378
        %v1380 = vpop.xlane.xlu0 %1379
        %v1381 = vadd.f32 %v1341, %v1342
        %1382 = vadd.xlane.f32.xlu0 %v1381
        %v1383 = vpop.xlane.xlu0 %1382
        %v1384 = vadd.f32 %v1343, %v1344
        %1385 = vadd.xlane.f32.xlu0 %v1384
        %v1386 = vpop.xlane.xlu0 %1385
        %v1387 = vadd.f32 %v1345, %v1346
        %1388 = vadd.xlane.f32.xlu0 %v1387
        %v1389 = vpop.xlane.xlu0 %1388
        %v1390 = vadd.f32 %v1347, %v1348
        %1391 = vadd.xlane.f32.xlu0 %v1390
        %v1392 = vpop.xlane.xlu0 %1391
        %v1393 = vadd.f32 %v1349, %v1350
        %1394 = vadd.xlane.f32.xlu0 %v1393
        %v1395 = vpop.xlane.xlu0 %1394
        %v1396 = vadd.f32 %v1351, %v1352
        %1397 = vadd.xlane.f32.xlu0 %v1396
        %v1398 = vpop.xlane.xlu0 %1397
        %v1399 = vadd.f32 %v1353, %v1354
        %1400 = vadd.xlane.f32.xlu0 %v1399
        %v1401 = vpop.xlane.xlu0 %1400
        %v1402 = vadd.f32 %v1355, %v1356
        %1403 = vadd.xlane.f32.xlu0 %v1402
        %v1404 = vpop.xlane.xlu0 %1403
        %v1405 = vmul.f32 %v1359, 0.088388346
        %v1406 = vmul.f32 %v1362, 0.088388346
        %v1407 = vmul.f32 %v1365, 0.088388346
        %v1408 = vmul.f32 %v1368, 0.088388346
        %v1409 = vmul.f32 %v1371, 0.088388346
        %v1410 = vmul.f32 %v1374, 0.088388346
        %v1411 = vmul.f32 %v1377, 0.088388346
        %v1412 = vmul.f32 %v1380, 0.088388346
        %v1413 = vmul.f32 %v1383, 0.088388346
        %v1414 = vmul.f32 %v1386, 0.088388346
        %v1415 = vmul.f32 %v1389, 0.088388346
        %v1416 = vmul.f32 %v1392, 0.088388346
        %v1417 = vmul.f32 %v1395, 0.088388346
        %v1418 = vmul.f32 %v1398, 0.088388346
        %v1419 = vmul.f32 %v1401, 0.088388346
        %v1420 = vmul.f32 %v1404, 0.088388346
        %v1421 = vmul.f32 %v1405, %v1405
        %v1422 = vmul.f32 %v1406, %v1406
        %v1423 = vmul.f32 %v1407, %v1407
        %v1424 = vmul.f32 %v1408, %v1408
        %v1425 = vmul.f32 %v1409, %v1409
        %v1426 = vmul.f32 %v1410, %v1410
        %v1427 = vmul.f32 %v1411, %v1411
        %v1428 = vmul.f32 %v1412, %v1412
        %v1429 = vmul.f32 %v1413, %v1413
        %v1430 = vmul.f32 %v1414, %v1414
        %v1431 = vmul.f32 %v1415, %v1415
        %v1432 = vmul.f32 %v1416, %v1416
        %v1433 = vmul.f32 %v1417, %v1417
        %v1434 = vmul.f32 %v1418, %v1418
        %v1435 = vmul.f32 %v1419, %v1419
        %v1436 = vmul.f32 %v1420, %v1420
        %v1437 = vadd.f32 %v1421, %v1422
        %v1438 = vadd.f32 %v1437, %v1423
        %v1439 = vadd.f32 %v1438, %v1424
        %v1440 = vadd.f32 %v1439, %v1425
        %v1441 = vadd.f32 %v1440, %v1426
        %v1442 = vadd.f32 %v1441, %v1427
        %v1443 = vadd.f32 %v1442, %v1428
        %v1444 = vrot.slane %v1443, 4
        %v1445 = vadd.f32 %v1443, %v1444
        %v1446 = vrot.slane %v1445, 2
        %v1447 = vadd.f32 %v1445, %v1446
        %v1448 = vrot.slane %v1447, 1
        %v1449 = vadd.f32 %v1447, %v1448
        %v1450 = vadd.f32 %v1429, %v1430
        %v1451 = vadd.f32 %v1450, %v1431
        %v1452 = vadd.f32 %v1451, %v1432
        %v1453 = vadd.f32 %v1452, %v1433
        %v1454 = vadd.f32 %v1453, %v1434
        %v1455 = vadd.f32 %v1454, %v1435
        %v1456 = vadd.f32 %v1455, %v1436
        %v1457 = vrot.slane %v1456, 4
        %v1458 = vadd.f32 %v1456, %v1457
        %v1459 = vrot.slane %v1458, 2
        %v1460 = vadd.f32 %v1458, %v1459
        %v1461 = vrot.slane %v1460, 1
        %v1462 = vadd.f32 %v1460, %v1461
        %v1463 = vmax.f32 %v1449, 1e-24
        %v1464 = vmax.f32 %v1462, 1e-24
        %v1465 = vrsqrt.pop %v1463
        %v1466 = vmul.f32 %v1465, %v1463
        %v1467 = vmul.f32 %v1466, %v1465
        %v1468 = vmul.f32 0.5, %v1467
        %v1469 = vsub.f32 1.5, %v1468
        %v1470 = vmul.f32 %v1465, %v1469
        %vm1471 = vweird.f32 %v1463
        %vm1472 = vweird.f32 %v1465
        %vm1473 = vmor %vm1471, %vm1472
        %v1474 = vsel %vm1473, %v1465, %v1470
        %v1475 = vrsqrt.pop %v1464
        %v1476 = vmul.f32 %v1475, %v1464
        %v1477 = vmul.f32 %v1476, %v1475
        %v1478 = vmul.f32 0.5, %v1477
        %v1479 = vsub.f32 1.5, %v1478
        %v1480 = vmul.f32 %v1475, %v1479
        %vm1481 = vweird.f32 %v1464
        %vm1482 = vweird.f32 %v1475
        %vm1483 = vmor %vm1481, %vm1482
        %v1484 = vsel %vm1483, %v1475, %v1480
        %v1485 = vmul.f32 %v1405, %v1474
        %v1486 = vmul.f32 %v1406, %v1474
        %v1487 = vmul.f32 %v1407, %v1474
        %v1488 = vmul.f32 %v1408, %v1474
        %v1489 = vmul.f32 %v1409, %v1474
        %v1490 = vmul.f32 %v1410, %v1474
        %v1491 = vmul.f32 %v1411, %v1474
        %v1492 = vmul.f32 %v1412, %v1474
        %v1493 = vmul.f32 %v1413, %v1484
        %v1494 = vmul.f32 %v1414, %v1484
        %v1495 = vmul.f32 %v1415, %v1484
        %v1496 = vmul.f32 %v1416, %v1484
        %v1497 = vmul.f32 %v1417, %v1484
        %v1498 = vmul.f32 %v1418, %v1484
        %v1499 = vmul.f32 %v1419, %v1484
        %v1500 = vmul.f32 %v1420, %v1484
        %v1501 = vmul.f32 %v1485, %v999
        %v1502 = vmul.f32 %v1485, %v1000
        %v1503 = vmul.f32 %v1486, %v1001
        %v1504 = vmul.f32 %v1486, %v1002
        %v1505 = vmul.f32 %v1487, %v1003
        %v1506 = vmul.f32 %v1487, %v1004
        %v1507 = vmul.f32 %v1488, %v1005
        %v1508 = vmul.f32 %v1488, %v1006
        %v1509 = vmul.f32 %v1489, %v1007
        %v1510 = vmul.f32 %v1489, %v1008
        %v1511 = vmul.f32 %v1490, %v1009
        %v1512 = vmul.f32 %v1490, %v1010
        %v1513 = vmul.f32 %v1491, %v1011
        %v1514 = vmul.f32 %v1491, %v1012
        %v1515 = vmul.f32 %v1492, %v1013
        %v1516 = vmul.f32 %v1492, %v1014
        %v1517 = vmul.f32 %v1493, %v1015
        %v1518 = vmul.f32 %v1493, %v1016
        %v1519 = vmul.f32 %v1494, %v1017
        %v1520 = vmul.f32 %v1494, %v1018
        %v1521 = vmul.f32 %v1495, %v1019
        %v1522 = vmul.f32 %v1495, %v1020
        %v1523 = vmul.f32 %v1496, %v1021
        %v1524 = vmul.f32 %v1496, %v1022
        %v1525 = vmul.f32 %v1497, %v1023
        %v1526 = vmul.f32 %v1497, %v1024
        %v1527 = vmul.f32 %v1498, %v1025
        %v1528 = vmul.f32 %v1498, %v1026
        %v1529 = vmul.f32 %v1499, %v1027
        %v1530 = vmul.f32 %v1499, %v1028
        %v1531 = vmul.f32 %v1500, %v1029
        %v1532 = vmul.f32 %v1500, %v1030
        %v1533 = vadd.f32 %v1501, %v1503
        %v1534 = vadd.f32 %v1533, %v1505
        %v1535 = vadd.f32 %v1534, %v1507
        %v1536 = vadd.f32 %v1535, %v1509
        %v1537 = vadd.f32 %v1536, %v1511
        %v1538 = vadd.f32 %v1537, %v1513
        %v1539 = vadd.f32 %v1538, %v1515
        %v1540 = vrot.slane %v1539, 4
        %v1541 = vadd.f32 %v1539, %v1540
        %v1542 = vrot.slane %v1541, 2
        %v1543 = vadd.f32 %v1541, %v1542
        %v1544 = vrot.slane %v1543, 1
        %v1545 = vadd.f32 %v1543, %v1544
        %v1546 = vadd.f32 %v1502, %v1504
        %v1547 = vadd.f32 %v1546, %v1506
        %v1548 = vadd.f32 %v1547, %v1508
        %v1549 = vadd.f32 %v1548, %v1510
        %v1550 = vadd.f32 %v1549, %v1512
        %v1551 = vadd.f32 %v1550, %v1514
        %v1552 = vadd.f32 %v1551, %v1516
        %v1553 = vrot.slane %v1552, 4
        %v1554 = vadd.f32 %v1552, %v1553
        %v1555 = vrot.slane %v1554, 2
        %v1556 = vadd.f32 %v1554, %v1555
        %v1557 = vrot.slane %v1556, 1
        %v1558 = vadd.f32 %v1556, %v1557
        %v1559 = vadd.f32 %v1517, %v1519
        %v1560 = vadd.f32 %v1559, %v1521
        %v1561 = vadd.f32 %v1560, %v1523
        %v1562 = vadd.f32 %v1561, %v1525
        %v1563 = vadd.f32 %v1562, %v1527
        %v1564 = vadd.f32 %v1563, %v1529
        %v1565 = vadd.f32 %v1564, %v1531
        %v1566 = vrot.slane %v1565, 4
        %v1567 = vadd.f32 %v1565, %v1566
        %v1568 = vrot.slane %v1567, 2
        %v1569 = vadd.f32 %v1567, %v1568
        %v1570 = vrot.slane %v1569, 1
        %v1571 = vadd.f32 %v1569, %v1570
        %v1572 = vadd.f32 %v1518, %v1520
        %v1573 = vadd.f32 %v1572, %v1522
        %v1574 = vadd.f32 %v1573, %v1524
        %v1575 = vadd.f32 %v1574, %v1526
        %v1576 = vadd.f32 %v1575, %v1528
        %v1577 = vadd.f32 %v1576, %v1530
        %v1578 = vadd.f32 %v1577, %v1532
        %v1579 = vrot.slane %v1578, 4
        %v1580 = vadd.f32 %v1578, %v1579
        %v1581 = vrot.slane %v1580, 2
        %v1582 = vadd.f32 %v1580, %v1581
        %v1583 = vrot.slane %v1582, 1
        %v1584 = vadd.f32 %v1582, %v1583
        %v1585 = vmul.f32 %v1545, %v1287
        %v1586 = vmul.f32 %v1558, %v1288
        %v1587 = vmul.f32 %v1545, %v1289
        %v1588 = vmul.f32 %v1558, %v1290
        %v1589 = vmul.f32 %v1545, %v1291
        %v1590 = vmul.f32 %v1558, %v1292
        %v1591 = vmul.f32 %v1545, %v1293
        %v1592 = vmul.f32 %v1558, %v1294
        %v1593 = vmul.f32 %v1545, %v1295
        %v1594 = vmul.f32 %v1558, %v1296
        %v1595 = vmul.f32 %v1545, %v1297
        %v1596 = vmul.f32 %v1558, %v1298
        %v1597 = vmul.f32 %v1545, %v1299
        %v1598 = vmul.f32 %v1558, %v1300
        %v1599 = vmul.f32 %v1545, %v1301
        %v1600 = vmul.f32 %v1558, %v1302
        %v1601 = vmul.f32 %v1571, %v1303
        %v1602 = vmul.f32 %v1584, %v1304
        %v1603 = vmul.f32 %v1571, %v1305
        %v1604 = vmul.f32 %v1584, %v1306
        %v1605 = vmul.f32 %v1571, %v1307
        %v1606 = vmul.f32 %v1584, %v1308
        %v1607 = vmul.f32 %v1571, %v1309
        %v1608 = vmul.f32 %v1584, %v1310
        %v1609 = vmul.f32 %v1571, %v1311
        %v1610 = vmul.f32 %v1584, %v1312
        %v1611 = vmul.f32 %v1571, %v1313
        %v1612 = vmul.f32 %v1584, %v1314
        %v1613 = vmul.f32 %v1571, %v1315
        %v1614 = vmul.f32 %v1584, %v1316
        %v1615 = vmul.f32 %v1571, %v1317
        %v1616 = vmul.f32 %v1584, %v1318
        %v1617 = vld [vmem:[#allocation8] sm:$0xff]
        %v1618 = vld [vmem:[#allocation8 + $0x8] sm:$0xff]
        %v1619 = vld [vmem:[#allocation8 + $0x10] sm:$0xff]
        %v1620 = vld [vmem:[#allocation8 + $0x18] sm:$0xff]
        %v1621 = vld [vmem:[#allocation8 + $0x20] sm:$0xff]
        %v1622 = vld [vmem:[#allocation8 + $0x28] sm:$0xff]
        %v1623 = vld [vmem:[#allocation8 + $0x30] sm:$0xff]
        %v1624 = vld [vmem:[#allocation8 + $0x38] sm:$0xff]
        %v1625 = vld [vmem:[#allocation8 + $0x40] sm:$0xff]
        %v1626 = vld [vmem:[#allocation8 + $0x48] sm:$0xff]
        %v1627 = vld [vmem:[#allocation8 + $0x50] sm:$0xff]
        %v1628 = vld [vmem:[#allocation8 + $0x58] sm:$0xff]
        %v1629 = vld [vmem:[#allocation8 + $0x60] sm:$0xff]
        %v1630 = vld [vmem:[#allocation8 + $0x68] sm:$0xff]
        %v1631 = vld [vmem:[#allocation8 + $0x70] sm:$0xff]
        %v1632 = vld [vmem:[#allocation8 + $0x78] sm:$0xff]
        %v1633 = vld [vmem:[#allocation8 + $0x80] sm:$0xff]
        %v1634 = vld [vmem:[#allocation8 + $0x88] sm:$0xff]
        %v1635 = vld [vmem:[#allocation8 + $0x90] sm:$0xff]
        %v1636 = vld [vmem:[#allocation8 + $0x98] sm:$0xff]
        %v1637 = vld [vmem:[#allocation8 + $0xa0] sm:$0xff]
        %v1638 = vld [vmem:[#allocation8 + $0xa8] sm:$0xff]
        %v1639 = vld [vmem:[#allocation8 + $0xb0] sm:$0xff]
        %v1640 = vld [vmem:[#allocation8 + $0xb8] sm:$0xff]
        %v1641 = vld [vmem:[#allocation8 + $0xc0] sm:$0xff]
        %v1642 = vld [vmem:[#allocation8 + $0xc8] sm:$0xff]
        %v1643 = vld [vmem:[#allocation8 + $0xd0] sm:$0xff]
        %v1644 = vld [vmem:[#allocation8 + $0xd8] sm:$0xff]
        %v1645 = vld [vmem:[#allocation8 + $0xe0] sm:$0xff]
        %v1646 = vld [vmem:[#allocation8 + $0xe8] sm:$0xff]
        %v1647 = vld [vmem:[#allocation8 + $0xf0] sm:$0xff]
        %v1648 = vld [vmem:[#allocation8 + $0xf8] sm:$0xff]
        %v1649 = vld [vmem:[#allocation8 + $0x100] sm:$0xff]
        %v1650 = vld [vmem:[#allocation8 + $0x108] sm:$0xff]
        %v1651 = vld [vmem:[#allocation8 + $0x110] sm:$0xff]
        %v1652 = vld [vmem:[#allocation8 + $0x118] sm:$0xff]
        %v1653 = vld [vmem:[#allocation8 + $0x120] sm:$0xff]
        %v1654 = vld [vmem:[#allocation8 + $0x128] sm:$0xff]
        %v1655 = vld [vmem:[#allocation8 + $0x130] sm:$0xff]
        %v1656 = vld [vmem:[#allocation8 + $0x138] sm:$0xff]
        %v1657 = vld [vmem:[#allocation8 + $0x140] sm:$0xff]
        %v1658 = vld [vmem:[#allocation8 + $0x148] sm:$0xff]
        %v1659 = vld [vmem:[#allocation8 + $0x150] sm:$0xff]
        %v1660 = vld [vmem:[#allocation8 + $0x158] sm:$0xff]
        %v1661 = vld [vmem:[#allocation8 + $0x160] sm:$0xff]
        %v1662 = vld [vmem:[#allocation8 + $0x168] sm:$0xff]
        %v1663 = vld [vmem:[#allocation8 + $0x170] sm:$0xff]
        %v1664 = vld [vmem:[#allocation8 + $0x178] sm:$0xff]
        %v1665 = vld [vmem:[#allocation8 + $0x180] sm:$0xff]
        %v1666 = vld [vmem:[#allocation8 + $0x188] sm:$0xff]
        %v1667 = vld [vmem:[#allocation8 + $0x190] sm:$0xff]
        %v1668 = vld [vmem:[#allocation8 + $0x198] sm:$0xff]
        %v1669 = vld [vmem:[#allocation8 + $0x1a0] sm:$0xff]
        %v1670 = vld [vmem:[#allocation8 + $0x1a8] sm:$0xff]
        %v1671 = vld [vmem:[#allocation8 + $0x1b0] sm:$0xff]
        %v1672 = vld [vmem:[#allocation8 + $0x1b8] sm:$0xff]
        %v1673 = vld [vmem:[#allocation8 + $0x1c0] sm:$0xff]
        %v1674 = vld [vmem:[#allocation8 + $0x1c8] sm:$0xff]
        %v1675 = vld [vmem:[#allocation8 + $0x1d0] sm:$0xff]
        %v1676 = vld [vmem:[#allocation8 + $0x1d8] sm:$0xff]
        %v1677 = vld [vmem:[#allocation8 + $0x1e0] sm:$0xff]
        %v1678 = vld [vmem:[#allocation8 + $0x1e8] sm:$0xff]
        %v1679 = vld [vmem:[#allocation8 + $0x1f0] sm:$0xff]
        %v1680 = vld [vmem:[#allocation8 + $0x1f8] sm:$0xff]
        %v1681 = vld [vmem:[%s5] sm:$0x3]
        %v1683 = vperm.slane %v1681, 0
        %v1684 = vperm.slane %v1681, 1
        %1687 = vmatpush.msra.mxu0 %v1647
        %1688 = vmatpush.msra.mxu0 %v1645
        %1689 = vmatpush.msra.mxu0 %v1643
        %1690 = vmatpush.msra.mxu0 %v1641
        %1691 = vmatpush.msra.mxu0 %v1639
        %1692 = vmatpush.msra.mxu0 %v1637
        %1693 = vmatpush.msra.mxu0 %v1635
        %1694 = vmatpush.msra.mxu0 %v1633
        %1695 = vmatpush.msra.mxu0 %v1631
        %1696 = vmatpush.msra.mxu0 %v1629
        %1697 = vmatpush.msra.mxu0 %v1627
        %1698 = vmatpush.msra.mxu0 %v1625
        %1699 = vmatpush.msra.mxu0 %v1623
        %1700 = vmatpush.msra.mxu0 %v1621
        %1701 = vmatpush.msra.mxu0 %v1619
        %1702 = vmatpush.msra.mxu0 %v1617
        %1703 = vmatmul.f32.gmra.mxu0 %v1585
        %v1704 = vpop.f32.mrf.mxu0
        %v1705 = vadd.f32 %v1683, %v1704
        %1706 = vmatmul.f32.gmra.mxu0 %v1587
        %v1707 = vpop.f32.mrf.mxu0
        %v1708 = vadd.f32 %v1683, %v1707
        %1709 = vmatmul.f32.gmra.mxu0 %v1589
        %v1710 = vpop.f32.mrf.mxu0
        %v1711 = vadd.f32 %v1683, %v1710
        %1712 = vmatmul.f32.gmra.mxu0 %v1591
        %v1713 = vpop.f32.mrf.mxu0
        %v1714 = vadd.f32 %v1683, %v1713
        %1715 = vmatmul.f32.gmra.mxu0 %v1593
        %v1716 = vpop.f32.mrf.mxu0
        %v1717 = vadd.f32 %v1683, %v1716
        %1718 = vmatmul.f32.gmra.mxu0 %v1595
        %v1719 = vpop.f32.mrf.mxu0
        %v1720 = vadd.f32 %v1683, %v1719
        %1721 = vmatmul.f32.gmra.mxu0 %v1597
        %v1722 = vpop.f32.mrf.mxu0
        %v1723 = vadd.f32 %v1683, %v1722
        %1724 = vmatmul.f32.gmra.mxu0 %v1599
        %v1725 = vpop.f32.mrf.mxu0
        %v1726 = vadd.f32 %v1683, %v1725
        %1727 = vmatmul.f32.gmra.mxu0 %v1601
        %v1728 = vpop.f32.mrf.mxu0
        %v1729 = vadd.f32 %v1683, %v1728
        %1730 = vmatmul.f32.gmra.mxu0 %v1603
        %v1731 = vpop.f32.mrf.mxu0
        %v1732 = vadd.f32 %v1683, %v1731
        %1733 = vmatmul.f32.gmra.mxu0 %v1605
        %v1734 = vpop.f32.mrf.mxu0
        %v1735 = vadd.f32 %v1683, %v1734
        %1736 = vmatmul.f32.gmra.mxu0 %v1607
        %v1737 = vpop.f32.mrf.mxu0
        %v1738 = vadd.f32 %v1683, %v1737
        %1739 = vmatmul.f32.gmra.mxu0 %v1609
        %v1740 = vpop.f32.mrf.mxu0
        %v1741 = vadd.f32 %v1683, %v1740
        %1742 = vmatmul.f32.gmra.mxu0 %v1611
        %v1743 = vpop.f32.mrf.mxu0
        %v1744 = vadd.f32 %v1683, %v1743
        %1745 = vmatmul.f32.gmra.mxu0 %v1613
        %v1746 = vpop.f32.mrf.mxu0
        %v1747 = vadd.f32 %v1683, %v1746
        %1748 = vmatmul.f32.gmra.mxu0 %v1615
        %v1749 = vpop.f32.mrf.mxu0
        %v1750 = vadd.f32 %v1683, %v1749
        %1751 = vdwg.mxu0
        %1752 = vmatpush.msra.mxu0 %v1679
        %1753 = vmatpush.msra.mxu0 %v1677
        %1754 = vmatpush.msra.mxu0 %v1675
        %1755 = vmatpush.msra.mxu0 %v1673
        %1756 = vmatpush.msra.mxu0 %v1671
        %1757 = vmatpush.msra.mxu0 %v1669
        %1758 = vmatpush.msra.mxu0 %v1667
        %1759 = vmatpush.msra.mxu0 %v1665
        %1760 = vmatpush.msra.mxu0 %v1663
        %1761 = vmatpush.msra.mxu0 %v1661
        %1762 = vmatpush.msra.mxu0 %v1659
        %1763 = vmatpush.msra.mxu0 %v1657
        %1764 = vmatpush.msra.mxu0 %v1655
        %1765 = vmatpush.msra.mxu0 %v1653
        %1766 = vmatpush.msra.mxu0 %v1651
        %1767 = vmatpush.msra.mxu0 %v1649
        %1768 = vmatmul.f32.gmra.mxu0 %v1586
        %v1769 = vpop.f32.mrf.mxu0
        %v1770 = vadd.f32 %v1705, %v1769
        %1771 = vmatmul.f32.gmra.mxu0 %v1588
        %v1772 = vpop.f32.mrf.mxu0
        %v1773 = vadd.f32 %v1708, %v1772
        %1774 = vmatmul.f32.gmra.mxu0 %v1590
        %v1775 = vpop.f32.mrf.mxu0
        %v1776 = vadd.f32 %v1711, %v1775
        %1777 = vmatmul.f32.gmra.mxu0 %v1592
        %v1778 = vpop.f32.mrf.mxu0
        %v1779 = vadd.f32 %v1714, %v1778
        %1780 = vmatmul.f32.gmra.mxu0 %v1594
        %v1781 = vpop.f32.mrf.mxu0
        %v1782 = vadd.f32 %v1717, %v1781
        %1783 = vmatmul.f32.gmra.mxu0 %v1596
        %v1784 = vpop.f32.mrf.mxu0
        %v1785 = vadd.f32 %v1720, %v1784
        %1786 = vmatmul.f32.gmra.mxu0 %v1598
        %v1787 = vpop.f32.mrf.mxu0
        %v1788 = vadd.f32 %v1723, %v1787
        %1789 = vmatmul.f32.gmra.mxu0 %v1600
        %v1790 = vpop.f32.mrf.mxu0
        %v1791 = vadd.f32 %v1726, %v1790
        %1792 = vmatmul.f32.gmra.mxu0 %v1602
        %v1793 = vpop.f32.mrf.mxu0
        %v1794 = vadd.f32 %v1729, %v1793
        %1795 = vmatmul.f32.gmra.mxu0 %v1604
        %v1796 = vpop.f32.mrf.mxu0
        %v1797 = vadd.f32 %v1732, %v1796
        %1798 = vmatmul.f32.gmra.mxu0 %v1606
        %v1799 = vpop.f32.mrf.mxu0
        %v1800 = vadd.f32 %v1735, %v1799
        %1801 = vmatmul.f32.gmra.mxu0 %v1608
        %v1802 = vpop.f32.mrf.mxu0
        %v1803 = vadd.f32 %v1738, %v1802
        %1804 = vmatmul.f32.gmra.mxu0 %v1610
        %v1805 = vpop.f32.mrf.mxu0
        %v1806 = vadd.f32 %v1741, %v1805
        %1807 = vmatmul.f32.gmra.mxu0 %v1612
        %v1808 = vpop.f32.mrf.mxu0
        %v1809 = vadd.f32 %v1744, %v1808
        %1810 = vmatmul.f32.gmra.mxu0 %v1614
        %v1811 = vpop.f32.mrf.mxu0
        %v1812 = vadd.f32 %v1747, %v1811
        %1813 = vmatmul.f32.gmra.mxu0 %v1616
        %v1814 = vpop.f32.mrf.mxu0
        %v1815 = vadd.f32 %v1750, %v1814
        %1816 = vdwg.mxu0
        %1817 = vmatpush.msra.mxu0 %v1648
        %1818 = vmatpush.msra.mxu0 %v1646
        %1819 = vmatpush.msra.mxu0 %v1644
        %1820 = vmatpush.msra.mxu0 %v1642
        %1821 = vmatpush.msra.mxu0 %v1640
        %1822 = vmatpush.msra.mxu0 %v1638
        %1823 = vmatpush.msra.mxu0 %v1636
        %1824 = vmatpush.msra.mxu0 %v1634
        %1825 = vmatpush.msra.mxu0 %v1632
        %1826 = vmatpush.msra.mxu0 %v1630
        %1827 = vmatpush.msra.mxu0 %v1628
        %1828 = vmatpush.msra.mxu0 %v1626
        %1829 = vmatpush.msra.mxu0 %v1624
        %1830 = vmatpush.msra.mxu0 %v1622
        %1831 = vmatpush.msra.mxu0 %v1620
        %1832 = vmatpush.msra.mxu0 %v1618
        %1833 = vmatmul.f32.gmra.mxu0 %v1585
        %v1834 = vpop.f32.mrf.mxu0
        %v1835 = vadd.f32 %v1684, %v1834
        %1836 = vmatmul.f32.gmra.mxu0 %v1587
        %v1837 = vpop.f32.mrf.mxu0
        %v1838 = vadd.f32 %v1684, %v1837
        %1839 = vmatmul.f32.gmra.mxu0 %v1589
        %v1840 = vpop.f32.mrf.mxu0
        %v1841 = vadd.f32 %v1684, %v1840
        %1842 = vmatmul.f32.gmra.mxu0 %v1591
        %v1843 = vpop.f32.mrf.mxu0
        %v1844 = vadd.f32 %v1684, %v1843
        %1845 = vmatmul.f32.gmra.mxu0 %v1593
        %v1846 = vpop.f32.mrf.mxu0
        %v1847 = vadd.f32 %v1684, %v1846
        %1848 = vmatmul.f32.gmra.mxu0 %v1595
        %v1849 = vpop.f32.mrf.mxu0
        %v1850 = vadd.f32 %v1684, %v1849
        %1851 = vmatmul.f32.gmra.mxu0 %v1597
        %v1852 = vpop.f32.mrf.mxu0
        %v1853 = vadd.f32 %v1684, %v1852
        %1854 = vmatmul.f32.gmra.mxu0 %v1599
        %v1855 = vpop.f32.mrf.mxu0
        %v1856 = vadd.f32 %v1684, %v1855
        %1857 = vmatmul.f32.gmra.mxu0 %v1601
        %v1858 = vpop.f32.mrf.mxu0
        %v1859 = vadd.f32 %v1684, %v1858
        %1860 = vmatmul.f32.gmra.mxu0 %v1603
        %v1861 = vpop.f32.mrf.mxu0
        %v1862 = vadd.f32 %v1684, %v1861
        %1863 = vmatmul.f32.gmra.mxu0 %v1605
        %v1864 = vpop.f32.mrf.mxu0
        %v1865 = vadd.f32 %v1684, %v1864
        %1866 = vmatmul.f32.gmra.mxu0 %v1607
        %v1867 = vpop.f32.mrf.mxu0
        %v1868 = vadd.f32 %v1684, %v1867
        %1869 = vmatmul.f32.gmra.mxu0 %v1609
        %v1870 = vpop.f32.mrf.mxu0
        %v1871 = vadd.f32 %v1684, %v1870
        %1872 = vmatmul.f32.gmra.mxu0 %v1611
        %v1873 = vpop.f32.mrf.mxu0
        %v1874 = vadd.f32 %v1684, %v1873
        %1875 = vmatmul.f32.gmra.mxu0 %v1613
        %v1876 = vpop.f32.mrf.mxu0
        %v1877 = vadd.f32 %v1684, %v1876
        %1878 = vmatmul.f32.gmra.mxu0 %v1615
        %v1879 = vpop.f32.mrf.mxu0
        %v1880 = vadd.f32 %v1684, %v1879
        %1881 = vdwg.mxu0
        %1882 = vmatpush.msra.mxu0 %v1680
        %1883 = vmatpush.msra.mxu0 %v1678
        %1884 = vmatpush.msra.mxu0 %v1676
        %1885 = vmatpush.msra.mxu0 %v1674
        %1886 = vmatpush.msra.mxu0 %v1672
        %1887 = vmatpush.msra.mxu0 %v1670
        %1888 = vmatpush.msra.mxu0 %v1668
        %1889 = vmatpush.msra.mxu0 %v1666
        %1890 = vmatpush.msra.mxu0 %v1664
        %1891 = vmatpush.msra.mxu0 %v1662
        %1892 = vmatpush.msra.mxu0 %v1660
        %1893 = vmatpush.msra.mxu0 %v1658
        %1894 = vmatpush.msra.mxu0 %v1656
        %1895 = vmatpush.msra.mxu0 %v1654
        %1896 = vmatpush.msra.mxu0 %v1652
        %1897 = vmatpush.msra.mxu0 %v1650
        %1898 = vmatmul.f32.gmra.mxu0 %v1586
        %v1899 = vpop.f32.mrf.mxu0
        %v1900 = vadd.f32 %v1835, %v1899
        %1901 = vmatmul.f32.gmra.mxu0 %v1588
        %v1902 = vpop.f32.mrf.mxu0
        %v1903 = vadd.f32 %v1838, %v1902
        %1904 = vmatmul.f32.gmra.mxu0 %v1590
        %v1905 = vpop.f32.mrf.mxu0
        %v1906 = vadd.f32 %v1841, %v1905
        %1907 = vmatmul.f32.gmra.mxu0 %v1592
        %v1908 = vpop.f32.mrf.mxu0
        %v1909 = vadd.f32 %v1844, %v1908
        %1910 = vmatmul.f32.gmra.mxu0 %v1594
        %v1911 = vpop.f32.mrf.mxu0
        %v1912 = vadd.f32 %v1847, %v1911
        %1913 = vmatmul.f32.gmra.mxu0 %v1596
        %v1914 = vpop.f32.mrf.mxu0
        %v1915 = vadd.f32 %v1850, %v1914
        %1916 = vmatmul.f32.gmra.mxu0 %v1598
        %v1917 = vpop.f32.mrf.mxu0
        %v1918 = vadd.f32 %v1853, %v1917
        %1919 = vmatmul.f32.gmra.mxu0 %v1600
        %v1920 = vpop.f32.mrf.mxu0
        %v1921 = vadd.f32 %v1856, %v1920
        %1922 = vmatmul.f32.gmra.mxu0 %v1602
        %v1923 = vpop.f32.mrf.mxu0
        %v1924 = vadd.f32 %v1859, %v1923
        %1925 = vmatmul.f32.gmra.mxu0 %v1604
        %v1926 = vpop.f32.mrf.mxu0
        %v1927 = vadd.f32 %v1862, %v1926
        %1928 = vmatmul.f32.gmra.mxu0 %v1606
        %v1929 = vpop.f32.mrf.mxu0
        %v1930 = vadd.f32 %v1865, %v1929
        %1931 = vmatmul.f32.gmra.mxu0 %v1608
        %v1932 = vpop.f32.mrf.mxu0
        %v1933 = vadd.f32 %v1868, %v1932
        %1934 = vmatmul.f32.gmra.mxu0 %v1610
        %v1935 = vpop.f32.mrf.mxu0
        %v1936 = vadd.f32 %v1871, %v1935
        %1937 = vmatmul.f32.gmra.mxu0 %v1612
        %v1938 = vpop.f32.mrf.mxu0
        %v1939 = vadd.f32 %v1874, %v1938
        %1940 = vmatmul.f32.gmra.mxu0 %v1614
        %v1941 = vpop.f32.mrf.mxu0
        %v1942 = vadd.f32 %v1877, %v1941
        %1943 = vmatmul.f32.gmra.mxu0 %v1616
        %v1944 = vpop.f32.mrf.mxu0
        %v1945 = vadd.f32 %v1880, %v1944
        %1946 = vdwg.mxu0
        %v1947 = vadd.f32 %v1770, %v999
        %v1948 = vadd.f32 %v1900, %v1000
        %v1949 = vadd.f32 %v1773, %v1001
        %v1950 = vadd.f32 %v1903, %v1002
        %v1951 = vadd.f32 %v1776, %v1003
        %v1952 = vadd.f32 %v1906, %v1004
        %v1953 = vadd.f32 %v1779, %v1005
        %v1954 = vadd.f32 %v1909, %v1006
        %v1955 = vadd.f32 %v1782, %v1007
        %v1956 = vadd.f32 %v1912, %v1008
        %v1957 = vadd.f32 %v1785, %v1009
        %v1958 = vadd.f32 %v1915, %v1010
        %v1959 = vadd.f32 %v1788, %v1011
        %v1960 = vadd.f32 %v1918, %v1012
        %v1961 = vadd.f32 %v1791, %v1013
        %v1962 = vadd.f32 %v1921, %v1014
        %v1963 = vadd.f32 %v1794, %v1015
        %v1964 = vadd.f32 %v1924, %v1016
        %v1965 = vadd.f32 %v1797, %v1017
        %v1966 = vadd.f32 %v1927, %v1018
        %v1967 = vadd.f32 %v1800, %v1019
        %v1968 = vadd.f32 %v1930, %v1020
        %v1969 = vadd.f32 %v1803, %v1021
        %v1970 = vadd.f32 %v1933, %v1022
        %v1971 = vadd.f32 %v1806, %v1023
        %v1972 = vadd.f32 %v1936, %v1024
        %v1973 = vadd.f32 %v1809, %v1025
        %v1974 = vadd.f32 %v1939, %v1026
        %v1975 = vadd.f32 %v1812, %v1027
        %v1976 = vadd.f32 %v1942, %v1028
        %v1977 = vadd.f32 %v1815, %v1029
        %v1978 = vadd.f32 %v1945, %v1030
        %v1979 = vld [vmem:[#allocation10] sm:$0xff]
        %v1980 = vld [vmem:[#allocation10 + $0x8] sm:$0xff]
        %v1981 = vld [vmem:[#allocation10 + $0x10] sm:$0xff]
        %v1982 = vld [vmem:[#allocation10 + $0x18] sm:$0xff]
        %v1983 = vld [vmem:[#allocation10 + $0x20] sm:$0xff]
        %v1984 = vld [vmem:[#allocation10 + $0x28] sm:$0xff]
        %v1985 = vld [vmem:[#allocation10 + $0x30] sm:$0xff]
        %v1986 = vld [vmem:[#allocation10 + $0x38] sm:$0xff]
        %v1987 = vld [vmem:[#allocation10 + $0x40] sm:$0xff]
        %v1988 = vld [vmem:[#allocation10 + $0x48] sm:$0xff]
        %v1989 = vld [vmem:[#allocation10 + $0x50] sm:$0xff]
        %v1990 = vld [vmem:[#allocation10 + $0x58] sm:$0xff]
        %v1991 = vld [vmem:[#allocation10 + $0x60] sm:$0xff]
        %v1992 = vld [vmem:[#allocation10 + $0x68] sm:$0xff]
        %v1993 = vld [vmem:[#allocation10 + $0x70] sm:$0xff]
        %v1994 = vld [vmem:[#allocation10 + $0x78] sm:$0xff]
        %v1995 = vld [vmem:[#allocation10 + $0x80] sm:$0xff]
        %v1996 = vld [vmem:[#allocation10 + $0x88] sm:$0xff]
        %v1997 = vld [vmem:[#allocation10 + $0x90] sm:$0xff]
        %v1998 = vld [vmem:[#allocation10 + $0x98] sm:$0xff]
        %v1999 = vld [vmem:[#allocation10 + $0xa0] sm:$0xff]
        %v2000 = vld [vmem:[#allocation10 + $0xa8] sm:$0xff]
        %v2001 = vld [vmem:[#allocation10 + $0xb0] sm:$0xff]
        %v2002 = vld [vmem:[#allocation10 + $0xb8] sm:$0xff]
        %v2003 = vld [vmem:[#allocation10 + $0xc0] sm:$0xff]
        %v2004 = vld [vmem:[#allocation10 + $0xc8] sm:$0xff]
        %v2005 = vld [vmem:[#allocation10 + $0xd0] sm:$0xff]
        %v2006 = vld [vmem:[#allocation10 + $0xd8] sm:$0xff]
        %v2007 = vld [vmem:[#allocation10 + $0xe0] sm:$0xff]
        %v2008 = vld [vmem:[#allocation10 + $0xe8] sm:$0xff]
        %v2009 = vld [vmem:[#allocation10 + $0xf0] sm:$0xff]
        %v2010 = vld [vmem:[#allocation10 + $0xf8] sm:$0xff]
        %v2011 = vld [vmem:[%s7] sm:$0x1]
        %v2013 = vperm.slane %v2011, 0
        %2015 = vmatpush.msra.mxu0 %v1994
        %2016 = vmatpush.msra.mxu0 %v1993
        %2017 = vmatpush.msra.mxu0 %v1992
        %2018 = vmatpush.msra.mxu0 %v1991
        %2019 = vmatpush.msra.mxu0 %v1990
        %2020 = vmatpush.msra.mxu0 %v1989
        %2021 = vmatpush.msra.mxu0 %v1988
        %2022 = vmatpush.msra.mxu0 %v1987
        %2023 = vmatpush.msra.mxu0 %v1986
        %2024 = vmatpush.msra.mxu0 %v1985
        %2025 = vmatpush.msra.mxu0 %v1984
        %2026 = vmatpush.msra.mxu0 %v1983
        %2027 = vmatpush.msra.mxu0 %v1982
        %2028 = vmatpush.msra.mxu0 %v1981
        %2029 = vmatpush.msra.mxu0 %v1980
        %2030 = vmatpush.msra.mxu0 %v1979
        %2031 = vmatmul.f32.gmra.mxu0 %v1947
        %v2032 = vpop.f32.mrf.mxu0
        %v2033 = vadd.f32 %v2013, %v2032
        %2034 = vmatmul.f32.gmra.mxu0 %v1949
        %v2035 = vpop.f32.mrf.mxu0
        %v2036 = vadd.f32 %v2013, %v2035
        %2037 = vmatmul.f32.gmra.mxu0 %v1951
        %v2038 = vpop.f32.mrf.mxu0
        %v2039 = vadd.f32 %v2013, %v2038
        %2040 = vmatmul.f32.gmra.mxu0 %v1953
        %v2041 = vpop.f32.mrf.mxu0
        %v2042 = vadd.f32 %v2013, %v2041
        %2043 = vmatmul.f32.gmra.mxu0 %v1955
        %v2044 = vpop.f32.mrf.mxu0
        %v2045 = vadd.f32 %v2013, %v2044
        %2046 = vmatmul.f32.gmra.mxu0 %v1957
        %v2047 = vpop.f32.mrf.mxu0
        %v2048 = vadd.f32 %v2013, %v2047
        %2049 = vmatmul.f32.gmra.mxu0 %v1959
        %v2050 = vpop.f32.mrf.mxu0
        %v2051 = vadd.f32 %v2013, %v2050
        %2052 = vmatmul.f32.gmra.mxu0 %v1961
        %v2053 = vpop.f32.mrf.mxu0
        %v2054 = vadd.f32 %v2013, %v2053
        %2055 = vmatmul.f32.gmra.mxu0 %v1963
        %v2056 = vpop.f32.mrf.mxu0
        %v2057 = vadd.f32 %v2013, %v2056
        %2058 = vmatmul.f32.gmra.mxu0 %v1965
        %v2059 = vpop.f32.mrf.mxu0
        %v2060 = vadd.f32 %v2013, %v2059
        %2061 = vmatmul.f32.gmra.mxu0 %v1967
        %v2062 = vpop.f32.mrf.mxu0
        %v2063 = vadd.f32 %v2013, %v2062
        %2064 = vmatmul.f32.gmra.mxu0 %v1969
        %v2065 = vpop.f32.mrf.mxu0
        %v2066 = vadd.f32 %v2013, %v2065
        %2067 = vmatmul.f32.gmra.mxu0 %v1971
        %v2068 = vpop.f32.mrf.mxu0
        %v2069 = vadd.f32 %v2013, %v2068
        %2070 = vmatmul.f32.gmra.mxu0 %v1973
        %v2071 = vpop.f32.mrf.mxu0
        %v2072 = vadd.f32 %v2013, %v2071
        %2073 = vmatmul.f32.gmra.mxu0 %v1975
        %v2074 = vpop.f32.mrf.mxu0
        %v2075 = vadd.f32 %v2013, %v2074
        %2076 = vmatmul.f32.gmra.mxu0 %v1977
        %v2077 = vpop.f32.mrf.mxu0
        %v2078 = vadd.f32 %v2013, %v2077
        %2079 = vdwg.mxu0
        %2080 = vmatpush.msra.mxu0 %v2010
        %2081 = vmatpush.msra.mxu0 %v2009
        %2082 = vmatpush.msra.mxu0 %v2008
        %2083 = vmatpush.msra.mxu0 %v2007
        %2084 = vmatpush.msra.mxu0 %v2006
        %2085 = vmatpush.msra.mxu0 %v2005
        %2086 = vmatpush.msra.mxu0 %v2004
        %2087 = vmatpush.msra.mxu0 %v2003
        %2088 = vmatpush.msra.mxu0 %v2002
        %2089 = vmatpush.msra.mxu0 %v2001
        %2090 = vmatpush.msra.mxu0 %v2000
        %2091 = vmatpush.msra.mxu0 %v1999
        %2092 = vmatpush.msra.mxu0 %v1998
        %2093 = vmatpush.msra.mxu0 %v1997
        %2094 = vmatpush.msra.mxu0 %v1996
        %2095 = vmatpush.msra.mxu0 %v1995
        %2096 = vmatmul.f32.gmra.mxu0 %v1948
        %v2097 = vpop.f32.mrf.mxu0
        %v2098 = vadd.f32 %v2033, %v2097
        %2099 = vmatmul.f32.gmra.mxu0 %v1950
        %v2100 = vpop.f32.mrf.mxu0
        %v2101 = vadd.f32 %v2036, %v2100
        %2102 = vmatmul.f32.gmra.mxu0 %v1952
        %v2103 = vpop.f32.mrf.mxu0
        %v2104 = vadd.f32 %v2039, %v2103
        %2105 = vmatmul.f32.gmra.mxu0 %v1954
        %v2106 = vpop.f32.mrf.mxu0
        %v2107 = vadd.f32 %v2042, %v2106
        %2108 = vmatmul.f32.gmra.mxu0 %v1956
        %v2109 = vpop.f32.mrf.mxu0
        %v2110 = vadd.f32 %v2045, %v2109
        %2111 = vmatmul.f32.gmra.mxu0 %v1958
        %v2112 = vpop.f32.mrf.mxu0
        %v2113 = vadd.f32 %v2048, %v2112
        %2114 = vmatmul.f32.gmra.mxu0 %v1960
        %v2115 = vpop.f32.mrf.mxu0
        %v2116 = vadd.f32 %v2051, %v2115
        %2117 = vmatmul.f32.gmra.mxu0 %v1962
        %v2118 = vpop.f32.mrf.mxu0
        %v2119 = vadd.f32 %v2054, %v2118
        %2120 = vmatmul.f32.gmra.mxu0 %v1964
        %v2121 = vpop.f32.mrf.mxu0
        %v2122 = vadd.f32 %v2057, %v2121
        %2123 = vmatmul.f32.gmra.mxu0 %v1966
        %v2124 = vpop.f32.mrf.mxu0
        %v2125 = vadd.f32 %v2060, %v2124
        %2126 = vmatmul.f32.gmra.mxu0 %v1968
        %v2127 = vpop.f32.mrf.mxu0
        %v2128 = vadd.f32 %v2063, %v2127
        %2129 = vmatmul.f32.gmra.mxu0 %v1970
        %v2130 = vpop.f32.mrf.mxu0
        %v2131 = vadd.f32 %v2066, %v2130
        %2132 = vmatmul.f32.gmra.mxu0 %v1972
        %v2133 = vpop.f32.mrf.mxu0
        %v2134 = vadd.f32 %v2069, %v2133
        %2135 = vmatmul.f32.gmra.mxu0 %v1974
        %v2136 = vpop.f32.mrf.mxu0
        %v2137 = vadd.f32 %v2072, %v2136
        %2138 = vmatmul.f32.gmra.mxu0 %v1976
        %v2139 = vpop.f32.mrf.mxu0
        %v2140 = vadd.f32 %v2075, %v2139
        %2141 = vmatmul.f32.gmra.mxu0 %v1978
        %v2142 = vpop.f32.mrf.mxu0
        %v2143 = vadd.f32 %v2078, %v2142
        %2144 = vdwg.mxu0
        %2145 = vst [vmem:[%s390] sm:$0xff] %v2098
        %2146 = vst [vmem:[%s390 + $0x8] sm:$0xff] %v2101
        %2147 = vst [vmem:[%s390 + $0x10] sm:$0xff] %v2104
        %2148 = vst [vmem:[%s390 + $0x18] sm:$0xff] %v2107
        %2149 = vst [vmem:[%s390 + $0x20] sm:$0xff] %v2110
        %2150 = vst [vmem:[%s390 + $0x28] sm:$0xff] %v2113
        %2151 = vst [vmem:[%s390 + $0x30] sm:$0xff] %v2116
        %2152 = vst [vmem:[%s390 + $0x38] sm:$0xff] %v2119
        %2153 = vst [vmem:[%s390 + $0x40] sm:$0xff] %v2122
        %2154 = vst [vmem:[%s390 + $0x48] sm:$0xff] %v2125
        %2155 = vst [vmem:[%s390 + $0x50] sm:$0xff] %v2128
        %2156 = vst [vmem:[%s390 + $0x58] sm:$0xff] %v2131
        %2157 = vst [vmem:[%s390 + $0x60] sm:$0xff] %v2134
        %2158 = vst [vmem:[%s390 + $0x68] sm:$0xff] %v2137
        %2159 = vst [vmem:[%s390 + $0x70] sm:$0xff] %v2140
        %2160 = vst [vmem:[%s390 + $0x78] sm:$0xff] %v2143
        %s2161 = sand.u32 %s208, 1
        %s2162 = scalar_lea.sflag [#allocation4], %s2161
        %s2163 = sand.u32 %s208, 1
        %s2164 = smul.addr %s2163, 128
        %s2165 = scalar_lea.vmem [#allocation11], %s2164
        // Predicated region
        $region73: #{tpu_custom_call.1} parent=51 // pred_check
          %p2166 = pneg %p218
        $region74: #{tpu_custom_call.1} parent=51 // pred_check_branch
          %2168 = sbr.rel (%p2166) target = $region76
        $region75: #{tpu_custom_call.1} parent=51 // pred_region
          %s2169 = smul.u32 2, %s27
          %2171 = vsyncadd %s2162, 0
          %s2172 = smul.addr %s2169, 8
          %s2173 = smul.addr %s2172, 8
          %s2174 = scalar_lea.hbm %s8, %s2173
          %s2175 = sshll.u32 %s2165, 4
          %s2176 = int_to_ptr.vmem [resolvable:$true] %s2175
          %s2177 = sshll.u32 %s2174, 4
          %s2178 = int_to_ptr.hbm [resolvable:$true] %s2177
          %2183 = dma.vmem_to_hbm [thread:$0]  %s2176, 2048, %s2178, %s2162, 128, 128, 8
        $region76: #{tpu_custom_call.1} parent=51 // pred_fallthru
          _
      $region52: #{tpu_custom_call.1} parent=5 // pred_fallthru
        _
      %p2184 = scmp.le.s32.totalorder 2, %s22
      // Predicated region
      $region77: #{tpu_custom_call.1} parent=5 // pred_check
        %p2185 = pneg %p2184
      $region78: #{tpu_custom_call.1} parent=5 // pred_check_branch
        %2187 = sbr.rel (%p2185) target = $region80
      $region79: #{tpu_custom_call.1} parent=5 // pred_region
        %s2188 = ssub.s32 %s22, 2
        // Predicated region
        $region81: #{tpu_custom_call.1} parent=79 // pred_check
          %p2189 = pneg %p224
        $region82: #{tpu_custom_call.1} parent=79 // pred_check_branch
          %2191 = sbr.rel (%p2189) target = $region84
        $region83: #{tpu_custom_call.1} parent=79 // pred_region
          %s2192 = sand.u32 %s209, 1
          %s2193 = scalar_lea.sflag [#allocation4], %s2192
          %s2194 = sand.u32 %s209, 1
          %s2195 = smul.addr %s2194, 128
          %s2196 = scalar_lea.vmem [#allocation11], %s2195
          %2198 = dma.done %s2193, 2048
        $region84: #{tpu_custom_call.1} parent=79 // pred_fallthru
          _
      $region80: #{tpu_custom_call.1} parent=5 // pred_fallthru
        _
    $region6: #{tpu_custom_call.1} parent=1 // loop_footer
      %s26 = sadd.s32 1, %s22
    $region7: #{tpu_custom_call.1} parent=1 // loop_footer_branch
      %21 = sbr.rel target = $region3
    $region8: #{tpu_custom_call.1} parent=1 // loop_exit
      _
    %2199 = vsyncpa [#allocation3], 1
    %s2200 = scalar_lea.sflag [#allocation3], 1
    %2201 = vsyncpa %s2200, 1
    %2202 = vsyncpa [#allocation6], 1
    %2203 = vsyncpa [#allocation9], 1
    %2204 = vsyncpa [#allocation4], 1
    %s2205 = scalar_lea.sflag [#allocation4], 1
    %2206 = vsyncpa %s2205, 1

</llo_original>
